<compile_context>
chip_gen: v6e
topology: v6e:2x2x1
jax: 0.10.0
libtpu: 0.0.40
codegen_flags: <defaults>
</compile_context>

<pallas_src>
import functools
import math

import jax
import jax.numpy as jnp
from jax.experimental import pallas as pl
from jax.experimental.pallas import tpu as pltpu

PREC = jax.lax.Precision.HIGHEST   # exact f32 matmuls (reference / offline prep only)


def _round_up(x, m):
    return ((x + m - 1) // m) * m


# ---------------------------------------------------------------------------
# Pallas kernel: `step` GNNCell applications for one graph and a block of TB
# batch elements.
#   grid = (batch_blocks, n_graphs)
#   The output block (same index for every graph t) is the carried hidden state.
# ---------------------------------------------------------------------------
def gnn_kernel(
    A_in_ref,      # (1, TB, Lp, Lp) bf16   in-adjacency for graph t
    A_out_ref,     # (1, TB, Lp, Lp) bf16   out-adjacency
    h0_ref,        # (TB, Lp, Hp)    f32    initial hidden (used only at t == 0)
    w_big_ref,     # (Hp, 5Hp)       bf16   [edge_in.T | edge_out.T | w_hh.T (gate-padded)]
    b_big_ref,     # (1, 5Hp)        f32    [b_ein | b_eout | b_hh (gate-padded)]
    w_ih_ref,      # (2Hp, 3Hp)      bf16   fused w_ih.T, gate-block padded
    b_ih_ref,      # (1, 3Hp)        f32    b_ih + [b_iah|b_oah] @ w_ih (folded)
    out_ref,       # (TB, Lp, Hp)    f32    carried hidden state / final output
    *,
    step,
):
    f32 = jnp.float32
    bf16 = jnp.bfloat16
    t = pl.program_id(1)

    @pl.when(t == 0)
    def _init():
        out_ref[...] = h0_ref[...]

    A_in = A_in_ref[0]                        # (TB, Lp, Lp) bf16
    A_out = A_out_ref[0]

    h = out_ref[...]                          # (TB, Lp, Hp) f32, carried state
    TB, Lp, Hp = h.shape

    for _ in range(step):                     # static unroll of the GRU-cell steps
        hf = h.reshape(TB * Lp, Hp)

        # One fused node-wise matmul: [edge_in | edge_out | gh]  (rows, 5Hp)
        big = jnp.dot(hf.astype(bf16), w_big_ref[...],
                      preferred_element_type=f32) + b_big_ref[...]
        edge_in = big[:, :Hp].reshape(TB, Lp, Hp).astype(bf16)     # 128-aligned slices
        edge_out = big[:, Hp:2 * Hp].reshape(TB, Lp, Hp).astype(bf16)
        gh = big[:, 2 * Hp:]                                       # (rows, 3Hp) f32

        # Graph propagation (batched small matmuls over the TB axis, K = Lp).
        in_in = jnp.einsum("bij,bjh->bih", A_in, edge_in,
                           preferred_element_type=f32)
        in_out = jnp.einsum("bij,bjh->bih", A_out, edge_out,
                            preferred_element_type=f32)

        # GRU-style gates; single K=2Hp matmul on the lane-aligned concat.
        inp = jnp.concatenate(
            [in_in.astype(bf16), in_out.astype(bf16)], axis=-1
        ).reshape(TB * Lp, 2 * Hp)
        gi = jnp.dot(inp, w_ih_ref[...],
                     preferred_element_type=f32) + b_ih_ref[...]

        i_r, i_i, i_n = gi[:, :Hp], gi[:, Hp:2 * Hp], gi[:, 2 * Hp:]
        h_r, h_i, h_n = gh[:, :Hp], gh[:, Hp:2 * Hp], gh[:, 2 * Hp:]

        resetgate = jax.nn.sigmoid(i_r + h_r)
        inputgate = jax.nn.sigmoid(i_i + h_i)
        newgate = jnp.tanh(i_n + resetgate * h_n)
        hy = newgate + inputgate * (hf - newgate)
        h = hy.reshape(TB, Lp, Hp)

    out_ref[...] = h


def _vmem_limit_bytes(TB, Lp, Hp):
    """Rough VMEM budget: weights + A/hidden buffers + matmul temporaries."""
    rows = TB * Lp
    lanes_A = max(Lp, 128)
    weights = (5 * Hp * Hp + 2 * Hp * 3 * Hp) * 2 + (5 * Hp + 3 * Hp) * 4
    a_bufs = 2 * 2 * TB * Lp * lanes_A * 2          # 2 arrays x 2 buffers, bf16
    h_bufs = 4 * rows * Hp * 4                      # h0 + carried output blocks
    temps = 2 * rows * (5 * Hp + 2 * Hp + 3 * Hp) * 4
    est = 2 * weights + a_bufs + h_bufs + temps + (4 << 20)
    return int(min(max(est, 32 << 20), 56 << 20))   # stay under v7x's 64 MiB physical


def gnn_steps_pallas(A_in, A_out, h0, prep, step, TB):
    """Run all n_graphs GNN applications (each with `step` cells) in one pallas_call.

    A_in, A_out : (G, Bp, Lp, Lp) bfloat16
    h0          : (Bp, Lp, Hp)    float32 (zero-padded)
    """
    G, Bp, Lp, _ = A_in.shape
    Hp = h0.shape[-1]
    grid = (Bp // TB, G)
    kernel = functools.partial(gnn_kernel, step=step)

    def run(single_buffer_consts):
        extra = {}
        if single_buffer_consts:
            # Constant-index blocks don't need double buffering (big VMEM win at
            # large H, important on v7x's 64 MiB / v5e's 16 MiB default scoped VMEM).
            extra = dict(pipeline_mode=pl.Buffered(1))

        wspec = lambda shp: pl.BlockSpec(shp, lambda b, t: (0,) * len(shp), **extra)
        a_spec = pl.BlockSpec((1, TB, Lp, Lp), lambda b, t: (t, b, 0, 0))
        h0_spec = pl.BlockSpec((TB, Lp, Hp), lambda b, t: (b, 0, 0), **extra)
        out_spec = pl.BlockSpec((TB, Lp, Hp), lambda b, t: (b, 0, 0))

        return pl.pallas_call(
            kernel,
            out_shape=jax.ShapeDtypeStruct((Bp, Lp, Hp), jnp.float32),
            grid=grid,
            in_specs=[
                a_spec, a_spec, h0_spec,
                wspec((Hp, 5 * Hp)), wspec((1, 5 * Hp)),
                wspec((2 * Hp, 3 * Hp)), wspec((1, 3 * Hp)),
            ],
            out_specs=out_spec,
            compiler_params=pltpu.CompilerParams(
                dimension_semantics=("parallel", "arbitrary"),
                vmem_limit_bytes=_vmem_limit_bytes(TB, Lp, Hp)),
        )(A_in, A_out, h0,
          prep["w_big"], prep["b_big"], prep["w_ih"], prep["b_ih"])

    try:
        return run(True)
    except Exception:
        # Fallback for jax builds without BlockSpec(pipeline_mode=...) support.
        return run(False)


# ---------------------------------------------------------------------------
# One-time weight preparation: transpose, fuse, gate-block pad to Hp lanes,
# fold b_iah/b_oah into the ih bias, cast weights to bf16.
# Padded rows/columns are zero, so padded lanes of the carried hidden state
# stay exactly zero across steps (sliced away at the end).
# ---------------------------------------------------------------------------
def _pad_gate_cols(w, rows_p, gate_w, gate_p):
    """w: (rows, n_gates*gate_w) -> (rows_p, n_gates*gate_p), per-gate blocked."""
    rows = w.shape[0]
    n_gates = w.shape[1] // gate_w
    out = jnp.zeros((rows_p, n_gates * gate_p), jnp.float32)
    for g in range(n_gates):
        out = out.at[:rows, g * gate_p:g * gate_p + gate_w].set(
            w[:, g * gate_w:(g + 1) * gate_w])
    return out


def prepare_params(params, Hp):
    H = params["w_ein"].shape[0]
    f32 = jnp.float32

    # W_big = [edge_in.T | edge_out.T | w_hh.T (gate-padded)] : (Hp, 5Hp)
    w_big = jnp.zeros((Hp, 5 * Hp), f32)
    w_big = w_big.at[:H, :H].set(params["w_ein"].T)
    w_big = w_big.at[:H, Hp:Hp + H].set(params["w_eout"].T)
    w_big = w_big.at[:, 2 * Hp:].set(_pad_gate_cols(params["w_hh"].T, Hp, H, Hp))

    b_big = jnp.zeros((1, 5 * Hp), f32)
    b_big = b_big.at[:, :H].set(params["b_ein"].reshape(1, H))
    b_big = b_big.at[:, Hp:Hp + H].set(params["b_eout"].reshape(1, H))
    b_big = b_big.at[:, 2 * Hp:].set(
        _pad_gate_cols(params["b_hh"].reshape(1, 3 * H), 1, H, Hp))

    # Fused w_ih.T: (2Hp, 3Hp); rows [0:H] consume in_in, rows [Hp:Hp+H] in_out.
    w_ih_T = params["w_ih"].T                                      # (2H, 3H)
    w_ih_f = jnp.zeros((2 * Hp, 3 * Hp), f32)
    w_ih_f = w_ih_f.at[:Hp].set(_pad_gate_cols(w_ih_T[:H], Hp, H, Hp))
    w_ih_f = w_ih_f.at[Hp:].set(_pad_gate_cols(w_ih_T[H:2 * H], Hp, H, Hp))

    # Fold b_iah / b_oah into the ih bias: b_ih + [b_iah | b_oah] @ w_ih.T
    bio = jnp.zeros((1, 2 * Hp), f32)
    bio = bio.at[:, :H].set(params["b_iah"].reshape(1, H))
    bio = bio.at[:, Hp:Hp + H].set(params["b_oah"].reshape(1, H))
    b_ih_f = (_pad_gate_cols(params["b_ih"].reshape(1, 3 * H), 1, H, Hp)
              + jnp.dot(bio, w_ih_f, precision=PREC))

    return {
        "w_big": w_big.astype(jnp.bfloat16),
        "b_big": b_big,
        "w_ih": w_ih_f.astype(jnp.bfloat16),
        "b_ih": b_ih_f,
    }


# ---------------------------------------------------------------------------
# SessionGraph forward (embedding lookup + padding/layout glue + kernel).
# ---------------------------------------------------------------------------
def session_graph_forward(inputs, A_list, params, step=1):
    H = params["embedding"].shape[1]
    Hp = max(128, _round_up(H, 128))
    prep = prepare_params(params, Hp)          # one-time layout plumbing

    hidden = params["embedding"][inputs]       # (B, L0, H)
    B = hidden.shape[0]
    if not A_list:
        return hidden

    # If every A has the same node count (the common case), stack them and run
    # the whole (graphs x step) loop in a single pallas_call; otherwise fall
    # back to one call per graph (still with the step loop inside the kernel).
    same_shape = all(a.shape == A_list[0].shape for a in A_list)
    groups = [list(A_list)] if same_shape else [[a] for a in A_list]

    for group in groups:
        L = group[0].shape[1]
        hidden = hidden[:, :L, :]              # GNN.forward truncation
        Lp = _round_up(L, 8)
        # Target ~512 node rows per block (fills the v6e/v7x 256-wide MXU M dim
        # with headroom), VMEM-capped for large Hp.
        rows_target = min(512, max(128, (6 << 20) // (13 * Hp * 4)))
        TB = max(1, min(B, rows_target // max(Lp, 1)))
        Bp = _round_up(B, TB)
        G = len(group)

        A = jnp.stack(group, axis=0)           # (G, B, L, 2L)
        A_in = jnp.zeros((G, Bp, Lp, Lp), jnp.bfloat16)
        A_in = A_in.at[:, :B, :L, :L].set(A[..., :L].astype(jnp.bfloat16))
        A_out = jnp.zeros((G, Bp, Lp, Lp), jnp.bfloat16)
        A_out = A_out.at[:, :B, :L, :L].set(A[..., L:2 * L].astype(jnp.bfloat16))

        h_p = jnp.zeros((Bp, Lp, Hp), jnp.float32)
        h_p = h_p.at[:B, :L, :H].set(hidden.astype(jnp.float32))

        out_p = gnn_steps_pallas(A_in, A_out, h_p, prep, step, TB)
        hidden = out_p[:B, :L, :H]
    return hidden


# ---------------------------------------------------------------------------
# Pure-JAX f32 reference (mirrors the PyTorch math) for a correctness check.
# ---------------------------------------------------------------------------
def gnn_cell_ref(A, hidden, p):
    L = A.shape[1]
    lin = lambda x, w, b: jnp.einsum("blh,oh->blo", x, w, precision=PREC) + b
    input_in = jnp.matmul(A[:, :, :L], lin(hidden, p["w_ein"], p["b_ein"]),
                          precision=PREC) + p["b_iah"]
    input_out = jnp.matmul(A[:, :, L:2 * L], lin(hidden, p["w_eout"], p["b_eout"]),
                           precision=PREC) + p["b_oah"]
    inputs = jnp.concatenate([input_in, input_out], axis=2)
    gi = jnp.einsum("blh,oh->blo", inputs, p["w_ih"], precision=PREC) + p["b_ih"]
    gh = jnp.einsum("blh,oh->blo", hidden, p["w_hh"], precision=PREC) + p["b_hh"]
    H = hidden.shape[-1]
    i_r, i_i, i_n = gi[..., :H], gi[..., H:2 * H], gi[..., 2 * H:]
    h_r, h_i, h_n = gh[..., :H], gh[..., H:2 * H], gh[..., 2 * H:]
    resetgate = jax.nn.sigmoid(i_r + h_r)
    inputgate = jax.nn.sigmoid(i_i + h_i)
    newgate = jnp.tanh(i_n + resetgate * h_n)
    return newgate + inputgate * (hidden - newgate)


def session_graph_ref(inputs, A_list, params, step=1):
    hidden = params["embedding"][inputs]
    for A in A_list:
        hidden = hidden[:, :A.shape[1], :]
        for _ in range(step):
            hidden = gnn_cell_ref(A, hidden, params)
    return hidden


# ---------------------------------------------------------------------------
# Deterministic parameter init (matches reset_parameters: U(-stdv, stdv)).
# ---------------------------------------------------------------------------
def init_params(key, n_node, hidden_size):
    H = hidden_size
    stdv = 1.0 / math.sqrt(H)
    u = lambda k, shape: jax.random.uniform(k, shape, jnp.float32, -stdv, stdv)
    keys = jax.random.split(key, 12)
    return {
        "embedding": u(keys[0], (n_node, H)),
        "w_ein": u(keys[1], (H, H)),
        "b_ein": u(keys[2], (1, H)),
        "w_eout": u(keys[3], (H, H)),
        "b_eout": u(keys[4], (1, H)),
        "b_iah": u(keys[5], (1, H)),
        "b_oah": u(keys[6], (1, H)),
        "w_ih": u(keys[7], (3 * H, 2 * H)),
        "b_ih": u(keys[8], (1, 3 * H)),
        "w_hh": u(keys[9], (3 * H, H)),
        "b_hh": u(keys[10], (1, 3 * H)),
    }
    # TODO(synk): the remaining SessionGraph submodules (linear_one/two/three,
    # linear_transform, nn/nn1/nnb, fc/fc1/fc2, batchnorms, W) are not used by
    # forward() and are therefore not instantiated here.


if __name__ == "__main__":
    B, L, H = 2, 8, 32
    n_node = 50
    step = 1
    n_graphs = 2

    key = jax.random.PRNGKey(0)
    kp, ki, ka = jax.random.split(key, 3)

    params = init_params(kp, n_node, H)

    inputs = jax.random.randint(ki, (B, L), 0, n_node, dtype=jnp.int32)
    A_keys = jax.random.split(ka, n_graphs)
    A_list = [
        jax.random.uniform(k, (B, L, 2 * L), jnp.float32, 0.0, 1.0) for k in A_keys
    ]

    out = session_graph_forward(inputs, A_list, params, step=step)
    out = jax.block_until_ready(out)

    ref = session_graph_ref(inputs, A_list, params, step=step)
    ref = jax.block_until_ready(ref)

    assert out.shape == (B, L, H), out.shape
    # Kernel uses bf16 MXU inputs with f32 accumulation; reference is exact f32.
    err = float(jnp.max(jnp.abs(out - ref)))
    assert jnp.allclose(out, ref, atol=3e-2, rtol=3e-2), err

    print("KERNEL_OK")
</pallas_src>

<mosaic_0001>
module attributes {stable_mosaic.version = 11 : i64} {
  func.func @gnn_kernel(%arg0: i32, %arg1: i32, %arg2: memref<1x2x8x8xbf16, #tpu.memory_space<vmem>>, %arg3: memref<1x2x8x8xbf16, #tpu.memory_space<vmem>>, %arg4: memref<2x8x128xf32, #tpu.memory_space<vmem>>, %arg5: memref<128x640xbf16, #tpu.memory_space<vmem>>, %arg6: memref<1x640xf32, #tpu.memory_space<vmem>>, %arg7: memref<256x384xbf16, #tpu.memory_space<vmem>>, %arg8: memref<1x384xf32, #tpu.memory_space<vmem>>, %arg9: memref<2x8x128xf32, #tpu.memory_space<vmem>>) attributes {dimension_semantics = [#tpu.dimension_semantics<parallel>, #tpu.dimension_semantics<arbitrary>], iteration_bounds = array<i64: 1, 2>, scalar_prefetch = 0 : i64, scratch_operands = 0 : i64, tpu.core_type = #tpu.core_type<tc>, window_params = [{transform_indices = @transform_0, window_bounds = array<i64: 1, 2, 8, 8>}, {transform_indices = @transform_1, window_bounds = array<i64: 1, 2, 8, 8>}, {pipeline_mode = #tpu.pipeline_mode<synchronous>, transform_indices = @transform_2, window_bounds = array<i64: 2, 8, 128>}, {pipeline_mode = #tpu.pipeline_mode<synchronous>, transform_indices = @transform_3, window_bounds = array<i64: 128, 640>}, {pipeline_mode = #tpu.pipeline_mode<synchronous>, transform_indices = @transform_4, window_bounds = array<i64: 1, 640>}, {pipeline_mode = #tpu.pipeline_mode<synchronous>, transform_indices = @transform_5, window_bounds = array<i64: 256, 384>}, {pipeline_mode = #tpu.pipeline_mode<synchronous>, transform_indices = @transform_6, window_bounds = array<i64: 1, 384>}, {transform_indices = @transform_7, window_bounds = array<i64: 2, 8, 128>}]} {
    %c0_i32 = arith.constant 0 : i32
    %0 = arith.cmpi eq, %arg1, %c0_i32 : i32
    %1 = arith.extui %0 : i1 to i32
    %c0_i32_0 = arith.constant 0 : i32
    %2 = arith.cmpi ne, %1, %c0_i32_0 : i32
    scf.if %2 {
      %c0_27 = arith.constant 0 : index
      %c0_28 = arith.constant 0 : index
      %c0_29 = arith.constant 0 : index
      %59 = vector.load %arg4[%c0_27, %c0_28, %c0_29] : memref<2x8x128xf32, #tpu.memory_space<vmem>>, vector<2x8x128xf32>
      %c0_30 = arith.constant 0 : index
      %c0_31 = arith.constant 0 : index
      %c0_32 = arith.constant 0 : index
      %60 = vector.load %arg9[%c0_30, %c0_31, %c0_32] : memref<2x8x128xf32, #tpu.memory_space<vmem>>, vector<2x8x128xf32>
      tpu.vector_store %arg9[%c0_30, %c0_31, %c0_32], %59 {strides = array<i32>} : memref<2x8x128xf32, #tpu.memory_space<vmem>>, vector<2x8x128xf32>,
    } else {
    }
    %c0 = arith.constant 0 : index
    %c0_1 = arith.constant 0 : index
    %c0_2 = arith.constant 0 : index
    %c0_3 = arith.constant 0 : index
    %3 = vector.load %arg2[%c0, %c0_1, %c0_2, %c0_3] : memref<1x2x8x8xbf16, #tpu.memory_space<vmem>>, vector<1x2x8x8xbf16>
    %4 = vector.shape_cast %3 : vector<1x2x8x8xbf16> to vector<2x8x8xbf16>
    %c0_4 = arith.constant 0 : index
    %c0_5 = arith.constant 0 : index
    %c0_6 = arith.constant 0 : index
    %c0_7 = arith.constant 0 : index
    %5 = vector.load %arg3[%c0_4, %c0_5, %c0_6, %c0_7] : memref<1x2x8x8xbf16, #tpu.memory_space<vmem>>, vector<1x2x8x8xbf16>
    %6 = vector.shape_cast %5 : vector<1x2x8x8xbf16> to vector<2x8x8xbf16>
    %c0_8 = arith.constant 0 : index
    %c0_9 = arith.constant 0 : index
    %c0_10 = arith.constant 0 : index
    %7 = vector.load %arg9[%c0_8, %c0_9, %c0_10] : memref<2x8x128xf32, #tpu.memory_space<vmem>>, vector<2x8x128xf32>
    %8 = vector.shape_cast %7 : vector<2x8x128xf32> to vector<16x128xf32>
    %9 = arith.truncf %8 : vector<16x128xf32> to vector<16x128xbf16>
    %c0_11 = arith.constant 0 : index
    %c0_12 = arith.constant 0 : index
    %10 = vector.load %arg5[%c0_11, %c0_12] : memref<128x640xbf16, #tpu.memory_space<vmem>>, vector<128x640xbf16>
    %cst = arith.constant dense<0.000000e+00> : vector<16x640xf32>
    %11 = tpu.matmul %9, %10, %cst {dimension_numbers = #tpu.dot_dimension_numbers<[1], [0], [0], [1], [0, 0, 1, 1], [], []>} : vector<16x128xbf16>, vector<128x640xbf16>, vector<16x640xf32> -> vector<16x640xf32>
    %c0_13 = arith.constant 0 : index
    %c0_14 = arith.constant 0 : index
    %12 = vector.load %arg6[%c0_13, %c0_14] : memref<1x640xf32, #tpu.memory_space<vmem>>, vector<1x640xf32>
    %13 = vector.broadcast %12 : vector<1x640xf32> to vector<16x640xf32>
    %14 = arith.addf %11, %13 : vector<16x640xf32>
    %15 = vector.extract_strided_slice %14 {offsets = [0, 0], sizes = [16, 128], strides = [1, 1]} : vector<16x640xf32> to vector<16x128xf32>
    %16 = vector.shape_cast %15 : vector<16x128xf32> to vector<2x8x128xf32>
    %17 = arith.truncf %16 : vector<2x8x128xf32> to vector<2x8x128xbf16>
    %18 = vector.extract_strided_slice %14 {offsets = [0, 128], sizes = [16, 128], strides = [1, 1]} : vector<16x640xf32> to vector<16x128xf32>
    %19 = vector.shape_cast %18 : vector<16x128xf32> to vector<2x8x128xf32>
    %20 = arith.truncf %19 : vector<2x8x128xf32> to vector<2x8x128xbf16>
    %21 = vector.extract_strided_slice %14 {offsets = [0, 256], sizes = [16, 384], strides = [1, 1]} : vector<16x640xf32> to vector<16x384xf32>
    "tpu.trace_start"() <{level = 10 : i32, message = "bij,bjh->bih"}> : () -> ()
    %cst_15 = arith.constant dense<0.000000e+00> : vector<2x8x128xf32>
    %22 = tpu.matmul %4, %17, %cst_15 {dimension_numbers = #tpu.dot_dimension_numbers<[2], [1], [1], [2], [0, 0, 0, 1, 1, 2], [0], [0]>} : vector<2x8x8xbf16>, vector<2x8x128xbf16>, vector<2x8x128xf32> -> vector<2x8x128xf32>
    %cst_16 = arith.constant dense<0.000000e+00> : vector<2x8x128xf32>
    %23 = tpu.matmul %6, %20, %cst_16 {dimension_numbers = #tpu.dot_dimension_numbers<[2], [1], [1], [2], [0, 0, 0, 1, 1, 2], [0], [0]>} : vector<2x8x8xbf16>, vector<2x8x128xbf16>, vector<2x8x128xf32> -> vector<2x8x128xf32>
    "tpu.trace_stop"() : () -> ()
    %24 = arith.truncf %22 : vector<2x8x128xf32> to vector<2x8x128xbf16>
    %25 = arith.truncf %23 : vector<2x8x128xf32> to vector<2x8x128xbf16>
    %26 = tpu.concatenate %24, %25 in 2 : vector<2x8x128xbf16>, vector<2x8x128xbf16> -> vector<2x8x256xbf16>
    %27 = vector.shape_cast %26 : vector<2x8x256xbf16> to vector<16x256xbf16>
    %c0_17 = arith.constant 0 : index
    %c0_18 = arith.constant 0 : index
    %28 = vector.load %arg7[%c0_17, %c0_18] : memref<256x384xbf16, #tpu.memory_space<vmem>>, vector<256x384xbf16>
    %cst_19 = arith.constant dense<0.000000e+00> : vector<16x384xf32>
    %29 = tpu.matmul %27, %28, %cst_19 {dimension_numbers = #tpu.dot_dimension_numbers<[1], [0], [0], [1], [0, 0, 1, 1], [], []>} : vector<16x256xbf16>, vector<256x384xbf16>, vector<16x384xf32> -> vector<16x384xf32>
    %c0_20 = arith.constant 0 : index
    %c0_21 = arith.constant 0 : index
    %30 = vector.load %arg8[%c0_20, %c0_21] : memref<1x384xf32, #tpu.memory_space<vmem>>, vector<1x384xf32>
    %31 = vector.broadcast %30 : vector<1x384xf32> to vector<16x384xf32>
    %32 = arith.addf %29, %31 : vector<16x384xf32>
    %33 = vector.extract_strided_slice %32 {offsets = [0, 0], sizes = [16, 128], strides = [1, 1]} : vector<16x384xf32> to vector<16x128xf32>
    %34 = vector.extract_strided_slice %32 {offsets = [0, 128], sizes = [16, 128], strides = [1, 1]} : vector<16x384xf32> to vector<16x128xf32>
    %35 = vector.extract_strided_slice %32 {offsets = [0, 256], sizes = [16, 128], strides = [1, 1]} : vector<16x384xf32> to vector<16x128xf32>
    %36 = vector.extract_strided_slice %21 {offsets = [0, 0], sizes = [16, 128], strides = [1, 1]} : vector<16x384xf32> to vector<16x128xf32>
    %37 = vector.extract_strided_slice %21 {offsets = [0, 128], sizes = [16, 128], strides = [1, 1]} : vector<16x384xf32> to vector<16x128xf32>
    %38 = vector.extract_strided_slice %21 {offsets = [0, 256], sizes = [16, 128], strides = [1, 1]} : vector<16x384xf32> to vector<16x128xf32>
    %39 = arith.addf %33, %36 : vector<16x128xf32>
    %40 = arith.negf %39 : vector<16x128xf32>
    %41 = math.exp %40 : vector<16x128xf32>
    %cst_22 = arith.constant 1.000000e+00 : f32
    %42 = vector.broadcast %cst_22 : f32 to vector<16x128xf32>
    %43 = arith.addf %42, %41 : vector<16x128xf32>
    %44 = arith.divf %42, %43 : vector<16x128xf32>
    %45 = arith.addf %34, %37 : vector<16x128xf32>
    %46 = arith.negf %45 : vector<16x128xf32>
    %47 = math.exp %46 : vector<16x128xf32>
    %cst_23 = arith.constant 1.000000e+00 : f32
    %48 = vector.broadcast %cst_23 : f32 to vector<16x128xf32>
    %49 = arith.addf %48, %47 : vector<16x128xf32>
    %50 = arith.divf %48, %49 : vector<16x128xf32>
    %51 = arith.mulf %44, %38 : vector<16x128xf32>
    %52 = arith.addf %35, %51 : vector<16x128xf32>
    %53 = math.tanh %52 : vector<16x128xf32>
    %54 = arith.subf %8, %53 : vector<16x128xf32>
    %55 = arith.mulf %50, %54 : vector<16x128xf32>
    %56 = arith.addf %53, %55 : vector<16x128xf32>
    %57 = vector.shape_cast %56 : vector<16x128xf32> to vector<2x8x128xf32>
    %c0_24 = arith.constant 0 : index
    %c0_25 = arith.constant 0 : index
    %c0_26 = arith.constant 0 : index
    %58 = vector.load %arg9[%c0_24, %c0_25, %c0_26] : memref<2x8x128xf32, #tpu.memory_space<vmem>>, vector<2x8x128xf32>
    tpu.vector_store %arg9[%c0_24, %c0_25, %c0_26], %57 {strides = array<i32>} : memref<2x8x128xf32, #tpu.memory_space<vmem>>, vector<2x8x128xf32>,
    return
  }
  func.func @transform_0(%arg0: i32, %arg1: i32) -> (i32, i32, i32, i32) {
    %c0_i32 = arith.constant 0 : i32
    %c0_i32_0 = arith.constant 0 : i32
    %c0_i32_1 = arith.constant 0 : i32
    return %arg1, %arg0, %c0_i32, %c0_i32_0 : i32, i32, i32, i32
  }
  func.func @transform_1(%arg0: i32, %arg1: i32) -> (i32, i32, i32, i32) {
    %c0_i32 = arith.constant 0 : i32
    %c0_i32_0 = arith.constant 0 : i32
    %c0_i32_1 = arith.constant 0 : i32
    return %arg1, %arg0, %c0_i32, %c0_i32_0 : i32, i32, i32, i32
  }
  func.func @transform_2(%arg0: i32, %arg1: i32) -> (i32, i32, i32) {
    %c0_i32 = arith.constant 0 : i32
    %c0_i32_0 = arith.constant 0 : i32
    %c0_i32_1 = arith.constant 0 : i32
    return %arg0, %c0_i32, %c0_i32_0 : i32, i32, i32
  }
  func.func @transform_3(%arg0: i32, %arg1: i32) -> (i32, i32) {
    %c0_i32 = arith.constant 0 : i32
    %c0_i32_0 = arith.constant 0 : i32
    %c0_i32_1 = arith.constant 0 : i32
    return %c0_i32, %c0_i32_0 : i32, i32
  }
  func.func @transform_4(%arg0: i32, %arg1: i32) -> (i32, i32) {
    %c0_i32 = arith.constant 0 : i32
    %c0_i32_0 = arith.constant 0 : i32
    %c0_i32_1 = arith.constant 0 : i32
    return %c0_i32, %c0_i32_0 : i32, i32
  }
  func.func @transform_5(%arg0: i32, %arg1: i32) -> (i32, i32) {
    %c0_i32 = arith.constant 0 : i32
    %c0_i32_0 = arith.constant 0 : i32
    %c0_i32_1 = arith.constant 0 : i32
    return %c0_i32, %c0_i32_0 : i32, i32
  }
  func.func @transform_6(%arg0: i32, %arg1: i32) -> (i32, i32) {
    %c0_i32 = arith.constant 0 : i32
    %c0_i32_0 = arith.constant 0 : i32
    %c0_i32_1 = arith.constant 0 : i32
    return %c0_i32, %c0_i32_0 : i32, i32
  }
  func.func @transform_7(%arg0: i32, %arg1: i32) -> (i32, i32, i32) {
    %c0_i32 = arith.constant 0 : i32
    %c0_i32_0 = arith.constant 0 : i32
    %c0_i32_1 = arith.constant 0 : i32
    return %arg0, %c0_i32, %c0_i32_0 : i32, i32, i32
  }
}

module attributes {stable_mosaic.version = 11 : i64} {
  func.func @gnn_kernel(%arg0: i32, %arg1: i32, %arg2: memref<1x2x8x8xbf16, #tpu.memory_space<vmem>>, %arg3: memref<1x2x8x8xbf16, #tpu.memory_space<vmem>>, %arg4: memref<2x8x128xf32, #tpu.memory_space<vmem>>, %arg5: memref<128x640xbf16, #tpu.memory_space<vmem>>, %arg6: memref<1x640xf32, #tpu.memory_space<vmem>>, %arg7: memref<256x384xbf16, #tpu.memory_space<vmem>>, %arg8: memref<1x384xf32, #tpu.memory_space<vmem>>, %arg9: memref<2x8x128xf32, #tpu.memory_space<vmem>>) attributes {dimension_semantics = [#tpu.dimension_semantics<parallel>, #tpu.dimension_semantics<arbitrary>], iteration_bounds = array<i64: 1, 2>, scalar_prefetch = 0 : i64, scratch_operands = 0 : i64, tpu.core_type = #tpu.core_type<tc>, window_params = [{transform_indices = @transform_0, window_bounds = array<i64: 1, 2, 8, 8>}, {transform_indices = @transform_1, window_bounds = array<i64: 1, 2, 8, 8>}, {transform_indices = @transform_2, window_bounds = array<i64: 2, 8, 128>}, {pipeline_mode = #tpu.pipeline_mode<synchronous>, transform_indices = @transform_3, window_bounds = array<i64: 128, 640>}, {pipeline_mode = #tpu.pipeline_mode<synchronous>, transform_indices = @transform_4, window_bounds = array<i64: 1, 640>}, {pipeline_mode = #tpu.pipeline_mode<synchronous>, transform_indices = @transform_5, window_bounds = array<i64: 256, 384>}, {pipeline_mode = #tpu.pipeline_mode<synchronous>, transform_indices = @transform_6, window_bounds = array<i64: 1, 384>}, {transform_indices = @transform_7, window_bounds = array<i64: 2, 8, 128>}]} {
    %c0_i32 = arith.constant 0 : i32
    %0 = arith.cmpi eq, %arg1, %c0_i32 : i32
    %1 = arith.extui %0 : i1 to i32
    %c0_i32_0 = arith.constant 0 : i32
    %2 = arith.cmpi ne, %1, %c0_i32_0 : i32
    scf.if %2 {
      %c0_27 = arith.constant 0 : index
      %c0_28 = arith.constant 0 : index
      %c0_29 = arith.constant 0 : index
      %59 = vector.load %arg4[%c0_27, %c0_28, %c0_29] : memref<2x8x128xf32, #tpu.memory_space<vmem>>, vector<2x8x128xf32>
      %c0_30 = arith.constant 0 : index
      %c0_31 = arith.constant 0 : index
      %c0_32 = arith.constant 0 : index
      %60 = vector.load %arg9[%c0_30, %c0_31, %c0_32] : memref<2x8x128xf32, #tpu.memory_space<vmem>>, vector<2x8x128xf32>
      tpu.vector_store %arg9[%c0_30, %c0_31, %c0_32], %59 {strides = array<i32>} : memref<2x8x128xf32, #tpu.memory_space<vmem>>, vector<2x8x128xf32>,
    } else {
    }
    %c0 = arith.constant 0 : index
    %c0_1 = arith.constant 0 : index
    %c0_2 = arith.constant 0 : index
    %c0_3 = arith.constant 0 : index
    %3 = vector.load %arg2[%c0, %c0_1, %c0_2, %c0_3] : memref<1x2x8x8xbf16, #tpu.memory_space<vmem>>, vector<1x2x8x8xbf16>
    %4 = vector.shape_cast %3 : vector<1x2x8x8xbf16> to vector<2x8x8xbf16>
    %c0_4 = arith.constant 0 : index
    %c0_5 = arith.constant 0 : index
    %c0_6 = arith.constant 0 : index
    %c0_7 = arith.constant 0 : index
    %5 = vector.load %arg3[%c0_4, %c0_5, %c0_6, %c0_7] : memref<1x2x8x8xbf16, #tpu.memory_space<vmem>>, vector<1x2x8x8xbf16>
    %6 = vector.shape_cast %5 : vector<1x2x8x8xbf16> to vector<2x8x8xbf16>
    %c0_8 = arith.constant 0 : index
    %c0_9 = arith.constant 0 : index
    %c0_10 = arith.constant 0 : index
    %7 = vector.load %arg9[%c0_8, %c0_9, %c0_10] : memref<2x8x128xf32, #tpu.memory_space<vmem>>, vector<2x8x128xf32>
    %8 = vector.shape_cast %7 : vector<2x8x128xf32> to vector<16x128xf32>
    %9 = arith.truncf %8 : vector<16x128xf32> to vector<16x128xbf16>
    %c0_11 = arith.constant 0 : index
    %c0_12 = arith.constant 0 : index
    %10 = vector.load %arg5[%c0_11, %c0_12] : memref<128x640xbf16, #tpu.memory_space<vmem>>, vector<128x640xbf16>
    %cst = arith.constant dense<0.000000e+00> : vector<16x640xf32>
    %11 = tpu.matmul %9, %10, %cst {dimension_numbers = #tpu.dot_dimension_numbers<[1], [0], [0], [1], [0, 0, 1, 1], [], []>} : vector<16x128xbf16>, vector<128x640xbf16>, vector<16x640xf32> -> vector<16x640xf32>
    %c0_13 = arith.constant 0 : index
    %c0_14 = arith.constant 0 : index
    %12 = vector.load %arg6[%c0_13, %c0_14] : memref<1x640xf32, #tpu.memory_space<vmem>>, vector<1x640xf32>
    %13 = vector.broadcast %12 : vector<1x640xf32> to vector<16x640xf32>
    %14 = arith.addf %11, %13 : vector<16x640xf32>
    %15 = vector.extract_strided_slice %14 {offsets = [0, 0], sizes = [16, 128], strides = [1, 1]} : vector<16x640xf32> to vector<16x128xf32>
    %16 = vector.shape_cast %15 : vector<16x128xf32> to vector<2x8x128xf32>
    %17 = arith.truncf %16 : vector<2x8x128xf32> to vector<2x8x128xbf16>
    %18 = vector.extract_strided_slice %14 {offsets = [0, 128], sizes = [16, 128], strides = [1, 1]} : vector<16x640xf32> to vector<16x128xf32>
    %19 = vector.shape_cast %18 : vector<16x128xf32> to vector<2x8x128xf32>
    %20 = arith.truncf %19 : vector<2x8x128xf32> to vector<2x8x128xbf16>
    %21 = vector.extract_strided_slice %14 {offsets = [0, 256], sizes = [16, 384], strides = [1, 1]} : vector<16x640xf32> to vector<16x384xf32>
    "tpu.trace_start"() <{level = 10 : i32, message = "bij,bjh->bih"}> : () -> ()
    %cst_15 = arith.constant dense<0.000000e+00> : vector<2x8x128xf32>
    %22 = tpu.matmul %4, %17, %cst_15 {dimension_numbers = #tpu.dot_dimension_numbers<[2], [1], [1], [2], [0, 0, 0, 1, 1, 2], [0], [0]>} : vector<2x8x8xbf16>, vector<2x8x128xbf16>, vector<2x8x128xf32> -> vector<2x8x128xf32>
    %cst_16 = arith.constant dense<0.000000e+00> : vector<2x8x128xf32>
    %23 = tpu.matmul %6, %20, %cst_16 {dimension_numbers = #tpu.dot_dimension_numbers<[2], [1], [1], [2], [0, 0, 0, 1, 1, 2], [0], [0]>} : vector<2x8x8xbf16>, vector<2x8x128xbf16>, vector<2x8x128xf32> -> vector<2x8x128xf32>
    "tpu.trace_stop"() : () -> ()
    %24 = arith.truncf %22 : vector<2x8x128xf32> to vector<2x8x128xbf16>
    %25 = arith.truncf %23 : vector<2x8x128xf32> to vector<2x8x128xbf16>
    %26 = tpu.concatenate %24, %25 in 2 : vector<2x8x128xbf16>, vector<2x8x128xbf16> -> vector<2x8x256xbf16>
    %27 = vector.shape_cast %26 : vector<2x8x256xbf16> to vector<16x256xbf16>
    %c0_17 = arith.constant 0 : index
    %c0_18 = arith.constant 0 : index
    %28 = vector.load %arg7[%c0_17, %c0_18] : memref<256x384xbf16, #tpu.memory_space<vmem>>, vector<256x384xbf16>
    %cst_19 = arith.constant dense<0.000000e+00> : vector<16x384xf32>
    %29 = tpu.matmul %27, %28, %cst_19 {dimension_numbers = #tpu.dot_dimension_numbers<[1], [0], [0], [1], [0, 0, 1, 1], [], []>} : vector<16x256xbf16>, vector<256x384xbf16>, vector<16x384xf32> -> vector<16x384xf32>
    %c0_20 = arith.constant 0 : index
    %c0_21 = arith.constant 0 : index
    %30 = vector.load %arg8[%c0_20, %c0_21] : memref<1x384xf32, #tpu.memory_space<vmem>>, vector<1x384xf32>
    %31 = vector.broadcast %30 : vector<1x384xf32> to vector<16x384xf32>
    %32 = arith.addf %29, %31 : vector<16x384xf32>
    %33 = vector.extract_strided_slice %32 {offsets = [0, 0], sizes = [16, 128], strides = [1, 1]} : vector<16x384xf32> to vector<16x128xf32>
    %34 = vector.extract_strided_slice %32 {offsets = [0, 128], sizes = [16, 128], strides = [1, 1]} : vector<16x384xf32> to vector<16x128xf32>
    %35 = vector.extract_strided_slice %32 {offsets = [0, 256], sizes = [16, 128], strides = [1, 1]} : vector<16x384xf32> to vector<16x128xf32>
    %36 = vector.extract_strided_slice %21 {offsets = [0, 0], sizes = [16, 128], strides = [1, 1]} : vector<16x384xf32> to vector<16x128xf32>
    %37 = vector.extract_strided_slice %21 {offsets = [0, 128], sizes = [16, 128], strides = [1, 1]} : vector<16x384xf32> to vector<16x128xf32>
    %38 = vector.extract_strided_slice %21 {offsets = [0, 256], sizes = [16, 128], strides = [1, 1]} : vector<16x384xf32> to vector<16x128xf32>
    %39 = arith.addf %33, %36 : vector<16x128xf32>
    %40 = arith.negf %39 : vector<16x128xf32>
    %41 = math.exp %40 : vector<16x128xf32>
    %cst_22 = arith.constant 1.000000e+00 : f32
    %42 = vector.broadcast %cst_22 : f32 to vector<16x128xf32>
    %43 = arith.addf %42, %41 : vector<16x128xf32>
    %44 = arith.divf %42, %43 : vector<16x128xf32>
    %45 = arith.addf %34, %37 : vector<16x128xf32>
    %46 = arith.negf %45 : vector<16x128xf32>
    %47 = math.exp %46 : vector<16x128xf32>
    %cst_23 = arith.constant 1.000000e+00 : f32
    %48 = vector.broadcast %cst_23 : f32 to vector<16x128xf32>
    %49 = arith.addf %48, %47 : vector<16x128xf32>
    %50 = arith.divf %48, %49 : vector<16x128xf32>
    %51 = arith.mulf %44, %38 : vector<16x128xf32>
    %52 = arith.addf %35, %51 : vector<16x128xf32>
    %53 = math.tanh %52 : vector<16x128xf32>
    %54 = arith.subf %8, %53 : vector<16x128xf32>
    %55 = arith.mulf %50, %54 : vector<16x128xf32>
    %56 = arith.addf %53, %55 : vector<16x128xf32>
    %57 = vector.shape_cast %56 : vector<16x128xf32> to vector<2x8x128xf32>
    %c0_24 = arith.constant 0 : index
    %c0_25 = arith.constant 0 : index
    %c0_26 = arith.constant 0 : index
    %58 = vector.load %arg9[%c0_24, %c0_25, %c0_26] : memref<2x8x128xf32, #tpu.memory_space<vmem>>, vector<2x8x128xf32>
    tpu.vector_store %arg9[%c0_24, %c0_25, %c0_26], %57 {strides = array<i32>} : memref<2x8x128xf32, #tpu.memory_space<vmem>>, vector<2x8x128xf32>,
    return
  }
  func.func @transform_0(%arg0: i32, %arg1: i32) -> (i32, i32, i32, i32) {
    %c0_i32 = arith.constant 0 : i32
    %c0_i32_0 = arith.constant 0 : i32
    %c0_i32_1 = arith.constant 0 : i32
    return %arg1, %arg0, %c0_i32, %c0_i32_0 : i32, i32, i32, i32
  }
  func.func @transform_1(%arg0: i32, %arg1: i32) -> (i32, i32, i32, i32) {
    %c0_i32 = arith.constant 0 : i32
    %c0_i32_0 = arith.constant 0 : i32
    %c0_i32_1 = arith.constant 0 : i32
    return %arg1, %arg0, %c0_i32, %c0_i32_0 : i32, i32, i32, i32
  }
  func.func @transform_2(%arg0: i32, %arg1: i32) -> (i32, i32, i32) {
    %c0_i32 = arith.constant 0 : i32
    %c0_i32_0 = arith.constant 0 : i32
    %c0_i32_1 = arith.constant 0 : i32
    return %arg0, %c0_i32, %c0_i32_0 : i32, i32, i32
  }
  func.func @transform_3(%arg0: i32, %arg1: i32) -> (i32, i32) {
    %c0_i32 = arith.constant 0 : i32
    %c0_i32_0 = arith.constant 0 : i32
    %c0_i32_1 = arith.constant 0 : i32
    return %c0_i32, %c0_i32_0 : i32, i32
  }
  func.func @transform_4(%arg0: i32, %arg1: i32) -> (i32, i32) {
    %c0_i32 = arith.constant 0 : i32
    %c0_i32_0 = arith.constant 0 : i32
    %c0_i32_1 = arith.constant 0 : i32
    return %c0_i32, %c0_i32_0 : i32, i32
  }
  func.func @transform_5(%arg0: i32, %arg1: i32) -> (i32, i32) {
    %c0_i32 = arith.constant 0 : i32
    %c0_i32_0 = arith.constant 0 : i32
    %c0_i32_1 = arith.constant 0 : i32
    return %c0_i32, %c0_i32_0 : i32, i32
  }
  func.func @transform_6(%arg0: i32, %arg1: i32) -> (i32, i32) {
    %c0_i32 = arith.constant 0 : i32
    %c0_i32_0 = arith.constant 0 : i32
    %c0_i32_1 = arith.constant 0 : i32
    return %c0_i32, %c0_i32_0 : i32, i32
  }
  func.func @transform_7(%arg0: i32, %arg1: i32) -> (i32, i32, i32) {
    %c0_i32 = arith.constant 0 : i32
    %c0_i32_0 = arith.constant 0 : i32
    %c0_i32_1 = arith.constant 0 : i32
    return %arg0, %c0_i32, %c0_i32_0 : i32, i32, i32
  }
}

</mosaic_0001>

<llo_original>
// kernel: tpu_custom_call.1
$region0: #{tpu_custom_call.1}
  #allocation0 [shape = 'u32[]', space=smem, size = 0x4, offset = 0x4, fixed_abs, tag = 'smem constant byte address 0x4 - core index']
  #allocation1 [shape = 'u32[144,128]{1,0:T(1,128)}', space=vmem, size = 0x12000, scoped, tag = 'internal scratch']
  %s0 = inlined_call_operand.hbm [shape: bf16[2,2,8,8], index: 0, kind: input, shape index: {}]
  %s1 = inlined_call_operand.hbm [shape: bf16[2,2,8,8], index: 1, kind: input, shape index: {}]
  %s2 = inlined_call_operand.hbm [shape: f32[2,8,128], index: 2, kind: input, shape index: {}]
  %s3 = inlined_call_operand.hbm [shape: bf16[128,640], index: 3, kind: input, shape index: {}]
  %s4 = inlined_call_operand.vmem [shape: f32[1,640], index: 4, kind: input, shape index: {}]
  %s5 = inlined_call_operand.hbm [shape: bf16[256,384], index: 5, kind: input, shape index: {}]
  %s6 = inlined_call_operand.vmem [shape: f32[1,384], index: 6, kind: input, shape index: {}]
  %s7 = inlined_call_operand.hbm [shape: f32[2,8,128], index: 7, kind: output, shape index: {}]
  %s8 = sld [smem:[#allocation0]]
  $region85: #{tpu_custom_call.1} parent=0
    _
  %s10 = ssub.s32 1, %s8
  %s11 = scalar_select 0, %s10, %s8
  $region1: #{tpu_custom_call.1} parent=0
    #allocation2 [shape = 'u8[8192]{0}', space=vmem, size = 0x2000, scoped, tag = 'input window, operand 0']
    #allocation3 [shape = 's32[2]{0}', space=sflag, size = 0x8, scoped, tag = 'scoped memory for tpu_custom_call.1']
    #allocation4 [shape = 's32[2]{0}', space=sflag, size = 0x8, scoped, tag = 'scoped memory for tpu_custom_call.1']
    #allocation5 [shape = 'u8[8192]{0}', space=vmem, size = 0x2000, scoped, tag = 'input window, operand 1']
    #allocation6 [shape = 's32[2]{0}', space=sflag, size = 0x8, scoped, tag = 'scoped memory for tpu_custom_call.1']
    #allocation7 [shape = 'u8[8192]{0}', space=vmem, size = 0x2000, scoped, tag = 'input window, operand 2, single buffered']
    #allocation8 [shape = 'u8[163840]{0}', space=vmem, size = 0x28000, scoped, tag = 'input window, operand 3, single buffered']
    #allocation9 [shape = 's32[1]{0}', space=sflag, size = 0x4, scoped, tag = 'scoped memory for tpu_custom_call.1']
    #allocation10 [shape = 'u8[196608]{0}', space=vmem, size = 0x30000, scoped, tag = 'input window, operand 5, single buffered']
    #allocation11 [shape = 'u8[8192]{0}', space=vmem, size = 0x2000, scoped, tag = 'output window, operand 0, single buffered']
    %12 = vsyncpa [#allocation3], 0
    %s13 = scalar_lea.sflag [#allocation3], 1
    %14 = vsyncpa %s13, 0
    %15 = vsyncpa [#allocation6], 0
    %s16 = scalar_lea.sflag [#allocation6], 1
    %17 = vsyncpa %s16, 0
    %18 = vsyncpa [#allocation9], 0
    %19 = vsyncpa [#allocation4], 0
    loop: start=0, step=1, limit=4
    $region2: #{tpu_custom_call.1} parent=1 // loop_pre_header
      _
    $region3: #{tpu_custom_call.1} parent=1 // loop_header
      %s21 = sphi 0, %s25
      %p22 = scmp.ge.s32.totalorder %s21, 4
      %s28 = sphi 0, %s40
      %s29 = sphi 0, %s36
      %s30 = sphi 0, %s28
      %s31 = sphi 0, %s29
      %s32 = sphi 0, %s30
      %s33 = sphi 0, %s31
      %s45 = sphi 0, %s47
      %s48 = sphi 0, %s45
      %s49 = sphi 0, %s48
      %s65 = sphi 0, %s49
      %s73 = sphi 0, %s75
      %s76 = sphi 0, %s73
      %s77 = sphi 0, %s76
      %s93 = sphi 0, %s77
      %s99 = sphi 0, %s101
      %s102 = sphi 0, %s99
      %s103 = sphi 0, %s102
      %s119 = sphi 0, %s103
      %s123 = sphi 0, %s123
      %s125 = sphi 0, %s123
      %s126 = sphi 0, %s125
      %s140 = sphi 0, %s126
      %s144 = sphi 0, %s144
      %s146 = sphi 0, %s144
      %s147 = sphi 0, %s146
      %s161 = sphi 0, %s147
      %s165 = sphi 0, %s165
      %s167 = sphi 0, %s165
      %s168 = sphi 0, %s167
      %s182 = sphi 0, %s168
      %s186 = sphi 0, %s186
      %s188 = sphi 0, %s186
      %s189 = sphi 0, %s188
      %s203 = sphi 0, %s189
      %s209 = sphi 0, %s211
      %s212 = sphi 0, %s209
      %s213 = sphi 0, %s212
      %s229 = sphi 0, %s213
    $region4: #{tpu_custom_call.1} parent=1 // loop_header_branch
      %24 = sbr.rel (%p22) target = $region8
    $region5: #{tpu_custom_call.1} parent=1 // loop_body
      %s26 = ssub.s32 %s21, 1
      %s27 = ssub.s32 %s21, 2
      %s34 = sadd.s32 1, %s29
      %p35 = scmp.ge.s32.totalorder %s34, 2
      %s36 = scalar_select %p35, 0, %s34
      %s37 = sadd.s32 1, %s28
      %s38 = scalar_select %p35, %s37, %s28
      %p39 = scmp.ge.s32.totalorder %s38, 1
      %s40 = scalar_select %p39, 0, %s38
      %s41 = ssub.s32 %s29, %s36
      %s42 = ssub.s32 %s28, %s40
      %s43 = sor.u32 %s41, %s42
      %p44 = scmp.eq.s32.totalorder %s43, 0
      %s46 = sadd.s32 %s45, 1
      %s47 = scalar_select %p44, %s45, %s46
      %p50 = pneg %p44
      %p51 = scmp.eq.s32.totalorder %s21, 1
      %p52 = por %p50, %p51
      %p53 = scmp.ne.s32.totalorder %s45, %s48
      %p54 = scmp.eq.s32.totalorder %s21, 0
      %p55 = por %p53, %p54
      %p56 = scmp.ne.s32.totalorder %s45, %s48
      %p57 = scmp.eq.s32.totalorder %s26, 1
      %p58 = por %p56, %p57
      %p59 = scmp.ne.s32.totalorder %s48, %s49
      %p60 = scmp.eq.s32.totalorder %s26, 0
      %p61 = por %p59, %p60
      %p62 = scmp.ne.s32.totalorder %s48, %s49
      %p63 = scmp.eq.s32.totalorder %s27, 1
      %p64 = por %p62, %p63
      %p66 = scmp.ne.s32.totalorder %s49, %s65
      %p67 = scmp.eq.s32.totalorder %s27, 0
      %p68 = por %p66, %p67
      %s69 = ssub.s32 %s29, %s36
      %s70 = ssub.s32 %s28, %s40
      %s71 = sor.u32 %s69, %s70
      %p72 = scmp.eq.s32.totalorder %s71, 0
      %s74 = sadd.s32 %s73, 1
      %s75 = scalar_select %p72, %s73, %s74
      %p78 = pneg %p72
      %p79 = scmp.eq.s32.totalorder %s21, 1
      %p80 = por %p78, %p79
      %p81 = scmp.ne.s32.totalorder %s73, %s76
      %p82 = scmp.eq.s32.totalorder %s21, 0
      %p83 = por %p81, %p82
      %p84 = scmp.ne.s32.totalorder %s73, %s76
      %p85 = scmp.eq.s32.totalorder %s26, 1
      %p86 = por %p84, %p85
      %p87 = scmp.ne.s32.totalorder %s76, %s77
      %p88 = scmp.eq.s32.totalorder %s26, 0
      %p89 = por %p87, %p88
      %p90 = scmp.ne.s32.totalorder %s76, %s77
      %p91 = scmp.eq.s32.totalorder %s27, 1
      %p92 = por %p90, %p91
      %p94 = scmp.ne.s32.totalorder %s77, %s93
      %p95 = scmp.eq.s32.totalorder %s27, 0
      %p96 = por %p94, %p95
      %s97 = ssub.s32 %s28, %s40
      %p98 = scmp.eq.s32.totalorder %s97, 0
      %s100 = sadd.s32 %s99, 1
      %s101 = scalar_select %p98, %s99, %s100
      %p104 = pneg %p98
      %p105 = scmp.eq.s32.totalorder %s21, 1
      %p106 = por %p104, %p105
      %p107 = scmp.ne.s32.totalorder %s99, %s102
      %p108 = scmp.eq.s32.totalorder %s21, 0
      %p109 = por %p107, %p108
      %p110 = scmp.ne.s32.totalorder %s99, %s102
      %p111 = scmp.eq.s32.totalorder %s26, 1
      %p112 = por %p110, %p111
      %p113 = scmp.ne.s32.totalorder %s102, %s103
      %p114 = scmp.eq.s32.totalorder %s26, 0
      %p115 = por %p113, %p114
      %p116 = scmp.ne.s32.totalorder %s102, %s103
      %p117 = scmp.eq.s32.totalorder %s27, 1
      %p118 = por %p116, %p117
      %p120 = scmp.ne.s32.totalorder %s103, %s119
      %p121 = scmp.eq.s32.totalorder %s27, 0
      %p122 = por %p120, %p121
      %s124 = sadd.s32 %s123, 1
      %p127 = scmp.eq.s32.totalorder %s21, 1
      %p128 = scmp.ne.s32.totalorder %s123, %s125
      %p129 = scmp.eq.s32.totalorder %s21, 0
      %p130 = por %p128, %p129
      %p131 = scmp.ne.s32.totalorder %s123, %s125
      %p132 = scmp.eq.s32.totalorder %s26, 1
      %p133 = por %p131, %p132
      %p134 = scmp.ne.s32.totalorder %s125, %s126
      %p135 = scmp.eq.s32.totalorder %s26, 0
      %p136 = por %p134, %p135
      %p137 = scmp.ne.s32.totalorder %s125, %s126
      %p138 = scmp.eq.s32.totalorder %s27, 1
      %p139 = por %p137, %p138
      %p141 = scmp.ne.s32.totalorder %s126, %s140
      %p142 = scmp.eq.s32.totalorder %s27, 0
      %p143 = por %p141, %p142
      %s145 = sadd.s32 %s144, 1
      %p148 = scmp.eq.s32.totalorder %s21, 1
      %p149 = scmp.ne.s32.totalorder %s144, %s146
      %p150 = scmp.eq.s32.totalorder %s21, 0
      %p151 = por %p149, %p150
      %p152 = scmp.ne.s32.totalorder %s144, %s146
      %p153 = scmp.eq.s32.totalorder %s26, 1
      %p154 = por %p152, %p153
      %p155 = scmp.ne.s32.totalorder %s146, %s147
      %p156 = scmp.eq.s32.totalorder %s26, 0
      %p157 = por %p155, %p156
      %p158 = scmp.ne.s32.totalorder %s146, %s147
      %p159 = scmp.eq.s32.totalorder %s27, 1
      %p160 = por %p158, %p159
      %p162 = scmp.ne.s32.totalorder %s147, %s161
      %p163 = scmp.eq.s32.totalorder %s27, 0
      %p164 = por %p162, %p163
      %s166 = sadd.s32 %s165, 1
      %p169 = scmp.eq.s32.totalorder %s21, 1
      %p170 = scmp.ne.s32.totalorder %s165, %s167
      %p171 = scmp.eq.s32.totalorder %s21, 0
      %p172 = por %p170, %p171
      %p173 = scmp.ne.s32.totalorder %s165, %s167
      %p174 = scmp.eq.s32.totalorder %s26, 1
      %p175 = por %p173, %p174
      %p176 = scmp.ne.s32.totalorder %s167, %s168
      %p177 = scmp.eq.s32.totalorder %s26, 0
      %p178 = por %p176, %p177
      %p179 = scmp.ne.s32.totalorder %s167, %s168
      %p180 = scmp.eq.s32.totalorder %s27, 1
      %p181 = por %p179, %p180
      %p183 = scmp.ne.s32.totalorder %s168, %s182
      %p184 = scmp.eq.s32.totalorder %s27, 0
      %p185 = por %p183, %p184
      %s187 = sadd.s32 %s186, 1
      %p190 = scmp.eq.s32.totalorder %s21, 1
      %p191 = scmp.ne.s32.totalorder %s186, %s188
      %p192 = scmp.eq.s32.totalorder %s21, 0
      %p193 = por %p191, %p192
      %p194 = scmp.ne.s32.totalorder %s186, %s188
      %p195 = scmp.eq.s32.totalorder %s26, 1
      %p196 = por %p194, %p195
      %p197 = scmp.ne.s32.totalorder %s188, %s189
      %p198 = scmp.eq.s32.totalorder %s26, 0
      %p199 = por %p197, %p198
      %p200 = scmp.ne.s32.totalorder %s188, %s189
      %p201 = scmp.eq.s32.totalorder %s27, 1
      %p202 = por %p200, %p201
      %p204 = scmp.ne.s32.totalorder %s189, %s203
      %p205 = scmp.eq.s32.totalorder %s27, 0
      %p206 = por %p204, %p205
      %s207 = ssub.s32 %s28, %s40
      %p208 = scmp.eq.s32.totalorder %s207, 0
      %s210 = sadd.s32 %s209, 1
      %s211 = scalar_select %p208, %s209, %s210
      %p214 = pneg %p208
      %p215 = scmp.eq.s32.totalorder %s21, 1
      %p216 = por %p214, %p215
      %p217 = scmp.ne.s32.totalorder %s209, %s212
      %p218 = scmp.eq.s32.totalorder %s21, 0
      %p219 = por %p217, %p218
      %p220 = scmp.ne.s32.totalorder %s209, %s212
      %p221 = scmp.eq.s32.totalorder %s26, 1
      %p222 = por %p220, %p221
      %p223 = scmp.ne.s32.totalorder %s212, %s213
      %p224 = scmp.eq.s32.totalorder %s26, 0
      %p225 = por %p223, %p224
      %p226 = scmp.ne.s32.totalorder %s212, %s213
      %p227 = scmp.eq.s32.totalorder %s27, 1
      %p228 = por %p226, %p227
      %p230 = scmp.ne.s32.totalorder %s213, %s229
      %p231 = scmp.eq.s32.totalorder %s27, 0
      %p232 = por %p230, %p231
      %p233 = scmp.le.s32.totalorder 1, %s21
      %p234 = scmp.lt.s32.totalorder %s21, 3
      %p235 = pnand %p233, %p234
      %p236 = pneg %p235
      // Predicated region
      $region9: #{tpu_custom_call.1} parent=5 // pred_check
        _
      $region10: #{tpu_custom_call.1} parent=5 // pred_check_branch
        %238 = sbr.rel (%p235) target = $region12
      $region11: #{tpu_custom_call.1} parent=5 // pred_region
        %s239 = ssub.s32 %s21, 1
        // Predicated region
        $region13: #{tpu_custom_call.1} parent=11 // pred_check
          %p240 = pneg %p115
        $region14: #{tpu_custom_call.1} parent=11 // pred_check_branch
          %242 = sbr.rel (%p240) target = $region16
        $region15: #{tpu_custom_call.1} parent=11 // pred_region
          %s243 = smul.u32 2, %s30
          %s245 = ssub.s32 256, 256
          %246 = vsyncadd [#allocation6], %s245
          %s247 = smul.addr %s243, 128
          %s248 = scalar_lea.hbm %s2, %s247
          %s249 = sshll.u32 [#allocation7], 4
          %s250 = int_to_ptr.vmem [resolvable:$true] %s249
          %255 = dma.hbm_to_vmem [thread:$0]  %s248, 256, %s250, [#allocation6], 128, 128, 8
        $region16: #{tpu_custom_call.1} parent=11 // pred_fallthru
          _
        // Predicated region
        $region17: #{tpu_custom_call.1} parent=11 // pred_check
          %p256 = pneg %p136
        $region18: #{tpu_custom_call.1} parent=11 // pred_check_branch
          %258 = sbr.rel (%p256) target = $region20
        $region19: #{tpu_custom_call.1} parent=11 // pred_region
          %s260 = ssub.s32 5120, 5120
          %261 = vsyncadd [#allocation9], %s260
          %s262 = sshll.u32 [#allocation8], 4
          %s263 = int_to_ptr.vmem [resolvable:$true] %s262
          %268 = dma.hbm_to_vmem [thread:$0]  %s3, 5120, %s263, [#allocation9], 320, 320, 20
        $region20: #{tpu_custom_call.1} parent=11 // pred_fallthru
          _
        // Predicated region
        $region21: #{tpu_custom_call.1} parent=11 // pred_check
          %p269 = pneg %p157
        $region22: #{tpu_custom_call.1} parent=11 // pred_check_branch
          %271 = sbr.rel (%p269) target = $region24
        $region23: #{tpu_custom_call.1} parent=11 // pred_region
          _
        $region24: #{tpu_custom_call.1} parent=11 // pred_fallthru
          _
        // Predicated region
        $region25: #{tpu_custom_call.1} parent=11 // pred_check
          %p272 = pneg %p178
        $region26: #{tpu_custom_call.1} parent=11 // pred_check_branch
          %274 = sbr.rel (%p272) target = $region28
        $region27: #{tpu_custom_call.1} parent=11 // pred_region
          %s276 = ssub.s32 6144, 6144
          %277 = vsyncadd [#allocation9], %s276
          %s278 = sshll.u32 [#allocation10], 4
          %s279 = int_to_ptr.vmem [resolvable:$true] %s278
          %284 = dma.hbm_to_vmem [thread:$0]  %s5, 6144, %s279, [#allocation9], 192, 192, 12
        $region28: #{tpu_custom_call.1} parent=11 // pred_fallthru
          _
        // Predicated region
        $region29: #{tpu_custom_call.1} parent=11 // pred_check
          %p285 = pneg %p199
        $region30: #{tpu_custom_call.1} parent=11 // pred_check_branch
          %287 = sbr.rel (%p285) target = $region32
        $region31: #{tpu_custom_call.1} parent=11 // pred_region
          _
        $region32: #{tpu_custom_call.1} parent=11 // pred_fallthru
          _
      $region12: #{tpu_custom_call.1} parent=5 // pred_fallthru
        _
      %p288 = scmp.lt.s32.totalorder %s21, 2
      // Predicated region
      $region33: #{tpu_custom_call.1} parent=5 // pred_check
        %p289 = pneg %p288
      $region34: #{tpu_custom_call.1} parent=5 // pred_check_branch
        %291 = sbr.rel (%p289) target = $region36
      $region35: #{tpu_custom_call.1} parent=5 // pred_region
        // Predicated region
        $region37: #{tpu_custom_call.1} parent=35 // pred_check
          %p292 = pneg %p55
        $region38: #{tpu_custom_call.1} parent=35 // pred_check_branch
          %294 = sbr.rel (%p292) target = $region40
        $region39: #{tpu_custom_call.1} parent=35 // pred_region
          %s295 = sand.u32 %s45, 1
          %s296 = scalar_lea.sflag [#allocation3], %s295
          %s297 = sand.u32 %s45, 1
          %s298 = smul.addr %s297, 8
          %s299 = scalar_lea.vmem [#allocation2], %s298
          %s300 = smul.u32 2, %s28
          %s302 = ssub.s32 128, 128
          %303 = vsyncadd %s296, %s302
          %s304 = smul.addr %s29, 2
          %s305 = sadd.s32 %s300, %s304
          %s306 = smul.addr %s305, 64
          %s307 = scalar_lea.hbm %s0, %s306
          %s308 = sshll.u32 %s299, 4
          %s309 = int_to_ptr.vmem [resolvable:$true] %s308
          %314 = dma.hbm_to_vmem [thread:$0]  %s307, 128, %s309, %s296, 64, 64, 4
        $region40: #{tpu_custom_call.1} parent=35 // pred_fallthru
          _
        // Predicated region
        $region41: #{tpu_custom_call.1} parent=35 // pred_check
          %p315 = pneg %p83
        $region42: #{tpu_custom_call.1} parent=35 // pred_check_branch
          %317 = sbr.rel (%p315) target = $region44
        $region43: #{tpu_custom_call.1} parent=35 // pred_region
          %s318 = sand.u32 %s21, 1
          %s319 = scalar_lea.sflag [#allocation6], %s318
          %s320 = sand.u32 %s73, 1
          %s321 = smul.addr %s320, 8
          %s322 = scalar_lea.vmem [#allocation5], %s321
          %s323 = smul.u32 2, %s28
          %s325 = ssub.s32 128, 128
          %326 = vsyncadd %s319, %s325
          %s327 = smul.addr %s29, 2
          %s328 = sadd.s32 %s323, %s327
          %s329 = smul.addr %s328, 64
          %s330 = scalar_lea.hbm %s1, %s329
          %s331 = sshll.u32 %s322, 4
          %s332 = int_to_ptr.vmem [resolvable:$true] %s331
          %337 = dma.hbm_to_vmem [thread:$0]  %s330, 128, %s332, %s319, 64, 64, 4
        $region44: #{tpu_custom_call.1} parent=35 // pred_fallthru
          _
      $region36: #{tpu_custom_call.1} parent=5 // pred_fallthru
        _
      %p338 = scmp.le.s32.totalorder 1, %s21
      %p339 = scmp.lt.s32.totalorder %s21, 3
      %p340 = pnand %p338, %p339
      %p341 = pneg %p340
      // Predicated region
      $region45: #{tpu_custom_call.1} parent=5 // pred_check
        _
      $region46: #{tpu_custom_call.1} parent=5 // pred_check_branch
        %343 = sbr.rel (%p340) target = $region48
      $region47: #{tpu_custom_call.1} parent=5 // pred_region
        %s344 = ssub.s32 %s21, 1
        %s345 = sand.u32 %s48, 1
        %s346 = scalar_lea.sflag [#allocation3], %s345
        %s347 = sand.u32 %s48, 1
        %s348 = smul.addr %s347, 8
        %s349 = scalar_lea.vmem [#allocation2], %s348
        // Predicated region
        $region49: #{tpu_custom_call.1} parent=47 // pred_check
          %p350 = pneg %p61
        $region50: #{tpu_custom_call.1} parent=47 // pred_check_branch
          %352 = sbr.rel (%p350) target = $region52
        $region51: #{tpu_custom_call.1} parent=47 // pred_region
          %353 = dma.done %s346, 128
        $region52: #{tpu_custom_call.1} parent=47 // pred_fallthru
          _
        %s354 = sand.u32 %s26, 1
        %s355 = scalar_lea.sflag [#allocation6], %s354
        %s356 = sand.u32 %s76, 1
        %s357 = smul.addr %s356, 8
        %s358 = scalar_lea.vmem [#allocation5], %s357
        // Predicated region
        $region53: #{tpu_custom_call.1} parent=47 // pred_check
          %p359 = pneg %p89
        $region54: #{tpu_custom_call.1} parent=47 // pred_check_branch
          %361 = sbr.rel (%p359) target = $region56
        $region55: #{tpu_custom_call.1} parent=47 // pred_region
          %362 = dma.done %s355, 128
        $region56: #{tpu_custom_call.1} parent=47 // pred_fallthru
          _
        // Predicated region
        $region57: #{tpu_custom_call.1} parent=47 // pred_check
          %p363 = pneg %p115
        $region58: #{tpu_custom_call.1} parent=47 // pred_check_branch
          %365 = sbr.rel (%p363) target = $region60
        $region59: #{tpu_custom_call.1} parent=47 // pred_region
          %366 = dma.done [#allocation6], 256
        $region60: #{tpu_custom_call.1} parent=47 // pred_fallthru
          _
        // Predicated region
        $region61: #{tpu_custom_call.1} parent=47 // pred_check
          %p367 = pneg %p136
        $region62: #{tpu_custom_call.1} parent=47 // pred_check_branch
          %369 = sbr.rel (%p367) target = $region64
        $region63: #{tpu_custom_call.1} parent=47 // pred_region
          %370 = dma.done [#allocation9], 5120
        $region64: #{tpu_custom_call.1} parent=47 // pred_fallthru
          _
        // Predicated region
        $region65: #{tpu_custom_call.1} parent=47 // pred_check
          %p371 = pneg %p178
        $region66: #{tpu_custom_call.1} parent=47 // pred_check_branch
          %373 = sbr.rel (%p371) target = $region68
        $region67: #{tpu_custom_call.1} parent=47 // pred_region
          %374 = dma.done [#allocation9], 6144
        $region68: #{tpu_custom_call.1} parent=47 // pred_fallthru
          _
        %s375 = sand.u32 %s48, 1
        %s376 = scalar_lea.sflag [#allocation3], %s375
        %s377 = sand.u32 %s48, 1
        %s378 = smul.addr %s377, 8
        %s379 = scalar_lea.vmem [#allocation2], %s378
        %p380 = pneg %p61
        %p381 = pneg %p58
        %s382 = sand.u32 %s26, 1
        %s383 = scalar_lea.sflag [#allocation6], %s382
        %s384 = sand.u32 %s76, 1
        %s385 = smul.addr %s384, 8
        %s386 = scalar_lea.vmem [#allocation5], %s385
        %p387 = pneg %p89
        %p388 = pneg %p86
        %p389 = pneg %p115
        %p390 = pneg %p112
        %p391 = pneg %p136
        %p392 = pneg %p133
        %p393 = pneg %p157
        %p394 = pneg %p154
        %p395 = pneg %p178
        %p396 = pneg %p175
        %p397 = pneg %p199
        %p398 = pneg %p196
        %p399 = pneg %p225
        %p400 = pneg %p222
        %s401 = smul.u32 2, %s30
        %s402 = smul.u32 2, %s30
        %s403 = smul.u32 2, %s30
        %s404 = smul.u32 2, %s30
        %p406 = scmp.eq.s32.totalorder %s31, 0
        // Predicated region
        $region69: #{tpu_custom_call.1} parent=47 // pred_check
          %p407 = pneg %p406
        $region70: #{tpu_custom_call.1} parent=47 // pred_check_branch
          %409 = sbr.rel (%p407) target = $region72
        $region71: #{tpu_custom_call.1} parent=47 // pred_region
          %v410 = vld [vmem:[#allocation7] sm:$0xff]
          %v411 = vld [vmem:[#allocation7 + $0x8] sm:$0xff]
          %412 = vst [vmem:[#allocation11] sm:$0xff] %v410
          %413 = vst [vmem:[#allocation11 + $0x8] sm:$0xff] %v411
        $region72: #{tpu_custom_call.1} parent=47 // pred_fallthru
          _
        %v414 = vld [vmem:[%s349] sm:$0xf]
        %v415 = vld [vmem:[%s349 + $0x4] sm:$0xf]
        %v416 = vld [vmem:[%s358] sm:$0xf]
        %v417 = vld [vmem:[%s358 + $0x4] sm:$0xf]
        %v418 = vld [vmem:[#allocation11] sm:$0xff]
        %v419 = vld [vmem:[#allocation11 + $0x8] sm:$0xff]
        %v420 = vpack.c.bf16 %v419, %v418
        %v421 = vld [vmem:[#allocation8] sm:$0xff]
        %v422 = vld [vmem:[#allocation8 + $0x8] sm:$0xff]
        %v423 = vld [vmem:[#allocation8 + $0x10] sm:$0xf]
        %v424 = vld [vmem:[#allocation8 + $0x14] sm:$0xff]
        %v425 = vld [vmem:[#allocation8 + $0x1c] sm:$0xff]
        %v426 = vld [vmem:[#allocation8 + $0x24] sm:$0xf]
        %v427 = vld [vmem:[#allocation8 + $0x28] sm:$0xff]
        %v428 = vld [vmem:[#allocation8 + $0x30] sm:$0xff]
        %v429 = vld [vmem:[#allocation8 + $0x38] sm:$0xf]
        %v430 = vld [vmem:[#allocation8 + $0x3c] sm:$0xff]
        %v431 = vld [vmem:[#allocation8 + $0x44] sm:$0xff]
        %v432 = vld [vmem:[#allocation8 + $0x4c] sm:$0xf]
        %v433 = vld [vmem:[#allocation8 + $0x50] sm:$0xff]
        %v434 = vld [vmem:[#allocation8 + $0x58] sm:$0xff]
        %v435 = vld [vmem:[#allocation8 + $0x60] sm:$0xf]
        %v436 = vld [vmem:[#allocation8 + $0x64] sm:$0xff]
        %v437 = vld [vmem:[#allocation8 + $0x6c] sm:$0xff]
        %v438 = vld [vmem:[#allocation8 + $0x74] sm:$0xf]
        %v439 = vld [vmem:[#allocation8 + $0x78] sm:$0xff]
        %v440 = vld [vmem:[#allocation8 + $0x80] sm:$0xff]
        %v441 = vld [vmem:[#allocation8 + $0x88] sm:$0xf]
        %v442 = vld [vmem:[#allocation8 + $0x8c] sm:$0xff]
        %v443 = vld [vmem:[#allocation8 + $0x94] sm:$0xff]
        %v444 = vld [vmem:[#allocation8 + $0x9c] sm:$0xf]
        %v445 = vld [vmem:[#allocation8 + $0xa0] sm:$0xff]
        %v446 = vld [vmem:[#allocation8 + $0xa8] sm:$0xff]
        %v447 = vld [vmem:[#allocation8 + $0xb0] sm:$0xf]
        %v448 = vld [vmem:[#allocation8 + $0xb4] sm:$0xff]
        %v449 = vld [vmem:[#allocation8 + $0xbc] sm:$0xff]
        %v450 = vld [vmem:[#allocation8 + $0xc4] sm:$0xf]
        %v451 = vld [vmem:[#allocation8 + $0xc8] sm:$0xff]
        %v452 = vld [vmem:[#allocation8 + $0xd0] sm:$0xff]
        %v453 = vld [vmem:[#allocation8 + $0xd8] sm:$0xf]
        %v454 = vld [vmem:[#allocation8 + $0xdc] sm:$0xff]
        %v455 = vld [vmem:[#allocation8 + $0xe4] sm:$0xff]
        %v456 = vld [vmem:[#allocation8 + $0xec] sm:$0xf]
        %v457 = vld [vmem:[#allocation8 + $0xf0] sm:$0xff]
        %v458 = vld [vmem:[#allocation8 + $0xf8] sm:$0xff]
        %v459 = vld [vmem:[#allocation8 + $0x100] sm:$0xf]
        %v460 = vld [vmem:[#allocation8 + $0x104] sm:$0xff]
        %v461 = vld [vmem:[#allocation8 + $0x10c] sm:$0xff]
        %v462 = vld [vmem:[#allocation8 + $0x114] sm:$0xf]
        %v463 = vld [vmem:[#allocation8 + $0x118] sm:$0xff]
        %v464 = vld [vmem:[#allocation8 + $0x120] sm:$0xff]
        %v465 = vld [vmem:[#allocation8 + $0x128] sm:$0xf]
        %v466 = vld [vmem:[#allocation8 + $0x12c] sm:$0xff]
        %v467 = vld [vmem:[#allocation8 + $0x134] sm:$0xff]
        %v468 = vld [vmem:[#allocation8 + $0x13c] sm:$0xf]
        %v469 = vld [vmem:[%s4] sm:$0x1f]
        %v471 = vlaneseq
        %v472 = vshrl.u32 %v471, 7
        %v473 = vsub.s32 0, %v472
        %v474 = vrot.slane %v469, %v473
        %v475 = vlaneseq
        %v476 = vshrl.u32 %v475, 7
        %v477 = vsub.s32 1, %v476
        %v478 = vrot.slane %v469, %v477
        %v479 = vlaneseq
        %v480 = vshrl.u32 %v479, 7
        %v481 = vsub.s32 2, %v480
        %v482 = vrot.slane %v469, %v481
        %v483 = vlaneseq
        %v484 = vshrl.u32 %v483, 7
        %v485 = vsub.s32 3, %v484
        %v486 = vrot.slane %v469, %v485
        %v487 = vlaneseq
        %v488 = vshrl.u32 %v487, 7
        %v489 = vsub.s32 4, %v488
        %v490 = vrot.slane %v469, %v489
        %v544 = vunpack.c.l.b16 %v421
        %v545 = vunpack.c.h.b16 %v421
        %v546 = vunpack.c.l.b16 %v422
        %v547 = vunpack.c.h.b16 %v422
        %v548 = vunpack.c.l.b16 %v423
        %v549 = vunpack.c.l.b16 %v424
        %v550 = vunpack.c.h.b16 %v424
        %v551 = vunpack.c.l.b16 %v425
        %v552 = vunpack.c.h.b16 %v425
        %v553 = vunpack.c.l.b16 %v426
        %v554 = vunpack.c.l.b16 %v427
        %v555 = vunpack.c.h.b16 %v427
        %v556 = vunpack.c.l.b16 %v428
        %v557 = vunpack.c.h.b16 %v428
        %v558 = vunpack.c.l.b16 %v429
        %v559 = vunpack.c.l.b16 %v430
        %v560 = vunpack.c.h.b16 %v430
        %v561 = vunpack.c.l.b16 %v431
        %v562 = vunpack.c.h.b16 %v431
        %v563 = vunpack.c.l.b16 %v432
        %v564 = vunpack.c.l.b16 %v433
        %v565 = vunpack.c.h.b16 %v433
        %v566 = vunpack.c.l.b16 %v434
        %v567 = vunpack.c.h.b16 %v434
        %v568 = vunpack.c.l.b16 %v435
        %v569 = vunpack.c.l.b16 %v436
        %v570 = vunpack.c.h.b16 %v436
        %v571 = vunpack.c.l.b16 %v437
        %v572 = vunpack.c.h.b16 %v437
        %v573 = vunpack.c.l.b16 %v438
        %v574 = vunpack.c.l.b16 %v439
        %v575 = vunpack.c.h.b16 %v439
        %v576 = vunpack.c.l.b16 %v440
        %v577 = vunpack.c.h.b16 %v440
        %v578 = vunpack.c.l.b16 %v441
        %v579 = vunpack.c.l.b16 %v442
        %v580 = vunpack.c.h.b16 %v442
        %v581 = vunpack.c.l.b16 %v443
        %v582 = vunpack.c.h.b16 %v443
        %v583 = vunpack.c.l.b16 %v444
        %v584 = vunpack.c.l.b16 %v445
        %v585 = vunpack.c.h.b16 %v445
        %v586 = vunpack.c.l.b16 %v446
        %v587 = vunpack.c.h.b16 %v446
        %v588 = vunpack.c.l.b16 %v447
        %v589 = vunpack.c.l.b16 %v448
        %v590 = vunpack.c.h.b16 %v448
        %v591 = vunpack.c.l.b16 %v449
        %v592 = vunpack.c.h.b16 %v449
        %v593 = vunpack.c.l.b16 %v450
        %v594 = vunpack.c.l.b16 %v451
        %v595 = vunpack.c.h.b16 %v451
        %v596 = vunpack.c.l.b16 %v452
        %v597 = vunpack.c.h.b16 %v452
        %v598 = vunpack.c.l.b16 %v453
        %v599 = vunpack.c.l.b16 %v454
        %v600 = vunpack.c.h.b16 %v454
        %v601 = vunpack.c.l.b16 %v455
        %v602 = vunpack.c.h.b16 %v455
        %v603 = vunpack.c.l.b16 %v456
        %v604 = vunpack.c.l.b16 %v457
        %v605 = vunpack.c.h.b16 %v457
        %v606 = vunpack.c.l.b16 %v458
        %v607 = vunpack.c.h.b16 %v458
        %v608 = vunpack.c.l.b16 %v459
        %v609 = vunpack.c.l.b16 %v460
        %v610 = vunpack.c.h.b16 %v460
        %v611 = vunpack.c.l.b16 %v461
        %v612 = vunpack.c.h.b16 %v461
        %v613 = vunpack.c.l.b16 %v462
        %v614 = vunpack.c.l.b16 %v463
        %v615 = vunpack.c.h.b16 %v463
        %v616 = vunpack.c.l.b16 %v464
        %v617 = vunpack.c.h.b16 %v464
        %v618 = vunpack.c.l.b16 %v465
        %v619 = vunpack.c.l.b16 %v466
        %v620 = vunpack.c.h.b16 %v466
        %v621 = vunpack.c.l.b16 %v467
        %v622 = vunpack.c.h.b16 %v467
        %v623 = vunpack.c.l.b16 %v468
        %v624 = vpack.c.b16 %v549, %v544
        %v625 = vpack.c.b16 %v550, %v545
        %v626 = vpack.c.b16 %v551, %v546
        %v627 = vpack.c.b16 %v552, %v547
        %v628 = vpack.c.b16 %v553, %v548
        %v629 = vpack.c.b16 %v559, %v554
        %v630 = vpack.c.b16 %v560, %v555
        %v631 = vpack.c.b16 %v561, %v556
        %v632 = vpack.c.b16 %v562, %v557
        %v633 = vpack.c.b16 %v563, %v558
        %v634 = vpack.c.b16 %v569, %v564
        %v635 = vpack.c.b16 %v570, %v565
        %v636 = vpack.c.b16 %v571, %v566
        %v637 = vpack.c.b16 %v572, %v567
        %v638 = vpack.c.b16 %v573, %v568
        %v639 = vpack.c.b16 %v579, %v574
        %v640 = vpack.c.b16 %v580, %v575
        %v641 = vpack.c.b16 %v581, %v576
        %v642 = vpack.c.b16 %v582, %v577
        %v643 = vpack.c.b16 %v583, %v578
        %v644 = vpack.c.b16 %v589, %v584
        %v645 = vpack.c.b16 %v590, %v585
        %v646 = vpack.c.b16 %v591, %v586
        %v647 = vpack.c.b16 %v592, %v587
        %v648 = vpack.c.b16 %v593, %v588
        %v649 = vpack.c.b16 %v599, %v594
        %v650 = vpack.c.b16 %v600, %v595
        %v651 = vpack.c.b16 %v601, %v596
        %v652 = vpack.c.b16 %v602, %v597
        %v653 = vpack.c.b16 %v603, %v598
        %v654 = vpack.c.b16 %v609, %v604
        %v655 = vpack.c.b16 %v610, %v605
        %v656 = vpack.c.b16 %v611, %v606
        %v657 = vpack.c.b16 %v612, %v607
        %v658 = vpack.c.b16 %v613, %v608
        %v659 = vpack.c.b16 %v619, %v614
        %v660 = vpack.c.b16 %v620, %v615
        %v661 = vpack.c.b16 %v621, %v616
        %v662 = vpack.c.b16 %v622, %v617
        %v663 = vpack.c.b16 %v623, %v618
        %704 = vmatprep.subr.bf16.mxu0 %v660
        %705 = vmatpush1.bf16.msra.mxu0 %v659
        %706 = vmatprep.subr.bf16.mxu0 %v655
        %707 = vmatpush1.bf16.msra.mxu0 %v654
        %708 = vmatprep.subr.bf16.mxu0 %v650
        %709 = vmatpush1.bf16.msra.mxu0 %v649
        %710 = vmatprep.subr.bf16.mxu0 %v645
        %711 = vmatpush1.bf16.msra.mxu0 %v644
        %712 = vmatprep.subr.bf16.mxu0 %v640
        %713 = vmatpush1.bf16.msra.mxu0 %v639
        %714 = vmatprep.subr.bf16.mxu0 %v635
        %715 = vmatpush1.bf16.msra.mxu0 %v634
        %716 = vmatprep.subr.bf16.mxu0 %v630
        %717 = vmatpush1.bf16.msra.mxu0 %v629
        %718 = vmatprep.subr.bf16.mxu0 %v625
        %719 = vmatpush1.bf16.msra.mxu0 %v624
        %720 = vmatprep.subr.bf16.mxu0 0
        %721 = vmatpush2.bf16.msra.mxu0 0
        %722 = vmatprep.subr.bf16.mxu0 0
        %723 = vmatpush2.bf16.msra.mxu0 0
        %724 = vmatprep.subr.bf16.mxu0 0
        %725 = vmatpush2.bf16.msra.mxu0 0
        %726 = vmatprep.subr.bf16.mxu0 0
        %727 = vmatpush2.bf16.msra.mxu0 0
        %728 = vmatprep.subr.bf16.mxu0 0
        %729 = vmatpush2.bf16.msra.mxu0 0
        %730 = vmatprep.subr.bf16.mxu0 0
        %731 = vmatpush2.bf16.msra.mxu0 0
        %732 = vmatprep.subr.bf16.mxu0 0
        %733 = vmatpush2.bf16.msra.mxu0 0
        %734 = vmatprep.subr.bf16.mxu0 0
        %735 = vmatpush2.bf16.msra.mxu0 0
        %736 = vmatprep.mubr.bf16.mxu0 0
        %737 = vmatmul.mubr.bf16.gmra.mxu0 %v420
        %v738 = vpop.f32.mrf.mxu0
        %v739 = vadd.f32 %v474, %v738
        %v740 = vpop.f32.mrf.mxu0
        %v741 = vadd.f32 %v478, %v740
        %v742 = vpop.f32.mrf.mxu0
        %v743 = vadd.f32 %v474, %v742
        %v744 = vpop.f32.mrf.mxu0
        %v745 = vadd.f32 %v478, %v744
        %746 = vdwg.mxu0
        %747 = vmatprep.subr.bf16.mxu0 %v662
        %748 = vmatpush1.bf16.msra.mxu0 %v661
        %749 = vmatprep.subr.bf16.mxu0 %v657
        %750 = vmatpush1.bf16.msra.mxu0 %v656
        %751 = vmatprep.subr.bf16.mxu0 %v652
        %752 = vmatpush1.bf16.msra.mxu0 %v651
        %753 = vmatprep.subr.bf16.mxu0 %v647
        %754 = vmatpush1.bf16.msra.mxu0 %v646
        %755 = vmatprep.subr.bf16.mxu0 %v642
        %756 = vmatpush1.bf16.msra.mxu0 %v641
        %757 = vmatprep.subr.bf16.mxu0 %v637
        %758 = vmatpush1.bf16.msra.mxu0 %v636
        %759 = vmatprep.subr.bf16.mxu0 %v632
        %760 = vmatpush1.bf16.msra.mxu0 %v631
        %761 = vmatprep.subr.bf16.mxu0 %v627
        %762 = vmatpush1.bf16.msra.mxu0 %v626
        %763 = vmatprep.subr.bf16.mxu0 0
        %764 = vmatpush2.bf16.msra.mxu0 0
        %765 = vmatprep.subr.bf16.mxu0 0
        %766 = vmatpush2.bf16.msra.mxu0 0
        %767 = vmatprep.subr.bf16.mxu0 0
        %768 = vmatpush2.bf16.msra.mxu0 0
        %769 = vmatprep.subr.bf16.mxu0 0
        %770 = vmatpush2.bf16.msra.mxu0 0
        %771 = vmatprep.subr.bf16.mxu0 0
        %772 = vmatpush2.bf16.msra.mxu0 0
        %773 = vmatprep.subr.bf16.mxu0 0
        %774 = vmatpush2.bf16.msra.mxu0 0
        %775 = vmatprep.subr.bf16.mxu0 0
        %776 = vmatpush2.bf16.msra.mxu0 0
        %777 = vmatprep.subr.bf16.mxu0 0
        %778 = vmatpush2.bf16.msra.mxu0 0
        %779 = vmatprep.mubr.bf16.mxu0 0
        %780 = vmatmul.mubr.bf16.gmra.mxu0 %v420
        %v781 = vpop.f32.mrf.mxu0
        %v782 = vadd.f32 %v482, %v781
        %v783 = vpop.f32.mrf.mxu0
        %v784 = vadd.f32 %v486, %v783
        %v785 = vpop.f32.mrf.mxu0
        %v786 = vadd.f32 %v482, %v785
        %v787 = vpop.f32.mrf.mxu0
        %v788 = vadd.f32 %v486, %v787
        %789 = vdwg.mxu0
        %790 = vmatprep.subr.bf16.mxu0 0
        %791 = vmatpush1.bf16.msra.mxu0 %v663
        %792 = vmatprep.subr.bf16.mxu0 0
        %793 = vmatpush1.bf16.msra.mxu0 %v658
        %794 = vmatprep.subr.bf16.mxu0 0
        %795 = vmatpush1.bf16.msra.mxu0 %v653
        %796 = vmatprep.subr.bf16.mxu0 0
        %797 = vmatpush1.bf16.msra.mxu0 %v648
        %798 = vmatprep.subr.bf16.mxu0 0
        %799 = vmatpush1.bf16.msra.mxu0 %v643
        %800 = vmatprep.subr.bf16.mxu0 0
        %801 = vmatpush1.bf16.msra.mxu0 %v638
        %802 = vmatprep.subr.bf16.mxu0 0
        %803 = vmatpush1.bf16.msra.mxu0 %v633
        %804 = vmatprep.subr.bf16.mxu0 0
        %805 = vmatpush1.bf16.msra.mxu0 %v628
        %806 = vmatprep.subr.bf16.mxu0 0
        %807 = vmatpush2.bf16.msra.mxu0 0
        %808 = vmatprep.subr.bf16.mxu0 0
        %809 = vmatpush2.bf16.msra.mxu0 0
        %810 = vmatprep.subr.bf16.mxu0 0
        %811 = vmatpush2.bf16.msra.mxu0 0
        %812 = vmatprep.subr.bf16.mxu0 0
        %813 = vmatpush2.bf16.msra.mxu0 0
        %814 = vmatprep.subr.bf16.mxu0 0
        %815 = vmatpush2.bf16.msra.mxu0 0
        %816 = vmatprep.subr.bf16.mxu0 0
        %817 = vmatpush2.bf16.msra.mxu0 0
        %818 = vmatprep.subr.bf16.mxu0 0
        %819 = vmatpush2.bf16.msra.mxu0 0
        %820 = vmatprep.subr.bf16.mxu0 0
        %821 = vmatpush2.bf16.msra.mxu0 0
        %822 = vmatprep.mubr.bf16.mxu0 0
        %823 = vmatmul.mubr.bf16.gmra.mxu0 %v420
        %v824 = vpop.f32.mrf.mxu0
        %v825 = vadd.f32 %v490, %v824
        %v826 = vpop.f32.mrf.mxu0
        %v827 = vpop.f32.mrf.mxu0
        %v828 = vadd.f32 %v490, %v827
        %v829 = vpop.f32.mrf.mxu0
        %830 = vdwg.mxu0
        %v831 = vpack.c.bf16 %v739, %v739
        %v832 = vpack.c.bf16 %v743, %v743
        %v833 = vpack.c.bf16 %v741, %v741
        %v834 = vpack.c.bf16 %v745, %v745
        %vm835 = vcmask 64512
        %v837 = vsel %vm835, %v414, 0
        %vm839 = vcmask 1043456
        %v841 = vsel %vm839, %v831, 0
        %843 = vmatprep.subr.bf16.mxu0 0
        %844 = vmatpush1.bf16.msra.mxu0 0
        %845 = vmatprep.subr.bf16.mxu0 0
        %846 = vmatpush1.bf16.msra.mxu0 0
        %847 = vmatprep.subr.bf16.mxu0 0
        %848 = vmatpush1.bf16.msra.mxu0 0
        %849 = vmatprep.subr.bf16.mxu0 0
        %850 = vmatpush1.bf16.msra.mxu0 0
        %851 = vmatprep.subr.bf16.mxu0 0
        %852 = vmatpush1.bf16.msra.mxu0 0
        %853 = vmatprep.subr.bf16.mxu0 0
        %854 = vmatpush1.bf16.msra.mxu0 0
        %855 = vmatprep.subr.bf16.mxu0 0
        %856 = vmatpush1.bf16.msra.mxu0 0
        %857 = vmatprep.subr.bf16.mxu0 0
        %858 = vmatpush1.bf16.msra.mxu0 %v841
        %859 = vmatprep.subr.bf16.mxu0 0
        %860 = vmatpush2.bf16.msra.mxu0 0
        %861 = vmatprep.subr.bf16.mxu0 0
        %862 = vmatpush2.bf16.msra.mxu0 0
        %863 = vmatprep.subr.bf16.mxu0 0
        %864 = vmatpush2.bf16.msra.mxu0 0
        %865 = vmatprep.subr.bf16.mxu0 0
        %866 = vmatpush2.bf16.msra.mxu0 0
        %867 = vmatprep.subr.bf16.mxu0 0
        %868 = vmatpush2.bf16.msra.mxu0 0
        %869 = vmatprep.subr.bf16.mxu0 0
        %870 = vmatpush2.bf16.msra.mxu0 0
        %871 = vmatprep.subr.bf16.mxu0 0
        %872 = vmatpush2.bf16.msra.mxu0 0
        %873 = vmatprep.subr.bf16.mxu0 0
        %874 = vmatpush2.bf16.msra.mxu0 0
        %875 = vmatprep.mubr.bf16.mxu0 0
        %876 = vmatmul.mubr.bf16.gmra.mxu0 %v837
        %v877 = vpop.f32.mrf.mxu0
        %v878 = vadd.f32 0.0, %v877
        %v879 = vpop.f32.mrf.mxu0
        %v880 = vpop.f32.mrf.mxu0
        %v881 = vpop.f32.mrf.mxu0
        %882 = vdwg.mxu0
        %v884 = vsel %vm835, %v415, 0
        %v887 = vsel %vm839, %v832, 0
        %889 = vmatprep.subr.bf16.mxu0 0
        %890 = vmatpush1.bf16.msra.mxu0 0
        %891 = vmatprep.subr.bf16.mxu0 0
        %892 = vmatpush1.bf16.msra.mxu0 0
        %893 = vmatprep.subr.bf16.mxu0 0
        %894 = vmatpush1.bf16.msra.mxu0 0
        %895 = vmatprep.subr.bf16.mxu0 0
        %896 = vmatpush1.bf16.msra.mxu0 0
        %897 = vmatprep.subr.bf16.mxu0 0
        %898 = vmatpush1.bf16.msra.mxu0 0
        %899 = vmatprep.subr.bf16.mxu0 0
        %900 = vmatpush1.bf16.msra.mxu0 0
        %901 = vmatprep.subr.bf16.mxu0 0
        %902 = vmatpush1.bf16.msra.mxu0 0
        %903 = vmatprep.subr.bf16.mxu0 0
        %904 = vmatpush1.bf16.msra.mxu0 %v887
        %905 = vmatprep.subr.bf16.mxu0 0
        %906 = vmatpush2.bf16.msra.mxu0 0
        %907 = vmatprep.subr.bf16.mxu0 0
        %908 = vmatpush2.bf16.msra.mxu0 0
        %909 = vmatprep.subr.bf16.mxu0 0
        %910 = vmatpush2.bf16.msra.mxu0 0
        %911 = vmatprep.subr.bf16.mxu0 0
        %912 = vmatpush2.bf16.msra.mxu0 0
        %913 = vmatprep.subr.bf16.mxu0 0
        %914 = vmatpush2.bf16.msra.mxu0 0
        %915 = vmatprep.subr.bf16.mxu0 0
        %916 = vmatpush2.bf16.msra.mxu0 0
        %917 = vmatprep.subr.bf16.mxu0 0
        %918 = vmatpush2.bf16.msra.mxu0 0
        %919 = vmatprep.subr.bf16.mxu0 0
        %920 = vmatpush2.bf16.msra.mxu0 0
        %921 = vmatprep.mubr.bf16.mxu0 0
        %922 = vmatmul.mubr.bf16.gmra.mxu0 %v884
        %v923 = vpop.f32.mrf.mxu0
        %v924 = vadd.f32 0.0, %v923
        %v925 = vpop.f32.mrf.mxu0
        %v926 = vpop.f32.mrf.mxu0
        %v927 = vpop.f32.mrf.mxu0
        %928 = vdwg.mxu0
        %v930 = vsel %vm835, %v416, 0
        %v933 = vsel %vm839, %v833, 0
        %935 = vmatprep.subr.bf16.mxu0 0
        %936 = vmatpush1.bf16.msra.mxu0 0
        %937 = vmatprep.subr.bf16.mxu0 0
        %938 = vmatpush1.bf16.msra.mxu0 0
        %939 = vmatprep.subr.bf16.mxu0 0
        %940 = vmatpush1.bf16.msra.mxu0 0
        %941 = vmatprep.subr.bf16.mxu0 0
        %942 = vmatpush1.bf16.msra.mxu0 0
        %943 = vmatprep.subr.bf16.mxu0 0
        %944 = vmatpush1.bf16.msra.mxu0 0
        %945 = vmatprep.subr.bf16.mxu0 0
        %946 = vmatpush1.bf16.msra.mxu0 0
        %947 = vmatprep.subr.bf16.mxu0 0
        %948 = vmatpush1.bf16.msra.mxu0 0
        %949 = vmatprep.subr.bf16.mxu0 0
        %950 = vmatpush1.bf16.msra.mxu0 %v933
        %951 = vmatprep.subr.bf16.mxu0 0
        %952 = vmatpush2.bf16.msra.mxu0 0
        %953 = vmatprep.subr.bf16.mxu0 0
        %954 = vmatpush2.bf16.msra.mxu0 0
        %955 = vmatprep.subr.bf16.mxu0 0
        %956 = vmatpush2.bf16.msra.mxu0 0
        %957 = vmatprep.subr.bf16.mxu0 0
        %958 = vmatpush2.bf16.msra.mxu0 0
        %959 = vmatprep.subr.bf16.mxu0 0
        %960 = vmatpush2.bf16.msra.mxu0 0
        %961 = vmatprep.subr.bf16.mxu0 0
        %962 = vmatpush2.bf16.msra.mxu0 0
        %963 = vmatprep.subr.bf16.mxu0 0
        %964 = vmatpush2.bf16.msra.mxu0 0
        %965 = vmatprep.subr.bf16.mxu0 0
        %966 = vmatpush2.bf16.msra.mxu0 0
        %967 = vmatprep.mubr.bf16.mxu0 0
        %968 = vmatmul.mubr.bf16.gmra.mxu0 %v930
        %v969 = vpop.f32.mrf.mxu0
        %v970 = vadd.f32 0.0, %v969
        %v971 = vpop.f32.mrf.mxu0
        %v972 = vpop.f32.mrf.mxu0
        %v973 = vpop.f32.mrf.mxu0
        %974 = vdwg.mxu0
        %v976 = vsel %vm835, %v417, 0
        %v979 = vsel %vm839, %v834, 0
        %981 = vmatprep.subr.bf16.mxu0 0
        %982 = vmatpush1.bf16.msra.mxu0 0
        %983 = vmatprep.subr.bf16.mxu0 0
        %984 = vmatpush1.bf16.msra.mxu0 0
        %985 = vmatprep.subr.bf16.mxu0 0
        %986 = vmatpush1.bf16.msra.mxu0 0
        %987 = vmatprep.subr.bf16.mxu0 0
        %988 = vmatpush1.bf16.msra.mxu0 0
        %989 = vmatprep.subr.bf16.mxu0 0
        %990 = vmatpush1.bf16.msra.mxu0 0
        %991 = vmatprep.subr.bf16.mxu0 0
        %992 = vmatpush1.bf16.msra.mxu0 0
        %993 = vmatprep.subr.bf16.mxu0 0
        %994 = vmatpush1.bf16.msra.mxu0 0
        %995 = vmatprep.subr.bf16.mxu0 0
        %996 = vmatpush1.bf16.msra.mxu0 %v979
        %997 = vmatprep.subr.bf16.mxu0 0
        %998 = vmatpush2.bf16.msra.mxu0 0
        %999 = vmatprep.subr.bf16.mxu0 0
        %1000 = vmatpush2.bf16.msra.mxu0 0
        %1001 = vmatprep.subr.bf16.mxu0 0
        %1002 = vmatpush2.bf16.msra.mxu0 0
        %1003 = vmatprep.subr.bf16.mxu0 0
        %1004 = vmatpush2.bf16.msra.mxu0 0
        %1005 = vmatprep.subr.bf16.mxu0 0
        %1006 = vmatpush2.bf16.msra.mxu0 0
        %1007 = vmatprep.subr.bf16.mxu0 0
        %1008 = vmatpush2.bf16.msra.mxu0 0
        %1009 = vmatprep.subr.bf16.mxu0 0
        %1010 = vmatpush2.bf16.msra.mxu0 0
        %1011 = vmatprep.subr.bf16.mxu0 0
        %1012 = vmatpush2.bf16.msra.mxu0 0
        %1013 = vmatprep.mubr.bf16.mxu0 0
        %1014 = vmatmul.mubr.bf16.gmra.mxu0 %v976
        %v1015 = vpop.f32.mrf.mxu0
        %v1016 = vadd.f32 0.0, %v1015
        %v1017 = vpop.f32.mrf.mxu0
        %v1018 = vpop.f32.mrf.mxu0
        %v1019 = vpop.f32.mrf.mxu0
        %1020 = vdwg.mxu0
        %v1021 = vpack.c.bf16 %v878, %v878
        %v1022 = vpack.c.bf16 %v924, %v924
        %v1023 = vpack.c.bf16 %v970, %v970
        %v1024 = vpack.c.bf16 %v1016, %v1016
        %v1029 = vunpack.c.l.b16 %v1021
        %v1030 = vunpack.c.l.b16 %v1023
        %v1031 = vunpack.c.l.b16 %v1022
        %v1032 = vunpack.c.l.b16 %v1024
        %v1033 = vld [vmem:[#allocation10] sm:$0xff]
        %v1034 = vld [vmem:[#allocation10 + $0x8] sm:$0xf]
        %v1035 = vld [vmem:[#allocation10 + $0xc] sm:$0xff]
        %v1036 = vld [vmem:[#allocation10 + $0x14] sm:$0xf]
        %v1037 = vld [vmem:[#allocation10 + $0x18] sm:$0xff]
        %v1038 = vld [vmem:[#allocation10 + $0x20] sm:$0xf]
        %v1039 = vld [vmem:[#allocation10 + $0x24] sm:$0xff]
        %v1040 = vld [vmem:[#allocation10 + $0x2c] sm:$0xf]
        %v1041 = vld [vmem:[#allocation10 + $0x30] sm:$0xff]
        %v1042 = vld [vmem:[#allocation10 + $0x38] sm:$0xf]
        %v1043 = vld [vmem:[#allocation10 + $0x3c] sm:$0xff]
        %v1044 = vld [vmem:[#allocation10 + $0x44] sm:$0xf]
        %v1045 = vld [vmem:[#allocation10 + $0x48] sm:$0xff]
        %v1046 = vld [vmem:[#allocation10 + $0x50] sm:$0xf]
        %v1047 = vld [vmem:[#allocation10 + $0x54] sm:$0xff]
        %v1048 = vld [vmem:[#allocation10 + $0x5c] sm:$0xf]
        %v1049 = vld [vmem:[#allocation10 + $0x60] sm:$0xff]
        %v1050 = vld [vmem:[#allocation10 + $0x68] sm:$0xf]
        %v1051 = vld [vmem:[#allocation10 + $0x6c] sm:$0xff]
        %v1052 = vld [vmem:[#allocation10 + $0x74] sm:$0xf]
        %v1053 = vld [vmem:[#allocation10 + $0x78] sm:$0xff]
        %v1054 = vld [vmem:[#allocation10 + $0x80] sm:$0xf]
        %v1055 = vld [vmem:[#allocation10 + $0x84] sm:$0xff]
        %v1056 = vld [vmem:[#allocation10 + $0x8c] sm:$0xf]
        %v1057 = vld [vmem:[#allocation10 + $0x90] sm:$0xff]
        %v1058 = vld [vmem:[#allocation10 + $0x98] sm:$0xf]
        %v1059 = vld [vmem:[#allocation10 + $0x9c] sm:$0xff]
        %v1060 = vld [vmem:[#allocation10 + $0xa4] sm:$0xf]
        %v1061 = vld [vmem:[#allocation10 + $0xa8] sm:$0xff]
        %v1062 = vld [vmem:[#allocation10 + $0xb0] sm:$0xf]
        %v1063 = vld [vmem:[#allocation10 + $0xb4] sm:$0xff]
        %v1064 = vld [vmem:[#allocation10 + $0xbc] sm:$0xf]
        %v1065 = vld [vmem:[#allocation10 + $0xc0] sm:$0xff]
        %v1066 = vld [vmem:[#allocation10 + $0xc8] sm:$0xf]
        %v1067 = vld [vmem:[#allocation10 + $0xcc] sm:$0xff]
        %v1068 = vld [vmem:[#allocation10 + $0xd4] sm:$0xf]
        %v1069 = vld [vmem:[#allocation10 + $0xd8] sm:$0xff]
        %v1070 = vld [vmem:[#allocation10 + $0xe0] sm:$0xf]
        %v1071 = vld [vmem:[#allocation10 + $0xe4] sm:$0xff]
        %v1072 = vld [vmem:[#allocation10 + $0xec] sm:$0xf]
        %v1073 = vld [vmem:[#allocation10 + $0xf0] sm:$0xff]
        %v1074 = vld [vmem:[#allocation10 + $0xf8] sm:$0xf]
        %v1075 = vld [vmem:[#allocation10 + $0xfc] sm:$0xff]
        %v1076 = vld [vmem:[#allocation10 + $0x104] sm:$0xf]
        %v1077 = vld [vmem:[#allocation10 + $0x108] sm:$0xff]
        %v1078 = vld [vmem:[#allocation10 + $0x110] sm:$0xf]
        %v1079 = vld [vmem:[#allocation10 + $0x114] sm:$0xff]
        %v1080 = vld [vmem:[#allocation10 + $0x11c] sm:$0xf]
        %v1081 = vld [vmem:[#allocation10 + $0x120] sm:$0xff]
        %v1082 = vld [vmem:[#allocation10 + $0x128] sm:$0xf]
        %v1083 = vld [vmem:[#allocation10 + $0x12c] sm:$0xff]
        %v1084 = vld [vmem:[#allocation10 + $0x134] sm:$0xf]
        %v1085 = vld [vmem:[#allocation10 + $0x138] sm:$0xff]
        %v1086 = vld [vmem:[#allocation10 + $0x140] sm:$0xf]
        %v1087 = vld [vmem:[#allocation10 + $0x144] sm:$0xff]
        %v1088 = vld [vmem:[#allocation10 + $0x14c] sm:$0xf]
        %v1089 = vld [vmem:[#allocation10 + $0x150] sm:$0xff]
        %v1090 = vld [vmem:[#allocation10 + $0x158] sm:$0xf]
        %v1091 = vld [vmem:[#allocation10 + $0x15c] sm:$0xff]
        %v1092 = vld [vmem:[#allocation10 + $0x164] sm:$0xf]
        %v1093 = vld [vmem:[#allocation10 + $0x168] sm:$0xff]
        %v1094 = vld [vmem:[#allocation10 + $0x170] sm:$0xf]
        %v1095 = vld [vmem:[#allocation10 + $0x174] sm:$0xff]
        %v1096 = vld [vmem:[#allocation10 + $0x17c] sm:$0xf]
        %v1097 = vld [vmem:[%s6] sm:$0x7]
        %v1099 = vlaneseq
        %v1100 = vshrl.u32 %v1099, 7
        %v1101 = vsub.s32 0, %v1100
        %v1102 = vrot.slane %v1097, %v1101
        %v1103 = vlaneseq
        %v1104 = vshrl.u32 %v1103, 7
        %v1105 = vsub.s32 1, %v1104
        %v1106 = vrot.slane %v1097, %v1105
        %v1107 = vlaneseq
        %v1108 = vshrl.u32 %v1107, 7
        %v1109 = vsub.s32 2, %v1108
        %v1110 = vrot.slane %v1097, %v1109
        %v1114 = vpack.c.b16 %v1031, %v1029
        %v1115 = vpack.c.b16 %v1032, %v1030
        %v1182 = vunpack.c.l.b16 %v1033
        %v1183 = vunpack.c.h.b16 %v1033
        %v1184 = vunpack.c.l.b16 %v1034
        %v1185 = vunpack.c.l.b16 %v1035
        %v1186 = vunpack.c.h.b16 %v1035
        %v1187 = vunpack.c.l.b16 %v1036
        %v1188 = vunpack.c.l.b16 %v1037
        %v1189 = vunpack.c.h.b16 %v1037
        %v1190 = vunpack.c.l.b16 %v1038
        %v1191 = vunpack.c.l.b16 %v1039
        %v1192 = vunpack.c.h.b16 %v1039
        %v1193 = vunpack.c.l.b16 %v1040
        %v1194 = vunpack.c.l.b16 %v1041
        %v1195 = vunpack.c.h.b16 %v1041
        %v1196 = vunpack.c.l.b16 %v1042
        %v1197 = vunpack.c.l.b16 %v1043
        %v1198 = vunpack.c.h.b16 %v1043
        %v1199 = vunpack.c.l.b16 %v1044
        %v1200 = vunpack.c.l.b16 %v1045
        %v1201 = vunpack.c.h.b16 %v1045
        %v1202 = vunpack.c.l.b16 %v1046
        %v1203 = vunpack.c.l.b16 %v1047
        %v1204 = vunpack.c.h.b16 %v1047
        %v1205 = vunpack.c.l.b16 %v1048
        %v1206 = vunpack.c.l.b16 %v1049
        %v1207 = vunpack.c.h.b16 %v1049
        %v1208 = vunpack.c.l.b16 %v1050
        %v1209 = vunpack.c.l.b16 %v1051
        %v1210 = vunpack.c.h.b16 %v1051
        %v1211 = vunpack.c.l.b16 %v1052
        %v1212 = vunpack.c.l.b16 %v1053
        %v1213 = vunpack.c.h.b16 %v1053
        %v1214 = vunpack.c.l.b16 %v1054
        %v1215 = vunpack.c.l.b16 %v1055
        %v1216 = vunpack.c.h.b16 %v1055
        %v1217 = vunpack.c.l.b16 %v1056
        %v1218 = vunpack.c.l.b16 %v1057
        %v1219 = vunpack.c.h.b16 %v1057
        %v1220 = vunpack.c.l.b16 %v1058
        %v1221 = vunpack.c.l.b16 %v1059
        %v1222 = vunpack.c.h.b16 %v1059
        %v1223 = vunpack.c.l.b16 %v1060
        %v1224 = vunpack.c.l.b16 %v1061
        %v1225 = vunpack.c.h.b16 %v1061
        %v1226 = vunpack.c.l.b16 %v1062
        %v1227 = vunpack.c.l.b16 %v1063
        %v1228 = vunpack.c.h.b16 %v1063
        %v1229 = vunpack.c.l.b16 %v1064
        %v1230 = vunpack.c.l.b16 %v1065
        %v1231 = vunpack.c.h.b16 %v1065
        %v1232 = vunpack.c.l.b16 %v1066
        %v1233 = vunpack.c.l.b16 %v1067
        %v1234 = vunpack.c.h.b16 %v1067
        %v1235 = vunpack.c.l.b16 %v1068
        %v1236 = vunpack.c.l.b16 %v1069
        %v1237 = vunpack.c.h.b16 %v1069
        %v1238 = vunpack.c.l.b16 %v1070
        %v1239 = vunpack.c.l.b16 %v1071
        %v1240 = vunpack.c.h.b16 %v1071
        %v1241 = vunpack.c.l.b16 %v1072
        %v1242 = vunpack.c.l.b16 %v1073
        %v1243 = vunpack.c.h.b16 %v1073
        %v1244 = vunpack.c.l.b16 %v1074
        %v1245 = vunpack.c.l.b16 %v1075
        %v1246 = vunpack.c.h.b16 %v1075
        %v1247 = vunpack.c.l.b16 %v1076
        %v1248 = vunpack.c.l.b16 %v1077
        %v1249 = vunpack.c.h.b16 %v1077
        %v1250 = vunpack.c.l.b16 %v1078
        %v1251 = vunpack.c.l.b16 %v1079
        %v1252 = vunpack.c.h.b16 %v1079
        %v1253 = vunpack.c.l.b16 %v1080
        %v1254 = vunpack.c.l.b16 %v1081
        %v1255 = vunpack.c.h.b16 %v1081
        %v1256 = vunpack.c.l.b16 %v1082
        %v1257 = vunpack.c.l.b16 %v1083
        %v1258 = vunpack.c.h.b16 %v1083
        %v1259 = vunpack.c.l.b16 %v1084
        %v1260 = vunpack.c.l.b16 %v1085
        %v1261 = vunpack.c.h.b16 %v1085
        %v1262 = vunpack.c.l.b16 %v1086
        %v1263 = vunpack.c.l.b16 %v1087
        %v1264 = vunpack.c.h.b16 %v1087
        %v1265 = vunpack.c.l.b16 %v1088
        %v1266 = vunpack.c.l.b16 %v1089
        %v1267 = vunpack.c.h.b16 %v1089
        %v1268 = vunpack.c.l.b16 %v1090
        %v1269 = vunpack.c.l.b16 %v1091
        %v1270 = vunpack.c.h.b16 %v1091
        %v1271 = vunpack.c.l.b16 %v1092
        %v1272 = vunpack.c.l.b16 %v1093
        %v1273 = vunpack.c.h.b16 %v1093
        %v1274 = vunpack.c.l.b16 %v1094
        %v1275 = vunpack.c.l.b16 %v1095
        %v1276 = vunpack.c.h.b16 %v1095
        %v1277 = vunpack.c.l.b16 %v1096
        %v1278 = vpack.c.b16 %v1185, %v1182
        %v1279 = vpack.c.b16 %v1186, %v1183
        %v1280 = vpack.c.b16 %v1187, %v1184
        %v1281 = vpack.c.b16 %v1191, %v1188
        %v1282 = vpack.c.b16 %v1192, %v1189
        %v1283 = vpack.c.b16 %v1193, %v1190
        %v1284 = vpack.c.b16 %v1197, %v1194
        %v1285 = vpack.c.b16 %v1198, %v1195
        %v1286 = vpack.c.b16 %v1199, %v1196
        %v1287 = vpack.c.b16 %v1203, %v1200
        %v1288 = vpack.c.b16 %v1204, %v1201
        %v1289 = vpack.c.b16 %v1205, %v1202
        %v1290 = vpack.c.b16 %v1209, %v1206
        %v1291 = vpack.c.b16 %v1210, %v1207
        %v1292 = vpack.c.b16 %v1211, %v1208
        %v1293 = vpack.c.b16 %v1215, %v1212
        %v1294 = vpack.c.b16 %v1216, %v1213
        %v1295 = vpack.c.b16 %v1217, %v1214
        %v1296 = vpack.c.b16 %v1221, %v1218
        %v1297 = vpack.c.b16 %v1222, %v1219
        %v1298 = vpack.c.b16 %v1223, %v1220
        %v1299 = vpack.c.b16 %v1227, %v1224
        %v1300 = vpack.c.b16 %v1228, %v1225
        %v1301 = vpack.c.b16 %v1229, %v1226
        %v1302 = vpack.c.b16 %v1233, %v1230
        %v1303 = vpack.c.b16 %v1234, %v1231
        %v1304 = vpack.c.b16 %v1235, %v1232
        %v1305 = vpack.c.b16 %v1239, %v1236
        %v1306 = vpack.c.b16 %v1240, %v1237
        %v1307 = vpack.c.b16 %v1241, %v1238
        %v1308 = vpack.c.b16 %v1245, %v1242
        %v1309 = vpack.c.b16 %v1246, %v1243
        %v1310 = vpack.c.b16 %v1247, %v1244
        %v1311 = vpack.c.b16 %v1251, %v1248
        %v1312 = vpack.c.b16 %v1252, %v1249
        %v1313 = vpack.c.b16 %v1253, %v1250
        %v1314 = vpack.c.b16 %v1257, %v1254
        %v1315 = vpack.c.b16 %v1258, %v1255
        %v1316 = vpack.c.b16 %v1259, %v1256
        %v1317 = vpack.c.b16 %v1263, %v1260
        %v1318 = vpack.c.b16 %v1264, %v1261
        %v1319 = vpack.c.b16 %v1265, %v1262
        %v1320 = vpack.c.b16 %v1269, %v1266
        %v1321 = vpack.c.b16 %v1270, %v1267
        %v1322 = vpack.c.b16 %v1271, %v1268
        %v1323 = vpack.c.b16 %v1275, %v1272
        %v1324 = vpack.c.b16 %v1276, %v1273
        %v1325 = vpack.c.b16 %v1277, %v1274
        %1374 = vmatprep.subr.bf16.mxu0 %v1300
        %1375 = vmatpush1.bf16.msra.mxu0 %v1299
        %1376 = vmatprep.subr.bf16.mxu0 %v1297
        %1377 = vmatpush1.bf16.msra.mxu0 %v1296
        %1378 = vmatprep.subr.bf16.mxu0 %v1294
        %1379 = vmatpush1.bf16.msra.mxu0 %v1293
        %1380 = vmatprep.subr.bf16.mxu0 %v1291
        %1381 = vmatpush1.bf16.msra.mxu0 %v1290
        %1382 = vmatprep.subr.bf16.mxu0 %v1288
        %1383 = vmatpush1.bf16.msra.mxu0 %v1287
        %1384 = vmatprep.subr.bf16.mxu0 %v1285
        %1385 = vmatpush1.bf16.msra.mxu0 %v1284
        %1386 = vmatprep.subr.bf16.mxu0 %v1282
        %1387 = vmatpush1.bf16.msra.mxu0 %v1281
        %1388 = vmatprep.subr.bf16.mxu0 %v1279
        %1389 = vmatpush1.bf16.msra.mxu0 %v1278
        %1390 = vmatprep.subr.bf16.mxu0 %v1324
        %1391 = vmatpush2.bf16.msra.mxu0 %v1323
        %1392 = vmatprep.subr.bf16.mxu0 %v1321
        %1393 = vmatpush2.bf16.msra.mxu0 %v1320
        %1394 = vmatprep.subr.bf16.mxu0 %v1318
        %1395 = vmatpush2.bf16.msra.mxu0 %v1317
        %1396 = vmatprep.subr.bf16.mxu0 %v1315
        %1397 = vmatpush2.bf16.msra.mxu0 %v1314
        %1398 = vmatprep.subr.bf16.mxu0 %v1312
        %1399 = vmatpush2.bf16.msra.mxu0 %v1311
        %1400 = vmatprep.subr.bf16.mxu0 %v1309
        %1401 = vmatpush2.bf16.msra.mxu0 %v1308
        %1402 = vmatprep.subr.bf16.mxu0 %v1306
        %1403 = vmatpush2.bf16.msra.mxu0 %v1305
        %1404 = vmatprep.subr.bf16.mxu0 %v1303
        %1405 = vmatpush2.bf16.msra.mxu0 %v1302
        %1406 = vmatprep.mubr.bf16.mxu0 %v1115
        %1407 = vmatmul.mubr.bf16.gmra.mxu0 %v1114
        %v1408 = vpop.f32.mrf.mxu0
        %v1409 = vadd.f32 %v1102, %v1408
        %v1410 = vpop.f32.mrf.mxu0
        %v1411 = vadd.f32 %v1106, %v1410
        %v1412 = vpop.f32.mrf.mxu0
        %v1413 = vadd.f32 %v1102, %v1412
        %v1414 = vpop.f32.mrf.mxu0
        %v1415 = vadd.f32 %v1106, %v1414
        %1416 = vdwg.mxu0
        %1417 = vmatprep.subr.bf16.mxu0 0
        %1418 = vmatpush1.bf16.msra.mxu0 %v1301
        %1419 = vmatprep.subr.bf16.mxu0 0
        %1420 = vmatpush1.bf16.msra.mxu0 %v1298
        %1421 = vmatprep.subr.bf16.mxu0 0
        %1422 = vmatpush1.bf16.msra.mxu0 %v1295
        %1423 = vmatprep.subr.bf16.mxu0 0
        %1424 = vmatpush1.bf16.msra.mxu0 %v1292
        %1425 = vmatprep.subr.bf16.mxu0 0
        %1426 = vmatpush1.bf16.msra.mxu0 %v1289
        %1427 = vmatprep.subr.bf16.mxu0 0
        %1428 = vmatpush1.bf16.msra.mxu0 %v1286
        %1429 = vmatprep.subr.bf16.mxu0 0
        %1430 = vmatpush1.bf16.msra.mxu0 %v1283
        %1431 = vmatprep.subr.bf16.mxu0 0
        %1432 = vmatpush1.bf16.msra.mxu0 %v1280
        %1433 = vmatprep.subr.bf16.mxu0 0
        %1434 = vmatpush2.bf16.msra.mxu0 %v1325
        %1435 = vmatprep.subr.bf16.mxu0 0
        %1436 = vmatpush2.bf16.msra.mxu0 %v1322
        %1437 = vmatprep.subr.bf16.mxu0 0
        %1438 = vmatpush2.bf16.msra.mxu0 %v1319
        %1439 = vmatprep.subr.bf16.mxu0 0
        %1440 = vmatpush2.bf16.msra.mxu0 %v1316
        %1441 = vmatprep.subr.bf16.mxu0 0
        %1442 = vmatpush2.bf16.msra.mxu0 %v1313
        %1443 = vmatprep.subr.bf16.mxu0 0
        %1444 = vmatpush2.bf16.msra.mxu0 %v1310
        %1445 = vmatprep.subr.bf16.mxu0 0
        %1446 = vmatpush2.bf16.msra.mxu0 %v1307
        %1447 = vmatprep.subr.bf16.mxu0 0
        %1448 = vmatpush2.bf16.msra.mxu0 %v1304
        %1449 = vmatprep.mubr.bf16.mxu0 %v1115
        %1450 = vmatmul.mubr.bf16.gmra.mxu0 %v1114
        %v1451 = vpop.f32.mrf.mxu0
        %v1452 = vadd.f32 %v1110, %v1451
        %v1453 = vpop.f32.mrf.mxu0
        %v1454 = vpop.f32.mrf.mxu0
        %v1455 = vadd.f32 %v1110, %v1454
        %v1456 = vpop.f32.mrf.mxu0
        %1457 = vdwg.mxu0
        %v1458 = vadd.f32 %v1409, %v782
        %v1459 = vadd.f32 %v1413, %v786
        %v1460 = vxor.u32 %v1458, 2147483648
        %v1461 = vxor.u32 %v1459, 2147483648
        %v1462 = vmul.f32 %v1460, 1.442695
        %v1463 = vpow.pop %v1462
        %v1464 = vmul.f32 %v1461, 1.442695
        %v1465 = vpow.pop %v1464
        %v1466 = vadd.f32 %v1463, 1.0
        %v1467 = vadd.f32 %v1465, 1.0
        %v1468 = vrcp.pop %v1466
        %v1469 = vmul.f32 1.0, %v1468
        %v1470 = vrcp.pop %v1467
        %v1471 = vmul.f32 1.0, %v1470
        %v1472 = vadd.f32 %v1411, %v784
        %v1473 = vadd.f32 %v1415, %v788
        %v1474 = vxor.u32 %v1472, 2147483648
        %v1475 = vxor.u32 %v1473, 2147483648
        %v1476 = vmul.f32 %v1474, 1.442695
        %v1477 = vpow.pop %v1476
        %v1478 = vmul.f32 %v1475, 1.442695
        %v1479 = vpow.pop %v1478
        %v1480 = vadd.f32 %v1477, 1.0
        %v1481 = vadd.f32 %v1479, 1.0
        %v1482 = vrcp.pop %v1480
        %v1483 = vmul.f32 1.0, %v1482
        %v1484 = vrcp.pop %v1481
        %v1485 = vmul.f32 1.0, %v1484
        %v1486 = vmul.f32 %v1469, %v825
        %v1487 = vmul.f32 %v1471, %v828
        %v1488 = vadd.f32 %v1452, %v1486
        %v1489 = vadd.f32 %v1455, %v1487
        %v1490 = vtanh.pop %v1488
        %v1491 = vtanh.pop %v1489
        %v1492 = vsub.f32 %v418, %v1490
        %v1493 = vsub.f32 %v419, %v1491
        %v1494 = vmul.f32 %v1483, %v1492
        %v1495 = vmul.f32 %v1485, %v1493
        %v1496 = vadd.f32 %v1490, %v1494
        %v1497 = vadd.f32 %v1491, %v1495
        %1498 = vst [vmem:[#allocation11] sm:$0xff] %v1496
        %1499 = vst [vmem:[#allocation11 + $0x8] sm:$0xff] %v1497
        // Predicated region
        $region73: #{tpu_custom_call.1} parent=47 // pred_check
          %p1500 = pneg %p222
        $region74: #{tpu_custom_call.1} parent=47 // pred_check_branch
          %1502 = sbr.rel (%p1500) target = $region76
        $region75: #{tpu_custom_call.1} parent=47 // pred_region
          %s1503 = smul.u32 2, %s30
          %s1505 = ssub.s32 256, 256
          %1506 = vsyncadd [#allocation4], %s1505
          %s1507 = smul.addr %s1503, 128
          %s1508 = scalar_lea.hbm %s7, %s1507
          %s1509 = sshll.u32 [#allocation11], 4
          %s1510 = int_to_ptr.vmem [resolvable:$true] %s1509
          %1515 = dma.vmem_to_hbm [thread:$0]  %s1510, 256, %s1508, [#allocation4], 128, 128, 8
        $region76: #{tpu_custom_call.1} parent=47 // pred_fallthru
          _
        // Predicated region
        $region77: #{tpu_custom_call.1} parent=47 // pred_check
          %p1516 = pneg %p222
        $region78: #{tpu_custom_call.1} parent=47 // pred_check_branch
          %1518 = sbr.rel (%p1516) target = $region80
        $region79: #{tpu_custom_call.1} parent=47 // pred_region
          %1519 = dma.done [#allocation4], 256
        $region80: #{tpu_custom_call.1} parent=47 // pred_fallthru
          _
      $region48: #{tpu_custom_call.1} parent=5 // pred_fallthru
        _
      %p1520 = scmp.le.s32.totalorder 2, %s21
      // Predicated region
      $region81: #{tpu_custom_call.1} parent=5 // pred_check
        %p1521 = pneg %p1520
      $region82: #{tpu_custom_call.1} parent=5 // pred_check_branch
        %1523 = sbr.rel (%p1521) target = $region84
      $region83: #{tpu_custom_call.1} parent=5 // pred_region
        %s1524 = ssub.s32 %s21, 2
      $region84: #{tpu_custom_call.1} parent=5 // pred_fallthru
        _
    $region6: #{tpu_custom_call.1} parent=1 // loop_footer
      %s25 = sadd.s32 1, %s21
    $region7: #{tpu_custom_call.1} parent=1 // loop_footer_branch
      %20 = sbr.rel target = $region3
    $region8: #{tpu_custom_call.1} parent=1 // loop_exit
      _
    %1525 = vsyncpa [#allocation3], 1
    %s1526 = scalar_lea.sflag [#allocation3], 1
    %1527 = vsyncpa %s1526, 1
    %1528 = vsyncpa [#allocation6], 1
    %s1529 = scalar_lea.sflag [#allocation6], 1
    %1530 = vsyncpa %s1529, 1
    %1531 = vsyncpa [#allocation9], 1
    %1532 = vsyncpa [#allocation4], 1
    %s1533 = scalar_lea.sflag [#allocation4], 1
    %1534 = vsyncpa %s1533, 1

// kernel: tpu_custom_call.1
$region0: #{tpu_custom_call.1}
  #allocation0 [shape = 'u32[]', space=smem, size = 0x4, offset = 0x4, fixed_abs, tag = 'smem constant byte address 0x4 - core index']
  #allocation1 [shape = 'u32[144,128]{1,0:T(1,128)}', space=vmem, size = 0x12000, scoped, tag = 'internal scratch']
  %s0 = inlined_call_operand.hbm [shape: bf16[2,2,8,8], index: 0, kind: input, shape index: {}]
  %s1 = inlined_call_operand.hbm [shape: bf16[2,2,8,8], index: 1, kind: input, shape index: {}]
  %s2 = inlined_call_operand.hbm [shape: f32[2,8,128], index: 2, kind: input, shape index: {}]
  %s3 = inlined_call_operand.hbm [shape: bf16[128,640], index: 3, kind: input, shape index: {}]
  %s4 = inlined_call_operand.vmem [shape: f32[1,640], index: 4, kind: input, shape index: {}]
  %s5 = inlined_call_operand.hbm [shape: bf16[256,384], index: 5, kind: input, shape index: {}]
  %s6 = inlined_call_operand.vmem [shape: f32[1,384], index: 6, kind: input, shape index: {}]
  %s7 = inlined_call_operand.hbm [shape: f32[2,8,128], index: 7, kind: output, shape index: {}]
  %s8 = sld [smem:[#allocation0]]
  $region85: #{tpu_custom_call.1} parent=0
    _
  %s10 = ssub.s32 1, %s8
  %s11 = scalar_select 0, %s10, %s8
  $region1: #{tpu_custom_call.1} parent=0
    #allocation2 [shape = 'u8[8192]{0}', space=vmem, size = 0x2000, scoped, tag = 'input window, operand 0']
    #allocation3 [shape = 's32[2]{0}', space=sflag, size = 0x8, scoped, tag = 'scoped memory for tpu_custom_call.1']
    #allocation4 [shape = 's32[2]{0}', space=sflag, size = 0x8, scoped, tag = 'scoped memory for tpu_custom_call.1']
    #allocation5 [shape = 'u8[8192]{0}', space=vmem, size = 0x2000, scoped, tag = 'input window, operand 1']
    #allocation6 [shape = 's32[2]{0}', space=sflag, size = 0x8, scoped, tag = 'scoped memory for tpu_custom_call.1']
    #allocation7 [shape = 'u8[8192]{0}', space=vmem, size = 0x2000, scoped, tag = 'input window, operand 2, single buffered']
    #allocation8 [shape = 'u8[163840]{0}', space=vmem, size = 0x28000, scoped, tag = 'input window, operand 3, single buffered']
    #allocation9 [shape = 's32[1]{0}', space=sflag, size = 0x4, scoped, tag = 'scoped memory for tpu_custom_call.1']
    #allocation10 [shape = 'u8[196608]{0}', space=vmem, size = 0x30000, scoped, tag = 'input window, operand 5, single buffered']
    #allocation11 [shape = 'u8[8192]{0}', space=vmem, size = 0x2000, scoped, tag = 'output window, operand 0, single buffered']
    %12 = vsyncpa [#allocation3], 0
    %s13 = scalar_lea.sflag [#allocation3], 1
    %14 = vsyncpa %s13, 0
    %15 = vsyncpa [#allocation6], 0
    %s16 = scalar_lea.sflag [#allocation6], 1
    %17 = vsyncpa %s16, 0
    %18 = vsyncpa [#allocation9], 0
    %19 = vsyncpa [#allocation4], 0
    loop: start=0, step=1, limit=4
    $region2: #{tpu_custom_call.1} parent=1 // loop_pre_header
      _
    $region3: #{tpu_custom_call.1} parent=1 // loop_header
      %s21 = sphi 0, %s25
      %p22 = scmp.ge.s32.totalorder %s21, 4
      %s28 = sphi 0, %s40
      %s29 = sphi 0, %s36
      %s30 = sphi 0, %s28
      %s31 = sphi 0, %s29
      %s32 = sphi 0, %s30
      %s33 = sphi 0, %s31
      %s45 = sphi 0, %s47
      %s48 = sphi 0, %s45
      %s49 = sphi 0, %s48
      %s65 = sphi 0, %s49
      %s73 = sphi 0, %s75
      %s76 = sphi 0, %s73
      %s77 = sphi 0, %s76
      %s93 = sphi 0, %s77
      %s99 = sphi 0, %s101
      %s102 = sphi 0, %s99
      %s103 = sphi 0, %s102
      %s119 = sphi 0, %s103
      %s123 = sphi 0, %s123
      %s125 = sphi 0, %s123
      %s126 = sphi 0, %s125
      %s140 = sphi 0, %s126
      %s144 = sphi 0, %s144
      %s146 = sphi 0, %s144
      %s147 = sphi 0, %s146
      %s161 = sphi 0, %s147
      %s165 = sphi 0, %s165
      %s167 = sphi 0, %s165
      %s168 = sphi 0, %s167
      %s182 = sphi 0, %s168
      %s186 = sphi 0, %s186
      %s188 = sphi 0, %s186
      %s189 = sphi 0, %s188
      %s203 = sphi 0, %s189
      %s209 = sphi 0, %s211
      %s212 = sphi 0, %s209
      %s213 = sphi 0, %s212
      %s229 = sphi 0, %s213
    $region4: #{tpu_custom_call.1} parent=1 // loop_header_branch
      %24 = sbr.rel (%p22) target = $region8
    $region5: #{tpu_custom_call.1} parent=1 // loop_body
      %s26 = ssub.s32 %s21, 1
      %s27 = ssub.s32 %s21, 2
      %s34 = sadd.s32 1, %s29
      %p35 = scmp.ge.s32.totalorder %s34, 2
      %s36 = scalar_select %p35, 0, %s34
      %s37 = sadd.s32 1, %s28
      %s38 = scalar_select %p35, %s37, %s28
      %p39 = scmp.ge.s32.totalorder %s38, 1
      %s40 = scalar_select %p39, 0, %s38
      %s41 = ssub.s32 %s29, %s36
      %s42 = ssub.s32 %s28, %s40
      %s43 = sor.u32 %s41, %s42
      %p44 = scmp.eq.s32.totalorder %s43, 0
      %s46 = sadd.s32 %s45, 1
      %s47 = scalar_select %p44, %s45, %s46
      %p50 = pneg %p44
      %p51 = scmp.eq.s32.totalorder %s21, 1
      %p52 = por %p50, %p51
      %p53 = scmp.ne.s32.totalorder %s45, %s48
      %p54 = scmp.eq.s32.totalorder %s21, 0
      %p55 = por %p53, %p54
      %p56 = scmp.ne.s32.totalorder %s45, %s48
      %p57 = scmp.eq.s32.totalorder %s26, 1
      %p58 = por %p56, %p57
      %p59 = scmp.ne.s32.totalorder %s48, %s49
      %p60 = scmp.eq.s32.totalorder %s26, 0
      %p61 = por %p59, %p60
      %p62 = scmp.ne.s32.totalorder %s48, %s49
      %p63 = scmp.eq.s32.totalorder %s27, 1
      %p64 = por %p62, %p63
      %p66 = scmp.ne.s32.totalorder %s49, %s65
      %p67 = scmp.eq.s32.totalorder %s27, 0
      %p68 = por %p66, %p67
      %s69 = ssub.s32 %s29, %s36
      %s70 = ssub.s32 %s28, %s40
      %s71 = sor.u32 %s69, %s70
      %p72 = scmp.eq.s32.totalorder %s71, 0
      %s74 = sadd.s32 %s73, 1
      %s75 = scalar_select %p72, %s73, %s74
      %p78 = pneg %p72
      %p79 = scmp.eq.s32.totalorder %s21, 1
      %p80 = por %p78, %p79
      %p81 = scmp.ne.s32.totalorder %s73, %s76
      %p82 = scmp.eq.s32.totalorder %s21, 0
      %p83 = por %p81, %p82
      %p84 = scmp.ne.s32.totalorder %s73, %s76
      %p85 = scmp.eq.s32.totalorder %s26, 1
      %p86 = por %p84, %p85
      %p87 = scmp.ne.s32.totalorder %s76, %s77
      %p88 = scmp.eq.s32.totalorder %s26, 0
      %p89 = por %p87, %p88
      %p90 = scmp.ne.s32.totalorder %s76, %s77
      %p91 = scmp.eq.s32.totalorder %s27, 1
      %p92 = por %p90, %p91
      %p94 = scmp.ne.s32.totalorder %s77, %s93
      %p95 = scmp.eq.s32.totalorder %s27, 0
      %p96 = por %p94, %p95
      %s97 = ssub.s32 %s28, %s40
      %p98 = scmp.eq.s32.totalorder %s97, 0
      %s100 = sadd.s32 %s99, 1
      %s101 = scalar_select %p98, %s99, %s100
      %p104 = pneg %p98
      %p105 = scmp.eq.s32.totalorder %s21, 1
      %p106 = por %p104, %p105
      %p107 = scmp.ne.s32.totalorder %s99, %s102
      %p108 = scmp.eq.s32.totalorder %s21, 0
      %p109 = por %p107, %p108
      %p110 = scmp.ne.s32.totalorder %s99, %s102
      %p111 = scmp.eq.s32.totalorder %s26, 1
      %p112 = por %p110, %p111
      %p113 = scmp.ne.s32.totalorder %s102, %s103
      %p114 = scmp.eq.s32.totalorder %s26, 0
      %p115 = por %p113, %p114
      %p116 = scmp.ne.s32.totalorder %s102, %s103
      %p117 = scmp.eq.s32.totalorder %s27, 1
      %p118 = por %p116, %p117
      %p120 = scmp.ne.s32.totalorder %s103, %s119
      %p121 = scmp.eq.s32.totalorder %s27, 0
      %p122 = por %p120, %p121
      %s124 = sadd.s32 %s123, 1
      %p127 = scmp.eq.s32.totalorder %s21, 1
      %p128 = scmp.ne.s32.totalorder %s123, %s125
      %p129 = scmp.eq.s32.totalorder %s21, 0
      %p130 = por %p128, %p129
      %p131 = scmp.ne.s32.totalorder %s123, %s125
      %p132 = scmp.eq.s32.totalorder %s26, 1
      %p133 = por %p131, %p132
      %p134 = scmp.ne.s32.totalorder %s125, %s126
      %p135 = scmp.eq.s32.totalorder %s26, 0
      %p136 = por %p134, %p135
      %p137 = scmp.ne.s32.totalorder %s125, %s126
      %p138 = scmp.eq.s32.totalorder %s27, 1
      %p139 = por %p137, %p138
      %p141 = scmp.ne.s32.totalorder %s126, %s140
      %p142 = scmp.eq.s32.totalorder %s27, 0
      %p143 = por %p141, %p142
      %s145 = sadd.s32 %s144, 1
      %p148 = scmp.eq.s32.totalorder %s21, 1
      %p149 = scmp.ne.s32.totalorder %s144, %s146
      %p150 = scmp.eq.s32.totalorder %s21, 0
      %p151 = por %p149, %p150
      %p152 = scmp.ne.s32.totalorder %s144, %s146
      %p153 = scmp.eq.s32.totalorder %s26, 1
      %p154 = por %p152, %p153
      %p155 = scmp.ne.s32.totalorder %s146, %s147
      %p156 = scmp.eq.s32.totalorder %s26, 0
      %p157 = por %p155, %p156
      %p158 = scmp.ne.s32.totalorder %s146, %s147
      %p159 = scmp.eq.s32.totalorder %s27, 1
      %p160 = por %p158, %p159
      %p162 = scmp.ne.s32.totalorder %s147, %s161
      %p163 = scmp.eq.s32.totalorder %s27, 0
      %p164 = por %p162, %p163
      %s166 = sadd.s32 %s165, 1
      %p169 = scmp.eq.s32.totalorder %s21, 1
      %p170 = scmp.ne.s32.totalorder %s165, %s167
      %p171 = scmp.eq.s32.totalorder %s21, 0
      %p172 = por %p170, %p171
      %p173 = scmp.ne.s32.totalorder %s165, %s167
      %p174 = scmp.eq.s32.totalorder %s26, 1
      %p175 = por %p173, %p174
      %p176 = scmp.ne.s32.totalorder %s167, %s168
      %p177 = scmp.eq.s32.totalorder %s26, 0
      %p178 = por %p176, %p177
      %p179 = scmp.ne.s32.totalorder %s167, %s168
      %p180 = scmp.eq.s32.totalorder %s27, 1
      %p181 = por %p179, %p180
      %p183 = scmp.ne.s32.totalorder %s168, %s182
      %p184 = scmp.eq.s32.totalorder %s27, 0
      %p185 = por %p183, %p184
      %s187 = sadd.s32 %s186, 1
      %p190 = scmp.eq.s32.totalorder %s21, 1
      %p191 = scmp.ne.s32.totalorder %s186, %s188
      %p192 = scmp.eq.s32.totalorder %s21, 0
      %p193 = por %p191, %p192
      %p194 = scmp.ne.s32.totalorder %s186, %s188
      %p195 = scmp.eq.s32.totalorder %s26, 1
      %p196 = por %p194, %p195
      %p197 = scmp.ne.s32.totalorder %s188, %s189
      %p198 = scmp.eq.s32.totalorder %s26, 0
      %p199 = por %p197, %p198
      %p200 = scmp.ne.s32.totalorder %s188, %s189
      %p201 = scmp.eq.s32.totalorder %s27, 1
      %p202 = por %p200, %p201
      %p204 = scmp.ne.s32.totalorder %s189, %s203
      %p205 = scmp.eq.s32.totalorder %s27, 0
      %p206 = por %p204, %p205
      %s207 = ssub.s32 %s28, %s40
      %p208 = scmp.eq.s32.totalorder %s207, 0
      %s210 = sadd.s32 %s209, 1
      %s211 = scalar_select %p208, %s209, %s210
      %p214 = pneg %p208
      %p215 = scmp.eq.s32.totalorder %s21, 1
      %p216 = por %p214, %p215
      %p217 = scmp.ne.s32.totalorder %s209, %s212
      %p218 = scmp.eq.s32.totalorder %s21, 0
      %p219 = por %p217, %p218
      %p220 = scmp.ne.s32.totalorder %s209, %s212
      %p221 = scmp.eq.s32.totalorder %s26, 1
      %p222 = por %p220, %p221
      %p223 = scmp.ne.s32.totalorder %s212, %s213
      %p224 = scmp.eq.s32.totalorder %s26, 0
      %p225 = por %p223, %p224
      %p226 = scmp.ne.s32.totalorder %s212, %s213
      %p227 = scmp.eq.s32.totalorder %s27, 1
      %p228 = por %p226, %p227
      %p230 = scmp.ne.s32.totalorder %s213, %s229
      %p231 = scmp.eq.s32.totalorder %s27, 0
      %p232 = por %p230, %p231
      %p233 = scmp.le.s32.totalorder 1, %s21
      %p234 = scmp.lt.s32.totalorder %s21, 3
      %p235 = pnand %p233, %p234
      %p236 = pneg %p235
      // Predicated region
      $region9: #{tpu_custom_call.1} parent=5 // pred_check
        _
      $region10: #{tpu_custom_call.1} parent=5 // pred_check_branch
        %238 = sbr.rel (%p235) target = $region12
      $region11: #{tpu_custom_call.1} parent=5 // pred_region
        %s239 = ssub.s32 %s21, 1
        // Predicated region
        $region13: #{tpu_custom_call.1} parent=11 // pred_check
          %p240 = pneg %p115
        $region14: #{tpu_custom_call.1} parent=11 // pred_check_branch
          %242 = sbr.rel (%p240) target = $region16
        $region15: #{tpu_custom_call.1} parent=11 // pred_region
          %s243 = smul.u32 2, %s30
          %s245 = ssub.s32 256, 256
          %246 = vsyncadd [#allocation6], %s245
          %s247 = smul.addr %s243, 128
          %s248 = scalar_lea.hbm %s2, %s247
          %s249 = sshll.u32 [#allocation7], 4
          %s250 = int_to_ptr.vmem [resolvable:$true] %s249
          %255 = dma.hbm_to_vmem [thread:$0]  %s248, 256, %s250, [#allocation6], 128, 128, 8
        $region16: #{tpu_custom_call.1} parent=11 // pred_fallthru
          _
        // Predicated region
        $region17: #{tpu_custom_call.1} parent=11 // pred_check
          %p256 = pneg %p136
        $region18: #{tpu_custom_call.1} parent=11 // pred_check_branch
          %258 = sbr.rel (%p256) target = $region20
        $region19: #{tpu_custom_call.1} parent=11 // pred_region
          %s260 = ssub.s32 5120, 5120
          %261 = vsyncadd [#allocation9], %s260
          %s262 = sshll.u32 [#allocation8], 4
          %s263 = int_to_ptr.vmem [resolvable:$true] %s262
          %268 = dma.hbm_to_vmem [thread:$0]  %s3, 5120, %s263, [#allocation9], 320, 320, 20
        $region20: #{tpu_custom_call.1} parent=11 // pred_fallthru
          _
        // Predicated region
        $region21: #{tpu_custom_call.1} parent=11 // pred_check
          %p269 = pneg %p157
        $region22: #{tpu_custom_call.1} parent=11 // pred_check_branch
          %271 = sbr.rel (%p269) target = $region24
        $region23: #{tpu_custom_call.1} parent=11 // pred_region
          _
        $region24: #{tpu_custom_call.1} parent=11 // pred_fallthru
          _
        // Predicated region
        $region25: #{tpu_custom_call.1} parent=11 // pred_check
          %p272 = pneg %p178
        $region26: #{tpu_custom_call.1} parent=11 // pred_check_branch
          %274 = sbr.rel (%p272) target = $region28
        $region27: #{tpu_custom_call.1} parent=11 // pred_region
          %s276 = ssub.s32 6144, 6144
          %277 = vsyncadd [#allocation9], %s276
          %s278 = sshll.u32 [#allocation10], 4
          %s279 = int_to_ptr.vmem [resolvable:$true] %s278
          %284 = dma.hbm_to_vmem [thread:$0]  %s5, 6144, %s279, [#allocation9], 192, 192, 12
        $region28: #{tpu_custom_call.1} parent=11 // pred_fallthru
          _
        // Predicated region
        $region29: #{tpu_custom_call.1} parent=11 // pred_check
          %p285 = pneg %p199
        $region30: #{tpu_custom_call.1} parent=11 // pred_check_branch
          %287 = sbr.rel (%p285) target = $region32
        $region31: #{tpu_custom_call.1} parent=11 // pred_region
          _
        $region32: #{tpu_custom_call.1} parent=11 // pred_fallthru
          _
      $region12: #{tpu_custom_call.1} parent=5 // pred_fallthru
        _
      %p288 = scmp.lt.s32.totalorder %s21, 2
      // Predicated region
      $region33: #{tpu_custom_call.1} parent=5 // pred_check
        %p289 = pneg %p288
      $region34: #{tpu_custom_call.1} parent=5 // pred_check_branch
        %291 = sbr.rel (%p289) target = $region36
      $region35: #{tpu_custom_call.1} parent=5 // pred_region
        // Predicated region
        $region37: #{tpu_custom_call.1} parent=35 // pred_check
          %p292 = pneg %p55
        $region38: #{tpu_custom_call.1} parent=35 // pred_check_branch
          %294 = sbr.rel (%p292) target = $region40
        $region39: #{tpu_custom_call.1} parent=35 // pred_region
          %s295 = sand.u32 %s45, 1
          %s296 = scalar_lea.sflag [#allocation3], %s295
          %s297 = sand.u32 %s45, 1
          %s298 = smul.addr %s297, 8
          %s299 = scalar_lea.vmem [#allocation2], %s298
          %s300 = smul.u32 2, %s28
          %s302 = ssub.s32 128, 128
          %303 = vsyncadd %s296, %s302
          %s304 = smul.addr %s29, 2
          %s305 = sadd.s32 %s300, %s304
          %s306 = smul.addr %s305, 64
          %s307 = scalar_lea.hbm %s0, %s306
          %s308 = sshll.u32 %s299, 4
          %s309 = int_to_ptr.vmem [resolvable:$true] %s308
          %314 = dma.hbm_to_vmem [thread:$0]  %s307, 128, %s309, %s296, 64, 64, 4
        $region40: #{tpu_custom_call.1} parent=35 // pred_fallthru
          _
        // Predicated region
        $region41: #{tpu_custom_call.1} parent=35 // pred_check
          %p315 = pneg %p83
        $region42: #{tpu_custom_call.1} parent=35 // pred_check_branch
          %317 = sbr.rel (%p315) target = $region44
        $region43: #{tpu_custom_call.1} parent=35 // pred_region
          %s318 = sand.u32 %s21, 1
          %s319 = scalar_lea.sflag [#allocation6], %s318
          %s320 = sand.u32 %s73, 1
          %s321 = smul.addr %s320, 8
          %s322 = scalar_lea.vmem [#allocation5], %s321
          %s323 = smul.u32 2, %s28
          %s325 = ssub.s32 128, 128
          %326 = vsyncadd %s319, %s325
          %s327 = smul.addr %s29, 2
          %s328 = sadd.s32 %s323, %s327
          %s329 = smul.addr %s328, 64
          %s330 = scalar_lea.hbm %s1, %s329
          %s331 = sshll.u32 %s322, 4
          %s332 = int_to_ptr.vmem [resolvable:$true] %s331
          %337 = dma.hbm_to_vmem [thread:$0]  %s330, 128, %s332, %s319, 64, 64, 4
        $region44: #{tpu_custom_call.1} parent=35 // pred_fallthru
          _
      $region36: #{tpu_custom_call.1} parent=5 // pred_fallthru
        _
      %p338 = scmp.le.s32.totalorder 1, %s21
      %p339 = scmp.lt.s32.totalorder %s21, 3
      %p340 = pnand %p338, %p339
      %p341 = pneg %p340
      // Predicated region
      $region45: #{tpu_custom_call.1} parent=5 // pred_check
        _
      $region46: #{tpu_custom_call.1} parent=5 // pred_check_branch
        %343 = sbr.rel (%p340) target = $region48
      $region47: #{tpu_custom_call.1} parent=5 // pred_region
        %s344 = ssub.s32 %s21, 1
        %s345 = sand.u32 %s48, 1
        %s346 = scalar_lea.sflag [#allocation3], %s345
        %s347 = sand.u32 %s48, 1
        %s348 = smul.addr %s347, 8
        %s349 = scalar_lea.vmem [#allocation2], %s348
        // Predicated region
        $region49: #{tpu_custom_call.1} parent=47 // pred_check
          %p350 = pneg %p61
        $region50: #{tpu_custom_call.1} parent=47 // pred_check_branch
          %352 = sbr.rel (%p350) target = $region52
        $region51: #{tpu_custom_call.1} parent=47 // pred_region
          %353 = dma.done %s346, 128
        $region52: #{tpu_custom_call.1} parent=47 // pred_fallthru
          _
        %s354 = sand.u32 %s26, 1
        %s355 = scalar_lea.sflag [#allocation6], %s354
        %s356 = sand.u32 %s76, 1
        %s357 = smul.addr %s356, 8
        %s358 = scalar_lea.vmem [#allocation5], %s357
        // Predicated region
        $region53: #{tpu_custom_call.1} parent=47 // pred_check
          %p359 = pneg %p89
        $region54: #{tpu_custom_call.1} parent=47 // pred_check_branch
          %361 = sbr.rel (%p359) target = $region56
        $region55: #{tpu_custom_call.1} parent=47 // pred_region
          %362 = dma.done %s355, 128
        $region56: #{tpu_custom_call.1} parent=47 // pred_fallthru
          _
        // Predicated region
        $region57: #{tpu_custom_call.1} parent=47 // pred_check
          %p363 = pneg %p115
        $region58: #{tpu_custom_call.1} parent=47 // pred_check_branch
          %365 = sbr.rel (%p363) target = $region60
        $region59: #{tpu_custom_call.1} parent=47 // pred_region
          %366 = dma.done [#allocation6], 256
        $region60: #{tpu_custom_call.1} parent=47 // pred_fallthru
          _
        // Predicated region
        $region61: #{tpu_custom_call.1} parent=47 // pred_check
          %p367 = pneg %p136
        $region62: #{tpu_custom_call.1} parent=47 // pred_check_branch
          %369 = sbr.rel (%p367) target = $region64
        $region63: #{tpu_custom_call.1} parent=47 // pred_region
          %370 = dma.done [#allocation9], 5120
        $region64: #{tpu_custom_call.1} parent=47 // pred_fallthru
          _
        // Predicated region
        $region65: #{tpu_custom_call.1} parent=47 // pred_check
          %p371 = pneg %p178
        $region66: #{tpu_custom_call.1} parent=47 // pred_check_branch
          %373 = sbr.rel (%p371) target = $region68
        $region67: #{tpu_custom_call.1} parent=47 // pred_region
          %374 = dma.done [#allocation9], 6144
        $region68: #{tpu_custom_call.1} parent=47 // pred_fallthru
          _
        %s375 = sand.u32 %s48, 1
        %s376 = scalar_lea.sflag [#allocation3], %s375
        %s377 = sand.u32 %s48, 1
        %s378 = smul.addr %s377, 8
        %s379 = scalar_lea.vmem [#allocation2], %s378
        %p380 = pneg %p61
        %p381 = pneg %p58
        %s382 = sand.u32 %s26, 1
        %s383 = scalar_lea.sflag [#allocation6], %s382
        %s384 = sand.u32 %s76, 1
        %s385 = smul.addr %s384, 8
        %s386 = scalar_lea.vmem [#allocation5], %s385
        %p387 = pneg %p89
        %p388 = pneg %p86
        %p389 = pneg %p115
        %p390 = pneg %p112
        %p391 = pneg %p136
        %p392 = pneg %p133
        %p393 = pneg %p157
        %p394 = pneg %p154
        %p395 = pneg %p178
        %p396 = pneg %p175
        %p397 = pneg %p199
        %p398 = pneg %p196
        %p399 = pneg %p225
        %p400 = pneg %p222
        %s401 = smul.u32 2, %s30
        %s402 = smul.u32 2, %s30
        %s403 = smul.u32 2, %s30
        %s404 = smul.u32 2, %s30
        %p406 = scmp.eq.s32.totalorder %s31, 0
        // Predicated region
        $region69: #{tpu_custom_call.1} parent=47 // pred_check
          %p407 = pneg %p406
        $region70: #{tpu_custom_call.1} parent=47 // pred_check_branch
          %409 = sbr.rel (%p407) target = $region72
        $region71: #{tpu_custom_call.1} parent=47 // pred_region
          %v410 = vld [vmem:[#allocation7] sm:$0xff]
          %v411 = vld [vmem:[#allocation7 + $0x8] sm:$0xff]
          %412 = vst [vmem:[#allocation11] sm:$0xff] %v410
          %413 = vst [vmem:[#allocation11 + $0x8] sm:$0xff] %v411
        $region72: #{tpu_custom_call.1} parent=47 // pred_fallthru
          _
        %v414 = vld [vmem:[%s349] sm:$0xf]
        %v415 = vld [vmem:[%s349 + $0x4] sm:$0xf]
        %v416 = vld [vmem:[%s358] sm:$0xf]
        %v417 = vld [vmem:[%s358 + $0x4] sm:$0xf]
        %v418 = vld [vmem:[#allocation11] sm:$0xff]
        %v419 = vld [vmem:[#allocation11 + $0x8] sm:$0xff]
        %v420 = vpack.c.bf16 %v419, %v418
        %v421 = vld [vmem:[#allocation8] sm:$0xff]
        %v422 = vld [vmem:[#allocation8 + $0x8] sm:$0xff]
        %v423 = vld [vmem:[#allocation8 + $0x10] sm:$0xf]
        %v424 = vld [vmem:[#allocation8 + $0x14] sm:$0xff]
        %v425 = vld [vmem:[#allocation8 + $0x1c] sm:$0xff]
        %v426 = vld [vmem:[#allocation8 + $0x24] sm:$0xf]
        %v427 = vld [vmem:[#allocation8 + $0x28] sm:$0xff]
        %v428 = vld [vmem:[#allocation8 + $0x30] sm:$0xff]
        %v429 = vld [vmem:[#allocation8 + $0x38] sm:$0xf]
        %v430 = vld [vmem:[#allocation8 + $0x3c] sm:$0xff]
        %v431 = vld [vmem:[#allocation8 + $0x44] sm:$0xff]
        %v432 = vld [vmem:[#allocation8 + $0x4c] sm:$0xf]
        %v433 = vld [vmem:[#allocation8 + $0x50] sm:$0xff]
        %v434 = vld [vmem:[#allocation8 + $0x58] sm:$0xff]
        %v435 = vld [vmem:[#allocation8 + $0x60] sm:$0xf]
        %v436 = vld [vmem:[#allocation8 + $0x64] sm:$0xff]
        %v437 = vld [vmem:[#allocation8 + $0x6c] sm:$0xff]
        %v438 = vld [vmem:[#allocation8 + $0x74] sm:$0xf]
        %v439 = vld [vmem:[#allocation8 + $0x78] sm:$0xff]
        %v440 = vld [vmem:[#allocation8 + $0x80] sm:$0xff]
        %v441 = vld [vmem:[#allocation8 + $0x88] sm:$0xf]
        %v442 = vld [vmem:[#allocation8 + $0x8c] sm:$0xff]
        %v443 = vld [vmem:[#allocation8 + $0x94] sm:$0xff]
        %v444 = vld [vmem:[#allocation8 + $0x9c] sm:$0xf]
        %v445 = vld [vmem:[#allocation8 + $0xa0] sm:$0xff]
        %v446 = vld [vmem:[#allocation8 + $0xa8] sm:$0xff]
        %v447 = vld [vmem:[#allocation8 + $0xb0] sm:$0xf]
        %v448 = vld [vmem:[#allocation8 + $0xb4] sm:$0xff]
        %v449 = vld [vmem:[#allocation8 + $0xbc] sm:$0xff]
        %v450 = vld [vmem:[#allocation8 + $0xc4] sm:$0xf]
        %v451 = vld [vmem:[#allocation8 + $0xc8] sm:$0xff]
        %v452 = vld [vmem:[#allocation8 + $0xd0] sm:$0xff]
        %v453 = vld [vmem:[#allocation8 + $0xd8] sm:$0xf]
        %v454 = vld [vmem:[#allocation8 + $0xdc] sm:$0xff]
        %v455 = vld [vmem:[#allocation8 + $0xe4] sm:$0xff]
        %v456 = vld [vmem:[#allocation8 + $0xec] sm:$0xf]
        %v457 = vld [vmem:[#allocation8 + $0xf0] sm:$0xff]
        %v458 = vld [vmem:[#allocation8 + $0xf8] sm:$0xff]
        %v459 = vld [vmem:[#allocation8 + $0x100] sm:$0xf]
        %v460 = vld [vmem:[#allocation8 + $0x104] sm:$0xff]
        %v461 = vld [vmem:[#allocation8 + $0x10c] sm:$0xff]
        %v462 = vld [vmem:[#allocation8 + $0x114] sm:$0xf]
        %v463 = vld [vmem:[#allocation8 + $0x118] sm:$0xff]
        %v464 = vld [vmem:[#allocation8 + $0x120] sm:$0xff]
        %v465 = vld [vmem:[#allocation8 + $0x128] sm:$0xf]
        %v466 = vld [vmem:[#allocation8 + $0x12c] sm:$0xff]
        %v467 = vld [vmem:[#allocation8 + $0x134] sm:$0xff]
        %v468 = vld [vmem:[#allocation8 + $0x13c] sm:$0xf]
        %v469 = vld [vmem:[%s4] sm:$0x1f]
        %v471 = vlaneseq
        %v472 = vshrl.u32 %v471, 7
        %v473 = vsub.s32 0, %v472
        %v474 = vrot.slane %v469, %v473
        %v475 = vlaneseq
        %v476 = vshrl.u32 %v475, 7
        %v477 = vsub.s32 1, %v476
        %v478 = vrot.slane %v469, %v477
        %v479 = vlaneseq
        %v480 = vshrl.u32 %v479, 7
        %v481 = vsub.s32 2, %v480
        %v482 = vrot.slane %v469, %v481
        %v483 = vlaneseq
        %v484 = vshrl.u32 %v483, 7
        %v485 = vsub.s32 3, %v484
        %v486 = vrot.slane %v469, %v485
        %v487 = vlaneseq
        %v488 = vshrl.u32 %v487, 7
        %v489 = vsub.s32 4, %v488
        %v490 = vrot.slane %v469, %v489
        %v544 = vunpack.c.l.b16 %v421
        %v545 = vunpack.c.h.b16 %v421
        %v546 = vunpack.c.l.b16 %v422
        %v547 = vunpack.c.h.b16 %v422
        %v548 = vunpack.c.l.b16 %v423
        %v549 = vunpack.c.l.b16 %v424
        %v550 = vunpack.c.h.b16 %v424
        %v551 = vunpack.c.l.b16 %v425
        %v552 = vunpack.c.h.b16 %v425
        %v553 = vunpack.c.l.b16 %v426
        %v554 = vunpack.c.l.b16 %v427
        %v555 = vunpack.c.h.b16 %v427
        %v556 = vunpack.c.l.b16 %v428
        %v557 = vunpack.c.h.b16 %v428
        %v558 = vunpack.c.l.b16 %v429
        %v559 = vunpack.c.l.b16 %v430
        %v560 = vunpack.c.h.b16 %v430
        %v561 = vunpack.c.l.b16 %v431
        %v562 = vunpack.c.h.b16 %v431
        %v563 = vunpack.c.l.b16 %v432
        %v564 = vunpack.c.l.b16 %v433
        %v565 = vunpack.c.h.b16 %v433
        %v566 = vunpack.c.l.b16 %v434
        %v567 = vunpack.c.h.b16 %v434
        %v568 = vunpack.c.l.b16 %v435
        %v569 = vunpack.c.l.b16 %v436
        %v570 = vunpack.c.h.b16 %v436
        %v571 = vunpack.c.l.b16 %v437
        %v572 = vunpack.c.h.b16 %v437
        %v573 = vunpack.c.l.b16 %v438
        %v574 = vunpack.c.l.b16 %v439
        %v575 = vunpack.c.h.b16 %v439
        %v576 = vunpack.c.l.b16 %v440
        %v577 = vunpack.c.h.b16 %v440
        %v578 = vunpack.c.l.b16 %v441
        %v579 = vunpack.c.l.b16 %v442
        %v580 = vunpack.c.h.b16 %v442
        %v581 = vunpack.c.l.b16 %v443
        %v582 = vunpack.c.h.b16 %v443
        %v583 = vunpack.c.l.b16 %v444
        %v584 = vunpack.c.l.b16 %v445
        %v585 = vunpack.c.h.b16 %v445
        %v586 = vunpack.c.l.b16 %v446
        %v587 = vunpack.c.h.b16 %v446
        %v588 = vunpack.c.l.b16 %v447
        %v589 = vunpack.c.l.b16 %v448
        %v590 = vunpack.c.h.b16 %v448
        %v591 = vunpack.c.l.b16 %v449
        %v592 = vunpack.c.h.b16 %v449
        %v593 = vunpack.c.l.b16 %v450
        %v594 = vunpack.c.l.b16 %v451
        %v595 = vunpack.c.h.b16 %v451
        %v596 = vunpack.c.l.b16 %v452
        %v597 = vunpack.c.h.b16 %v452
        %v598 = vunpack.c.l.b16 %v453
        %v599 = vunpack.c.l.b16 %v454
        %v600 = vunpack.c.h.b16 %v454
        %v601 = vunpack.c.l.b16 %v455
        %v602 = vunpack.c.h.b16 %v455
        %v603 = vunpack.c.l.b16 %v456
        %v604 = vunpack.c.l.b16 %v457
        %v605 = vunpack.c.h.b16 %v457
        %v606 = vunpack.c.l.b16 %v458
        %v607 = vunpack.c.h.b16 %v458
        %v608 = vunpack.c.l.b16 %v459
        %v609 = vunpack.c.l.b16 %v460
        %v610 = vunpack.c.h.b16 %v460
        %v611 = vunpack.c.l.b16 %v461
        %v612 = vunpack.c.h.b16 %v461
        %v613 = vunpack.c.l.b16 %v462
        %v614 = vunpack.c.l.b16 %v463
        %v615 = vunpack.c.h.b16 %v463
        %v616 = vunpack.c.l.b16 %v464
        %v617 = vunpack.c.h.b16 %v464
        %v618 = vunpack.c.l.b16 %v465
        %v619 = vunpack.c.l.b16 %v466
        %v620 = vunpack.c.h.b16 %v466
        %v621 = vunpack.c.l.b16 %v467
        %v622 = vunpack.c.h.b16 %v467
        %v623 = vunpack.c.l.b16 %v468
        %v624 = vpack.c.b16 %v549, %v544
        %v625 = vpack.c.b16 %v550, %v545
        %v626 = vpack.c.b16 %v551, %v546
        %v627 = vpack.c.b16 %v552, %v547
        %v628 = vpack.c.b16 %v553, %v548
        %v629 = vpack.c.b16 %v559, %v554
        %v630 = vpack.c.b16 %v560, %v555
        %v631 = vpack.c.b16 %v561, %v556
        %v632 = vpack.c.b16 %v562, %v557
        %v633 = vpack.c.b16 %v563, %v558
        %v634 = vpack.c.b16 %v569, %v564
        %v635 = vpack.c.b16 %v570, %v565
        %v636 = vpack.c.b16 %v571, %v566
        %v637 = vpack.c.b16 %v572, %v567
        %v638 = vpack.c.b16 %v573, %v568
        %v639 = vpack.c.b16 %v579, %v574
        %v640 = vpack.c.b16 %v580, %v575
        %v641 = vpack.c.b16 %v581, %v576
        %v642 = vpack.c.b16 %v582, %v577
        %v643 = vpack.c.b16 %v583, %v578
        %v644 = vpack.c.b16 %v589, %v584
        %v645 = vpack.c.b16 %v590, %v585
        %v646 = vpack.c.b16 %v591, %v586
        %v647 = vpack.c.b16 %v592, %v587
        %v648 = vpack.c.b16 %v593, %v588
        %v649 = vpack.c.b16 %v599, %v594
        %v650 = vpack.c.b16 %v600, %v595
        %v651 = vpack.c.b16 %v601, %v596
        %v652 = vpack.c.b16 %v602, %v597
        %v653 = vpack.c.b16 %v603, %v598
        %v654 = vpack.c.b16 %v609, %v604
        %v655 = vpack.c.b16 %v610, %v605
        %v656 = vpack.c.b16 %v611, %v606
        %v657 = vpack.c.b16 %v612, %v607
        %v658 = vpack.c.b16 %v613, %v608
        %v659 = vpack.c.b16 %v619, %v614
        %v660 = vpack.c.b16 %v620, %v615
        %v661 = vpack.c.b16 %v621, %v616
        %v662 = vpack.c.b16 %v622, %v617
        %v663 = vpack.c.b16 %v623, %v618
        %704 = vmatprep.subr.bf16.mxu0 %v660
        %705 = vmatpush1.bf16.msra.mxu0 %v659
        %706 = vmatprep.subr.bf16.mxu0 %v655
        %707 = vmatpush1.bf16.msra.mxu0 %v654
        %708 = vmatprep.subr.bf16.mxu0 %v650
        %709 = vmatpush1.bf16.msra.mxu0 %v649
        %710 = vmatprep.subr.bf16.mxu0 %v645
        %711 = vmatpush1.bf16.msra.mxu0 %v644
        %712 = vmatprep.subr.bf16.mxu0 %v640
        %713 = vmatpush1.bf16.msra.mxu0 %v639
        %714 = vmatprep.subr.bf16.mxu0 %v635
        %715 = vmatpush1.bf16.msra.mxu0 %v634
        %716 = vmatprep.subr.bf16.mxu0 %v630
        %717 = vmatpush1.bf16.msra.mxu0 %v629
        %718 = vmatprep.subr.bf16.mxu0 %v625
        %719 = vmatpush1.bf16.msra.mxu0 %v624
        %720 = vmatprep.subr.bf16.mxu0 0
        %721 = vmatpush2.bf16.msra.mxu0 0
        %722 = vmatprep.subr.bf16.mxu0 0
        %723 = vmatpush2.bf16.msra.mxu0 0
        %724 = vmatprep.subr.bf16.mxu0 0
        %725 = vmatpush2.bf16.msra.mxu0 0
        %726 = vmatprep.subr.bf16.mxu0 0
        %727 = vmatpush2.bf16.msra.mxu0 0
        %728 = vmatprep.subr.bf16.mxu0 0
        %729 = vmatpush2.bf16.msra.mxu0 0
        %730 = vmatprep.subr.bf16.mxu0 0
        %731 = vmatpush2.bf16.msra.mxu0 0
        %732 = vmatprep.subr.bf16.mxu0 0
        %733 = vmatpush2.bf16.msra.mxu0 0
        %734 = vmatprep.subr.bf16.mxu0 0
        %735 = vmatpush2.bf16.msra.mxu0 0
        %736 = vmatprep.mubr.bf16.mxu0 0
        %737 = vmatmul.mubr.bf16.gmra.mxu0 %v420
        %v738 = vpop.f32.mrf.mxu0
        %v739 = vadd.f32 %v474, %v738
        %v740 = vpop.f32.mrf.mxu0
        %v741 = vadd.f32 %v478, %v740
        %v742 = vpop.f32.mrf.mxu0
        %v743 = vadd.f32 %v474, %v742
        %v744 = vpop.f32.mrf.mxu0
        %v745 = vadd.f32 %v478, %v744
        %746 = vdwg.mxu0
        %747 = vmatprep.subr.bf16.mxu0 %v662
        %748 = vmatpush1.bf16.msra.mxu0 %v661
        %749 = vmatprep.subr.bf16.mxu0 %v657
        %750 = vmatpush1.bf16.msra.mxu0 %v656
        %751 = vmatprep.subr.bf16.mxu0 %v652
        %752 = vmatpush1.bf16.msra.mxu0 %v651
        %753 = vmatprep.subr.bf16.mxu0 %v647
        %754 = vmatpush1.bf16.msra.mxu0 %v646
        %755 = vmatprep.subr.bf16.mxu0 %v642
        %756 = vmatpush1.bf16.msra.mxu0 %v641
        %757 = vmatprep.subr.bf16.mxu0 %v637
        %758 = vmatpush1.bf16.msra.mxu0 %v636
        %759 = vmatprep.subr.bf16.mxu0 %v632
        %760 = vmatpush1.bf16.msra.mxu0 %v631
        %761 = vmatprep.subr.bf16.mxu0 %v627
        %762 = vmatpush1.bf16.msra.mxu0 %v626
        %763 = vmatprep.subr.bf16.mxu0 0
        %764 = vmatpush2.bf16.msra.mxu0 0
        %765 = vmatprep.subr.bf16.mxu0 0
        %766 = vmatpush2.bf16.msra.mxu0 0
        %767 = vmatprep.subr.bf16.mxu0 0
        %768 = vmatpush2.bf16.msra.mxu0 0
        %769 = vmatprep.subr.bf16.mxu0 0
        %770 = vmatpush2.bf16.msra.mxu0 0
        %771 = vmatprep.subr.bf16.mxu0 0
        %772 = vmatpush2.bf16.msra.mxu0 0
        %773 = vmatprep.subr.bf16.mxu0 0
        %774 = vmatpush2.bf16.msra.mxu0 0
        %775 = vmatprep.subr.bf16.mxu0 0
        %776 = vmatpush2.bf16.msra.mxu0 0
        %777 = vmatprep.subr.bf16.mxu0 0
        %778 = vmatpush2.bf16.msra.mxu0 0
        %779 = vmatprep.mubr.bf16.mxu0 0
        %780 = vmatmul.mubr.bf16.gmra.mxu0 %v420
        %v781 = vpop.f32.mrf.mxu0
        %v782 = vadd.f32 %v482, %v781
        %v783 = vpop.f32.mrf.mxu0
        %v784 = vadd.f32 %v486, %v783
        %v785 = vpop.f32.mrf.mxu0
        %v786 = vadd.f32 %v482, %v785
        %v787 = vpop.f32.mrf.mxu0
        %v788 = vadd.f32 %v486, %v787
        %789 = vdwg.mxu0
        %790 = vmatprep.subr.bf16.mxu0 0
        %791 = vmatpush1.bf16.msra.mxu0 %v663
        %792 = vmatprep.subr.bf16.mxu0 0
        %793 = vmatpush1.bf16.msra.mxu0 %v658
        %794 = vmatprep.subr.bf16.mxu0 0
        %795 = vmatpush1.bf16.msra.mxu0 %v653
        %796 = vmatprep.subr.bf16.mxu0 0
        %797 = vmatpush1.bf16.msra.mxu0 %v648
        %798 = vmatprep.subr.bf16.mxu0 0
        %799 = vmatpush1.bf16.msra.mxu0 %v643
        %800 = vmatprep.subr.bf16.mxu0 0
        %801 = vmatpush1.bf16.msra.mxu0 %v638
        %802 = vmatprep.subr.bf16.mxu0 0
        %803 = vmatpush1.bf16.msra.mxu0 %v633
        %804 = vmatprep.subr.bf16.mxu0 0
        %805 = vmatpush1.bf16.msra.mxu0 %v628
        %806 = vmatprep.subr.bf16.mxu0 0
        %807 = vmatpush2.bf16.msra.mxu0 0
        %808 = vmatprep.subr.bf16.mxu0 0
        %809 = vmatpush2.bf16.msra.mxu0 0
        %810 = vmatprep.subr.bf16.mxu0 0
        %811 = vmatpush2.bf16.msra.mxu0 0
        %812 = vmatprep.subr.bf16.mxu0 0
        %813 = vmatpush2.bf16.msra.mxu0 0
        %814 = vmatprep.subr.bf16.mxu0 0
        %815 = vmatpush2.bf16.msra.mxu0 0
        %816 = vmatprep.subr.bf16.mxu0 0
        %817 = vmatpush2.bf16.msra.mxu0 0
        %818 = vmatprep.subr.bf16.mxu0 0
        %819 = vmatpush2.bf16.msra.mxu0 0
        %820 = vmatprep.subr.bf16.mxu0 0
        %821 = vmatpush2.bf16.msra.mxu0 0
        %822 = vmatprep.mubr.bf16.mxu0 0
        %823 = vmatmul.mubr.bf16.gmra.mxu0 %v420
        %v824 = vpop.f32.mrf.mxu0
        %v825 = vadd.f32 %v490, %v824
        %v826 = vpop.f32.mrf.mxu0
        %v827 = vpop.f32.mrf.mxu0
        %v828 = vadd.f32 %v490, %v827
        %v829 = vpop.f32.mrf.mxu0
        %830 = vdwg.mxu0
        %v831 = vpack.c.bf16 %v739, %v739
        %v832 = vpack.c.bf16 %v743, %v743
        %v833 = vpack.c.bf16 %v741, %v741
        %v834 = vpack.c.bf16 %v745, %v745
        %vm835 = vcmask 64512
        %v837 = vsel %vm835, %v414, 0
        %vm839 = vcmask 1043456
        %v841 = vsel %vm839, %v831, 0
        %843 = vmatprep.subr.bf16.mxu0 0
        %844 = vmatpush1.bf16.msra.mxu0 0
        %845 = vmatprep.subr.bf16.mxu0 0
        %846 = vmatpush1.bf16.msra.mxu0 0
        %847 = vmatprep.subr.bf16.mxu0 0
        %848 = vmatpush1.bf16.msra.mxu0 0
        %849 = vmatprep.subr.bf16.mxu0 0
        %850 = vmatpush1.bf16.msra.mxu0 0
        %851 = vmatprep.subr.bf16.mxu0 0
        %852 = vmatpush1.bf16.msra.mxu0 0
        %853 = vmatprep.subr.bf16.mxu0 0
        %854 = vmatpush1.bf16.msra.mxu0 0
        %855 = vmatprep.subr.bf16.mxu0 0
        %856 = vmatpush1.bf16.msra.mxu0 0
        %857 = vmatprep.subr.bf16.mxu0 0
        %858 = vmatpush1.bf16.msra.mxu0 %v841
        %859 = vmatprep.subr.bf16.mxu0 0
        %860 = vmatpush2.bf16.msra.mxu0 0
        %861 = vmatprep.subr.bf16.mxu0 0
        %862 = vmatpush2.bf16.msra.mxu0 0
        %863 = vmatprep.subr.bf16.mxu0 0
        %864 = vmatpush2.bf16.msra.mxu0 0
        %865 = vmatprep.subr.bf16.mxu0 0
        %866 = vmatpush2.bf16.msra.mxu0 0
        %867 = vmatprep.subr.bf16.mxu0 0
        %868 = vmatpush2.bf16.msra.mxu0 0
        %869 = vmatprep.subr.bf16.mxu0 0
        %870 = vmatpush2.bf16.msra.mxu0 0
        %871 = vmatprep.subr.bf16.mxu0 0
        %872 = vmatpush2.bf16.msra.mxu0 0
        %873 = vmatprep.subr.bf16.mxu0 0
        %874 = vmatpush2.bf16.msra.mxu0 0
        %875 = vmatprep.mubr.bf16.mxu0 0
        %876 = vmatmul.mubr.bf16.gmra.mxu0 %v837
        %v877 = vpop.f32.mrf.mxu0
        %v878 = vadd.f32 0.0, %v877
        %v879 = vpop.f32.mrf.mxu0
        %v880 = vpop.f32.mrf.mxu0
        %v881 = vpop.f32.mrf.mxu0
        %882 = vdwg.mxu0
        %v884 = vsel %vm835, %v415, 0
        %v887 = vsel %vm839, %v832, 0
        %889 = vmatprep.subr.bf16.mxu0 0
        %890 = vmatpush1.bf16.msra.mxu0 0
        %891 = vmatprep.subr.bf16.mxu0 0
        %892 = vmatpush1.bf16.msra.mxu0 0
        %893 = vmatprep.subr.bf16.mxu0 0
        %894 = vmatpush1.bf16.msra.mxu0 0
        %895 = vmatprep.subr.bf16.mxu0 0
        %896 = vmatpush1.bf16.msra.mxu0 0
        %897 = vmatprep.subr.bf16.mxu0 0
        %898 = vmatpush1.bf16.msra.mxu0 0
        %899 = vmatprep.subr.bf16.mxu0 0
        %900 = vmatpush1.bf16.msra.mxu0 0
        %901 = vmatprep.subr.bf16.mxu0 0
        %902 = vmatpush1.bf16.msra.mxu0 0
        %903 = vmatprep.subr.bf16.mxu0 0
        %904 = vmatpush1.bf16.msra.mxu0 %v887
        %905 = vmatprep.subr.bf16.mxu0 0
        %906 = vmatpush2.bf16.msra.mxu0 0
        %907 = vmatprep.subr.bf16.mxu0 0
        %908 = vmatpush2.bf16.msra.mxu0 0
        %909 = vmatprep.subr.bf16.mxu0 0
        %910 = vmatpush2.bf16.msra.mxu0 0
        %911 = vmatprep.subr.bf16.mxu0 0
        %912 = vmatpush2.bf16.msra.mxu0 0
        %913 = vmatprep.subr.bf16.mxu0 0
        %914 = vmatpush2.bf16.msra.mxu0 0
        %915 = vmatprep.subr.bf16.mxu0 0
        %916 = vmatpush2.bf16.msra.mxu0 0
        %917 = vmatprep.subr.bf16.mxu0 0
        %918 = vmatpush2.bf16.msra.mxu0 0
        %919 = vmatprep.subr.bf16.mxu0 0
        %920 = vmatpush2.bf16.msra.mxu0 0
        %921 = vmatprep.mubr.bf16.mxu0 0
        %922 = vmatmul.mubr.bf16.gmra.mxu0 %v884
        %v923 = vpop.f32.mrf.mxu0
        %v924 = vadd.f32 0.0, %v923
        %v925 = vpop.f32.mrf.mxu0
        %v926 = vpop.f32.mrf.mxu0
        %v927 = vpop.f32.mrf.mxu0
        %928 = vdwg.mxu0
        %v930 = vsel %vm835, %v416, 0
        %v933 = vsel %vm839, %v833, 0
        %935 = vmatprep.subr.bf16.mxu0 0
        %936 = vmatpush1.bf16.msra.mxu0 0
        %937 = vmatprep.subr.bf16.mxu0 0
        %938 = vmatpush1.bf16.msra.mxu0 0
        %939 = vmatprep.subr.bf16.mxu0 0
        %940 = vmatpush1.bf16.msra.mxu0 0
        %941 = vmatprep.subr.bf16.mxu0 0
        %942 = vmatpush1.bf16.msra.mxu0 0
        %943 = vmatprep.subr.bf16.mxu0 0
        %944 = vmatpush1.bf16.msra.mxu0 0
        %945 = vmatprep.subr.bf16.mxu0 0
        %946 = vmatpush1.bf16.msra.mxu0 0
        %947 = vmatprep.subr.bf16.mxu0 0
        %948 = vmatpush1.bf16.msra.mxu0 0
        %949 = vmatprep.subr.bf16.mxu0 0
        %950 = vmatpush1.bf16.msra.mxu0 %v933
        %951 = vmatprep.subr.bf16.mxu0 0
        %952 = vmatpush2.bf16.msra.mxu0 0
        %953 = vmatprep.subr.bf16.mxu0 0
        %954 = vmatpush2.bf16.msra.mxu0 0
        %955 = vmatprep.subr.bf16.mxu0 0
        %956 = vmatpush2.bf16.msra.mxu0 0
        %957 = vmatprep.subr.bf16.mxu0 0
        %958 = vmatpush2.bf16.msra.mxu0 0
        %959 = vmatprep.subr.bf16.mxu0 0
        %960 = vmatpush2.bf16.msra.mxu0 0
        %961 = vmatprep.subr.bf16.mxu0 0
        %962 = vmatpush2.bf16.msra.mxu0 0
        %963 = vmatprep.subr.bf16.mxu0 0
        %964 = vmatpush2.bf16.msra.mxu0 0
        %965 = vmatprep.subr.bf16.mxu0 0
        %966 = vmatpush2.bf16.msra.mxu0 0
        %967 = vmatprep.mubr.bf16.mxu0 0
        %968 = vmatmul.mubr.bf16.gmra.mxu0 %v930
        %v969 = vpop.f32.mrf.mxu0
        %v970 = vadd.f32 0.0, %v969
        %v971 = vpop.f32.mrf.mxu0
        %v972 = vpop.f32.mrf.mxu0
        %v973 = vpop.f32.mrf.mxu0
        %974 = vdwg.mxu0
        %v976 = vsel %vm835, %v417, 0
        %v979 = vsel %vm839, %v834, 0
        %981 = vmatprep.subr.bf16.mxu0 0
        %982 = vmatpush1.bf16.msra.mxu0 0
        %983 = vmatprep.subr.bf16.mxu0 0
        %984 = vmatpush1.bf16.msra.mxu0 0
        %985 = vmatprep.subr.bf16.mxu0 0
        %986 = vmatpush1.bf16.msra.mxu0 0
        %987 = vmatprep.subr.bf16.mxu0 0
        %988 = vmatpush1.bf16.msra.mxu0 0
        %989 = vmatprep.subr.bf16.mxu0 0
        %990 = vmatpush1.bf16.msra.mxu0 0
        %991 = vmatprep.subr.bf16.mxu0 0
        %992 = vmatpush1.bf16.msra.mxu0 0
        %993 = vmatprep.subr.bf16.mxu0 0
        %994 = vmatpush1.bf16.msra.mxu0 0
        %995 = vmatprep.subr.bf16.mxu0 0
        %996 = vmatpush1.bf16.msra.mxu0 %v979
        %997 = vmatprep.subr.bf16.mxu0 0
        %998 = vmatpush2.bf16.msra.mxu0 0
        %999 = vmatprep.subr.bf16.mxu0 0
        %1000 = vmatpush2.bf16.msra.mxu0 0
        %1001 = vmatprep.subr.bf16.mxu0 0
        %1002 = vmatpush2.bf16.msra.mxu0 0
        %1003 = vmatprep.subr.bf16.mxu0 0
        %1004 = vmatpush2.bf16.msra.mxu0 0
        %1005 = vmatprep.subr.bf16.mxu0 0
        %1006 = vmatpush2.bf16.msra.mxu0 0
        %1007 = vmatprep.subr.bf16.mxu0 0
        %1008 = vmatpush2.bf16.msra.mxu0 0
        %1009 = vmatprep.subr.bf16.mxu0 0
        %1010 = vmatpush2.bf16.msra.mxu0 0
        %1011 = vmatprep.subr.bf16.mxu0 0
        %1012 = vmatpush2.bf16.msra.mxu0 0
        %1013 = vmatprep.mubr.bf16.mxu0 0
        %1014 = vmatmul.mubr.bf16.gmra.mxu0 %v976
        %v1015 = vpop.f32.mrf.mxu0
        %v1016 = vadd.f32 0.0, %v1015
        %v1017 = vpop.f32.mrf.mxu0
        %v1018 = vpop.f32.mrf.mxu0
        %v1019 = vpop.f32.mrf.mxu0
        %1020 = vdwg.mxu0
        %v1021 = vpack.c.bf16 %v878, %v878
        %v1022 = vpack.c.bf16 %v924, %v924
        %v1023 = vpack.c.bf16 %v970, %v970
        %v1024 = vpack.c.bf16 %v1016, %v1016
        %v1029 = vunpack.c.l.b16 %v1021
        %v1030 = vunpack.c.l.b16 %v1023
        %v1031 = vunpack.c.l.b16 %v1022
        %v1032 = vunpack.c.l.b16 %v1024
        %v1033 = vld [vmem:[#allocation10] sm:$0xff]
        %v1034 = vld [vmem:[#allocation10 + $0x8] sm:$0xf]
        %v1035 = vld [vmem:[#allocation10 + $0xc] sm:$0xff]
        %v1036 = vld [vmem:[#allocation10 + $0x14] sm:$0xf]
        %v1037 = vld [vmem:[#allocation10 + $0x18] sm:$0xff]
        %v1038 = vld [vmem:[#allocation10 + $0x20] sm:$0xf]
        %v1039 = vld [vmem:[#allocation10 + $0x24] sm:$0xff]
        %v1040 = vld [vmem:[#allocation10 + $0x2c] sm:$0xf]
        %v1041 = vld [vmem:[#allocation10 + $0x30] sm:$0xff]
        %v1042 = vld [vmem:[#allocation10 + $0x38] sm:$0xf]
        %v1043 = vld [vmem:[#allocation10 + $0x3c] sm:$0xff]
        %v1044 = vld [vmem:[#allocation10 + $0x44] sm:$0xf]
        %v1045 = vld [vmem:[#allocation10 + $0x48] sm:$0xff]
        %v1046 = vld [vmem:[#allocation10 + $0x50] sm:$0xf]
        %v1047 = vld [vmem:[#allocation10 + $0x54] sm:$0xff]
        %v1048 = vld [vmem:[#allocation10 + $0x5c] sm:$0xf]
        %v1049 = vld [vmem:[#allocation10 + $0x60] sm:$0xff]
        %v1050 = vld [vmem:[#allocation10 + $0x68] sm:$0xf]
        %v1051 = vld [vmem:[#allocation10 + $0x6c] sm:$0xff]
        %v1052 = vld [vmem:[#allocation10 + $0x74] sm:$0xf]
        %v1053 = vld [vmem:[#allocation10 + $0x78] sm:$0xff]
        %v1054 = vld [vmem:[#allocation10 + $0x80] sm:$0xf]
        %v1055 = vld [vmem:[#allocation10 + $0x84] sm:$0xff]
        %v1056 = vld [vmem:[#allocation10 + $0x8c] sm:$0xf]
        %v1057 = vld [vmem:[#allocation10 + $0x90] sm:$0xff]
        %v1058 = vld [vmem:[#allocation10 + $0x98] sm:$0xf]
        %v1059 = vld [vmem:[#allocation10 + $0x9c] sm:$0xff]
        %v1060 = vld [vmem:[#allocation10 + $0xa4] sm:$0xf]
        %v1061 = vld [vmem:[#allocation10 + $0xa8] sm:$0xff]
        %v1062 = vld [vmem:[#allocation10 + $0xb0] sm:$0xf]
        %v1063 = vld [vmem:[#allocation10 + $0xb4] sm:$0xff]
        %v1064 = vld [vmem:[#allocation10 + $0xbc] sm:$0xf]
        %v1065 = vld [vmem:[#allocation10 + $0xc0] sm:$0xff]
        %v1066 = vld [vmem:[#allocation10 + $0xc8] sm:$0xf]
        %v1067 = vld [vmem:[#allocation10 + $0xcc] sm:$0xff]
        %v1068 = vld [vmem:[#allocation10 + $0xd4] sm:$0xf]
        %v1069 = vld [vmem:[#allocation10 + $0xd8] sm:$0xff]
        %v1070 = vld [vmem:[#allocation10 + $0xe0] sm:$0xf]
        %v1071 = vld [vmem:[#allocation10 + $0xe4] sm:$0xff]
        %v1072 = vld [vmem:[#allocation10 + $0xec] sm:$0xf]
        %v1073 = vld [vmem:[#allocation10 + $0xf0] sm:$0xff]
        %v1074 = vld [vmem:[#allocation10 + $0xf8] sm:$0xf]
        %v1075 = vld [vmem:[#allocation10 + $0xfc] sm:$0xff]
        %v1076 = vld [vmem:[#allocation10 + $0x104] sm:$0xf]
        %v1077 = vld [vmem:[#allocation10 + $0x108] sm:$0xff]
        %v1078 = vld [vmem:[#allocation10 + $0x110] sm:$0xf]
        %v1079 = vld [vmem:[#allocation10 + $0x114] sm:$0xff]
        %v1080 = vld [vmem:[#allocation10 + $0x11c] sm:$0xf]
        %v1081 = vld [vmem:[#allocation10 + $0x120] sm:$0xff]
        %v1082 = vld [vmem:[#allocation10 + $0x128] sm:$0xf]
        %v1083 = vld [vmem:[#allocation10 + $0x12c] sm:$0xff]
        %v1084 = vld [vmem:[#allocation10 + $0x134] sm:$0xf]
        %v1085 = vld [vmem:[#allocation10 + $0x138] sm:$0xff]
        %v1086 = vld [vmem:[#allocation10 + $0x140] sm:$0xf]
        %v1087 = vld [vmem:[#allocation10 + $0x144] sm:$0xff]
        %v1088 = vld [vmem:[#allocation10 + $0x14c] sm:$0xf]
        %v1089 = vld [vmem:[#allocation10 + $0x150] sm:$0xff]
        %v1090 = vld [vmem:[#allocation10 + $0x158] sm:$0xf]
        %v1091 = vld [vmem:[#allocation10 + $0x15c] sm:$0xff]
        %v1092 = vld [vmem:[#allocation10 + $0x164] sm:$0xf]
        %v1093 = vld [vmem:[#allocation10 + $0x168] sm:$0xff]
        %v1094 = vld [vmem:[#allocation10 + $0x170] sm:$0xf]
        %v1095 = vld [vmem:[#allocation10 + $0x174] sm:$0xff]
        %v1096 = vld [vmem:[#allocation10 + $0x17c] sm:$0xf]
        %v1097 = vld [vmem:[%s6] sm:$0x7]
        %v1099 = vlaneseq
        %v1100 = vshrl.u32 %v1099, 7
        %v1101 = vsub.s32 0, %v1100
        %v1102 = vrot.slane %v1097, %v1101
        %v1103 = vlaneseq
        %v1104 = vshrl.u32 %v1103, 7
        %v1105 = vsub.s32 1, %v1104
        %v1106 = vrot.slane %v1097, %v1105
        %v1107 = vlaneseq
        %v1108 = vshrl.u32 %v1107, 7
        %v1109 = vsub.s32 2, %v1108
        %v1110 = vrot.slane %v1097, %v1109
        %v1114 = vpack.c.b16 %v1031, %v1029
        %v1115 = vpack.c.b16 %v1032, %v1030
        %v1182 = vunpack.c.l.b16 %v1033
        %v1183 = vunpack.c.h.b16 %v1033
        %v1184 = vunpack.c.l.b16 %v1034
        %v1185 = vunpack.c.l.b16 %v1035
        %v1186 = vunpack.c.h.b16 %v1035
        %v1187 = vunpack.c.l.b16 %v1036
        %v1188 = vunpack.c.l.b16 %v1037
        %v1189 = vunpack.c.h.b16 %v1037
        %v1190 = vunpack.c.l.b16 %v1038
        %v1191 = vunpack.c.l.b16 %v1039
        %v1192 = vunpack.c.h.b16 %v1039
        %v1193 = vunpack.c.l.b16 %v1040
        %v1194 = vunpack.c.l.b16 %v1041
        %v1195 = vunpack.c.h.b16 %v1041
        %v1196 = vunpack.c.l.b16 %v1042
        %v1197 = vunpack.c.l.b16 %v1043
        %v1198 = vunpack.c.h.b16 %v1043
        %v1199 = vunpack.c.l.b16 %v1044
        %v1200 = vunpack.c.l.b16 %v1045
        %v1201 = vunpack.c.h.b16 %v1045
        %v1202 = vunpack.c.l.b16 %v1046
        %v1203 = vunpack.c.l.b16 %v1047
        %v1204 = vunpack.c.h.b16 %v1047
        %v1205 = vunpack.c.l.b16 %v1048
        %v1206 = vunpack.c.l.b16 %v1049
        %v1207 = vunpack.c.h.b16 %v1049
        %v1208 = vunpack.c.l.b16 %v1050
        %v1209 = vunpack.c.l.b16 %v1051
        %v1210 = vunpack.c.h.b16 %v1051
        %v1211 = vunpack.c.l.b16 %v1052
        %v1212 = vunpack.c.l.b16 %v1053
        %v1213 = vunpack.c.h.b16 %v1053
        %v1214 = vunpack.c.l.b16 %v1054
        %v1215 = vunpack.c.l.b16 %v1055
        %v1216 = vunpack.c.h.b16 %v1055
        %v1217 = vunpack.c.l.b16 %v1056
        %v1218 = vunpack.c.l.b16 %v1057
        %v1219 = vunpack.c.h.b16 %v1057
        %v1220 = vunpack.c.l.b16 %v1058
        %v1221 = vunpack.c.l.b16 %v1059
        %v1222 = vunpack.c.h.b16 %v1059
        %v1223 = vunpack.c.l.b16 %v1060
        %v1224 = vunpack.c.l.b16 %v1061
        %v1225 = vunpack.c.h.b16 %v1061
        %v1226 = vunpack.c.l.b16 %v1062
        %v1227 = vunpack.c.l.b16 %v1063
        %v1228 = vunpack.c.h.b16 %v1063
        %v1229 = vunpack.c.l.b16 %v1064
        %v1230 = vunpack.c.l.b16 %v1065
        %v1231 = vunpack.c.h.b16 %v1065
        %v1232 = vunpack.c.l.b16 %v1066
        %v1233 = vunpack.c.l.b16 %v1067
        %v1234 = vunpack.c.h.b16 %v1067
        %v1235 = vunpack.c.l.b16 %v1068
        %v1236 = vunpack.c.l.b16 %v1069
        %v1237 = vunpack.c.h.b16 %v1069
        %v1238 = vunpack.c.l.b16 %v1070
        %v1239 = vunpack.c.l.b16 %v1071
        %v1240 = vunpack.c.h.b16 %v1071
        %v1241 = vunpack.c.l.b16 %v1072
        %v1242 = vunpack.c.l.b16 %v1073
        %v1243 = vunpack.c.h.b16 %v1073
        %v1244 = vunpack.c.l.b16 %v1074
        %v1245 = vunpack.c.l.b16 %v1075
        %v1246 = vunpack.c.h.b16 %v1075
        %v1247 = vunpack.c.l.b16 %v1076
        %v1248 = vunpack.c.l.b16 %v1077
        %v1249 = vunpack.c.h.b16 %v1077
        %v1250 = vunpack.c.l.b16 %v1078
        %v1251 = vunpack.c.l.b16 %v1079
        %v1252 = vunpack.c.h.b16 %v1079
        %v1253 = vunpack.c.l.b16 %v1080
        %v1254 = vunpack.c.l.b16 %v1081
        %v1255 = vunpack.c.h.b16 %v1081
        %v1256 = vunpack.c.l.b16 %v1082
        %v1257 = vunpack.c.l.b16 %v1083
        %v1258 = vunpack.c.h.b16 %v1083
        %v1259 = vunpack.c.l.b16 %v1084
        %v1260 = vunpack.c.l.b16 %v1085
        %v1261 = vunpack.c.h.b16 %v1085
        %v1262 = vunpack.c.l.b16 %v1086
        %v1263 = vunpack.c.l.b16 %v1087
        %v1264 = vunpack.c.h.b16 %v1087
        %v1265 = vunpack.c.l.b16 %v1088
        %v1266 = vunpack.c.l.b16 %v1089
        %v1267 = vunpack.c.h.b16 %v1089
        %v1268 = vunpack.c.l.b16 %v1090
        %v1269 = vunpack.c.l.b16 %v1091
        %v1270 = vunpack.c.h.b16 %v1091
        %v1271 = vunpack.c.l.b16 %v1092
        %v1272 = vunpack.c.l.b16 %v1093
        %v1273 = vunpack.c.h.b16 %v1093
        %v1274 = vunpack.c.l.b16 %v1094
        %v1275 = vunpack.c.l.b16 %v1095
        %v1276 = vunpack.c.h.b16 %v1095
        %v1277 = vunpack.c.l.b16 %v1096
        %v1278 = vpack.c.b16 %v1185, %v1182
        %v1279 = vpack.c.b16 %v1186, %v1183
        %v1280 = vpack.c.b16 %v1187, %v1184
        %v1281 = vpack.c.b16 %v1191, %v1188
        %v1282 = vpack.c.b16 %v1192, %v1189
        %v1283 = vpack.c.b16 %v1193, %v1190
        %v1284 = vpack.c.b16 %v1197, %v1194
        %v1285 = vpack.c.b16 %v1198, %v1195
        %v1286 = vpack.c.b16 %v1199, %v1196
        %v1287 = vpack.c.b16 %v1203, %v1200
        %v1288 = vpack.c.b16 %v1204, %v1201
        %v1289 = vpack.c.b16 %v1205, %v1202
        %v1290 = vpack.c.b16 %v1209, %v1206
        %v1291 = vpack.c.b16 %v1210, %v1207
        %v1292 = vpack.c.b16 %v1211, %v1208
        %v1293 = vpack.c.b16 %v1215, %v1212
        %v1294 = vpack.c.b16 %v1216, %v1213
        %v1295 = vpack.c.b16 %v1217, %v1214
        %v1296 = vpack.c.b16 %v1221, %v1218
        %v1297 = vpack.c.b16 %v1222, %v1219
        %v1298 = vpack.c.b16 %v1223, %v1220
        %v1299 = vpack.c.b16 %v1227, %v1224
        %v1300 = vpack.c.b16 %v1228, %v1225
        %v1301 = vpack.c.b16 %v1229, %v1226
        %v1302 = vpack.c.b16 %v1233, %v1230
        %v1303 = vpack.c.b16 %v1234, %v1231
        %v1304 = vpack.c.b16 %v1235, %v1232
        %v1305 = vpack.c.b16 %v1239, %v1236
        %v1306 = vpack.c.b16 %v1240, %v1237
        %v1307 = vpack.c.b16 %v1241, %v1238
        %v1308 = vpack.c.b16 %v1245, %v1242
        %v1309 = vpack.c.b16 %v1246, %v1243
        %v1310 = vpack.c.b16 %v1247, %v1244
        %v1311 = vpack.c.b16 %v1251, %v1248
        %v1312 = vpack.c.b16 %v1252, %v1249
        %v1313 = vpack.c.b16 %v1253, %v1250
        %v1314 = vpack.c.b16 %v1257, %v1254
        %v1315 = vpack.c.b16 %v1258, %v1255
        %v1316 = vpack.c.b16 %v1259, %v1256
        %v1317 = vpack.c.b16 %v1263, %v1260
        %v1318 = vpack.c.b16 %v1264, %v1261
        %v1319 = vpack.c.b16 %v1265, %v1262
        %v1320 = vpack.c.b16 %v1269, %v1266
        %v1321 = vpack.c.b16 %v1270, %v1267
        %v1322 = vpack.c.b16 %v1271, %v1268
        %v1323 = vpack.c.b16 %v1275, %v1272
        %v1324 = vpack.c.b16 %v1276, %v1273
        %v1325 = vpack.c.b16 %v1277, %v1274
        %1374 = vmatprep.subr.bf16.mxu0 %v1300
        %1375 = vmatpush1.bf16.msra.mxu0 %v1299
        %1376 = vmatprep.subr.bf16.mxu0 %v1297
        %1377 = vmatpush1.bf16.msra.mxu0 %v1296
        %1378 = vmatprep.subr.bf16.mxu0 %v1294
        %1379 = vmatpush1.bf16.msra.mxu0 %v1293
        %1380 = vmatprep.subr.bf16.mxu0 %v1291
        %1381 = vmatpush1.bf16.msra.mxu0 %v1290
        %1382 = vmatprep.subr.bf16.mxu0 %v1288
        %1383 = vmatpush1.bf16.msra.mxu0 %v1287
        %1384 = vmatprep.subr.bf16.mxu0 %v1285
        %1385 = vmatpush1.bf16.msra.mxu0 %v1284
        %1386 = vmatprep.subr.bf16.mxu0 %v1282
        %1387 = vmatpush1.bf16.msra.mxu0 %v1281
        %1388 = vmatprep.subr.bf16.mxu0 %v1279
        %1389 = vmatpush1.bf16.msra.mxu0 %v1278
        %1390 = vmatprep.subr.bf16.mxu0 %v1324
        %1391 = vmatpush2.bf16.msra.mxu0 %v1323
        %1392 = vmatprep.subr.bf16.mxu0 %v1321
        %1393 = vmatpush2.bf16.msra.mxu0 %v1320
        %1394 = vmatprep.subr.bf16.mxu0 %v1318
        %1395 = vmatpush2.bf16.msra.mxu0 %v1317
        %1396 = vmatprep.subr.bf16.mxu0 %v1315
        %1397 = vmatpush2.bf16.msra.mxu0 %v1314
        %1398 = vmatprep.subr.bf16.mxu0 %v1312
        %1399 = vmatpush2.bf16.msra.mxu0 %v1311
        %1400 = vmatprep.subr.bf16.mxu0 %v1309
        %1401 = vmatpush2.bf16.msra.mxu0 %v1308
        %1402 = vmatprep.subr.bf16.mxu0 %v1306
        %1403 = vmatpush2.bf16.msra.mxu0 %v1305
        %1404 = vmatprep.subr.bf16.mxu0 %v1303
        %1405 = vmatpush2.bf16.msra.mxu0 %v1302
        %1406 = vmatprep.mubr.bf16.mxu0 %v1115
        %1407 = vmatmul.mubr.bf16.gmra.mxu0 %v1114
        %v1408 = vpop.f32.mrf.mxu0
        %v1409 = vadd.f32 %v1102, %v1408
        %v1410 = vpop.f32.mrf.mxu0
        %v1411 = vadd.f32 %v1106, %v1410
        %v1412 = vpop.f32.mrf.mxu0
        %v1413 = vadd.f32 %v1102, %v1412
        %v1414 = vpop.f32.mrf.mxu0
        %v1415 = vadd.f32 %v1106, %v1414
        %1416 = vdwg.mxu0
        %1417 = vmatprep.subr.bf16.mxu0 0
        %1418 = vmatpush1.bf16.msra.mxu0 %v1301
        %1419 = vmatprep.subr.bf16.mxu0 0
        %1420 = vmatpush1.bf16.msra.mxu0 %v1298
        %1421 = vmatprep.subr.bf16.mxu0 0
        %1422 = vmatpush1.bf16.msra.mxu0 %v1295
        %1423 = vmatprep.subr.bf16.mxu0 0
        %1424 = vmatpush1.bf16.msra.mxu0 %v1292
        %1425 = vmatprep.subr.bf16.mxu0 0
        %1426 = vmatpush1.bf16.msra.mxu0 %v1289
        %1427 = vmatprep.subr.bf16.mxu0 0
        %1428 = vmatpush1.bf16.msra.mxu0 %v1286
        %1429 = vmatprep.subr.bf16.mxu0 0
        %1430 = vmatpush1.bf16.msra.mxu0 %v1283
        %1431 = vmatprep.subr.bf16.mxu0 0
        %1432 = vmatpush1.bf16.msra.mxu0 %v1280
        %1433 = vmatprep.subr.bf16.mxu0 0
        %1434 = vmatpush2.bf16.msra.mxu0 %v1325
        %1435 = vmatprep.subr.bf16.mxu0 0
        %1436 = vmatpush2.bf16.msra.mxu0 %v1322
        %1437 = vmatprep.subr.bf16.mxu0 0
        %1438 = vmatpush2.bf16.msra.mxu0 %v1319
        %1439 = vmatprep.subr.bf16.mxu0 0
        %1440 = vmatpush2.bf16.msra.mxu0 %v1316
        %1441 = vmatprep.subr.bf16.mxu0 0
        %1442 = vmatpush2.bf16.msra.mxu0 %v1313
        %1443 = vmatprep.subr.bf16.mxu0 0
        %1444 = vmatpush2.bf16.msra.mxu0 %v1310
        %1445 = vmatprep.subr.bf16.mxu0 0
        %1446 = vmatpush2.bf16.msra.mxu0 %v1307
        %1447 = vmatprep.subr.bf16.mxu0 0
        %1448 = vmatpush2.bf16.msra.mxu0 %v1304
        %1449 = vmatprep.mubr.bf16.mxu0 %v1115
        %1450 = vmatmul.mubr.bf16.gmra.mxu0 %v1114
        %v1451 = vpop.f32.mrf.mxu0
        %v1452 = vadd.f32 %v1110, %v1451
        %v1453 = vpop.f32.mrf.mxu0
        %v1454 = vpop.f32.mrf.mxu0
        %v1455 = vadd.f32 %v1110, %v1454
        %v1456 = vpop.f32.mrf.mxu0
        %1457 = vdwg.mxu0
        %v1458 = vadd.f32 %v1409, %v782
        %v1459 = vadd.f32 %v1413, %v786
        %v1460 = vxor.u32 %v1458, 2147483648
        %v1461 = vxor.u32 %v1459, 2147483648
        %v1462 = vmul.f32 %v1460, 1.442695
        %v1463 = vpow.pop %v1462
        %v1464 = vmul.f32 %v1461, 1.442695
        %v1465 = vpow.pop %v1464
        %v1466 = vadd.f32 %v1463, 1.0
        %v1467 = vadd.f32 %v1465, 1.0
        %v1468 = vrcp.pop %v1466
        %v1469 = vmul.f32 1.0, %v1468
        %v1470 = vrcp.pop %v1467
        %v1471 = vmul.f32 1.0, %v1470
        %v1472 = vadd.f32 %v1411, %v784
        %v1473 = vadd.f32 %v1415, %v788
        %v1474 = vxor.u32 %v1472, 2147483648
        %v1475 = vxor.u32 %v1473, 2147483648
        %v1476 = vmul.f32 %v1474, 1.442695
        %v1477 = vpow.pop %v1476
        %v1478 = vmul.f32 %v1475, 1.442695
        %v1479 = vpow.pop %v1478
        %v1480 = vadd.f32 %v1477, 1.0
        %v1481 = vadd.f32 %v1479, 1.0
        %v1482 = vrcp.pop %v1480
        %v1483 = vmul.f32 1.0, %v1482
        %v1484 = vrcp.pop %v1481
        %v1485 = vmul.f32 1.0, %v1484
        %v1486 = vmul.f32 %v1469, %v825
        %v1487 = vmul.f32 %v1471, %v828
        %v1488 = vadd.f32 %v1452, %v1486
        %v1489 = vadd.f32 %v1455, %v1487
        %v1490 = vtanh.pop %v1488
        %v1491 = vtanh.pop %v1489
        %v1492 = vsub.f32 %v418, %v1490
        %v1493 = vsub.f32 %v419, %v1491
        %v1494 = vmul.f32 %v1483, %v1492
        %v1495 = vmul.f32 %v1485, %v1493
        %v1496 = vadd.f32 %v1490, %v1494
        %v1497 = vadd.f32 %v1491, %v1495
        %1498 = vst [vmem:[#allocation11] sm:$0xff] %v1496
        %1499 = vst [vmem:[#allocation11 + $0x8] sm:$0xff] %v1497
        // Predicated region
        $region73: #{tpu_custom_call.1} parent=47 // pred_check
          %p1500 = pneg %p222
        $region74: #{tpu_custom_call.1} parent=47 // pred_check_branch
          %1502 = sbr.rel (%p1500) target = $region76
        $region75: #{tpu_custom_call.1} parent=47 // pred_region
          %s1503 = smul.u32 2, %s30
          %s1505 = ssub.s32 256, 256
          %1506 = vsyncadd [#allocation4], %s1505
          %s1507 = smul.addr %s1503, 128
          %s1508 = scalar_lea.hbm %s7, %s1507
          %s1509 = sshll.u32 [#allocation11], 4
          %s1510 = int_to_ptr.vmem [resolvable:$true] %s1509
          %1515 = dma.vmem_to_hbm [thread:$0]  %s1510, 256, %s1508, [#allocation4], 128, 128, 8
        $region76: #{tpu_custom_call.1} parent=47 // pred_fallthru
          _
        // Predicated region
        $region77: #{tpu_custom_call.1} parent=47 // pred_check
          %p1516 = pneg %p222
        $region78: #{tpu_custom_call.1} parent=47 // pred_check_branch
          %1518 = sbr.rel (%p1516) target = $region80
        $region79: #{tpu_custom_call.1} parent=47 // pred_region
          %1519 = dma.done [#allocation4], 256
        $region80: #{tpu_custom_call.1} parent=47 // pred_fallthru
          _
      $region48: #{tpu_custom_call.1} parent=5 // pred_fallthru
        _
      %p1520 = scmp.le.s32.totalorder 2, %s21
      // Predicated region
      $region81: #{tpu_custom_call.1} parent=5 // pred_check
        %p1521 = pneg %p1520
      $region82: #{tpu_custom_call.1} parent=5 // pred_check_branch
        %1523 = sbr.rel (%p1521) target = $region84
      $region83: #{tpu_custom_call.1} parent=5 // pred_region
        %s1524 = ssub.s32 %s21, 2
      $region84: #{tpu_custom_call.1} parent=5 // pred_fallthru
        _
    $region6: #{tpu_custom_call.1} parent=1 // loop_footer
      %s25 = sadd.s32 1, %s21
    $region7: #{tpu_custom_call.1} parent=1 // loop_footer_branch
      %20 = sbr.rel target = $region3
    $region8: #{tpu_custom_call.1} parent=1 // loop_exit
      _
    %1525 = vsyncpa [#allocation3], 1
    %s1526 = scalar_lea.sflag [#allocation3], 1
    %1527 = vsyncpa %s1526, 1
    %1528 = vsyncpa [#allocation6], 1
    %s1529 = scalar_lea.sflag [#allocation6], 1
    %1530 = vsyncpa %s1529, 1
    %1531 = vsyncpa [#allocation9], 1
    %1532 = vsyncpa [#allocation4], 1
    %s1533 = scalar_lea.sflag [#allocation4], 1
    %1534 = vsyncpa %s1533, 1

</llo_original>
